<compile_context>
chip_gen: v7x
topology: tpu7x:2x2x1
jax: 0.10.0
libtpu: 0.0.40
codegen_flags: <defaults>
</compile_context>

<pallas_src>
import functools

import jax
import jax.numpy as jnp
from jax import lax
from jax.experimental import pallas as pl
from jax.experimental.pallas import tpu as pltpu

LANE = 128


def _round_up(x, m):
    return ((x + m - 1) // m) * m


# ----------------------------------------------------------------------------
# Fused kernel.  Compact packed layouts (H = hidden size, H2 = 2H = fwd|bwd
# state width, G = 8H = 4 gate blocks, each block = [fwd(H) | bwd(H)]):
#   wih   : (d_in, G)  input projection, both directions, gate order i|f|g|o
#   whh   : (H2, G)    block-diagonal recurrent weights (fwd rows -> fwd cols,
#                      bwd rows -> bwd cols)
#   bias  : (1, G)     b_ih + b_hh, both directions
#   w_tag : (H2, Np)   Linear head (transposed); padded tag columns are zero
#   b_tag : (1, Np)    real bias; padded columns carry -1e30 (tag mask baked in)
# ----------------------------------------------------------------------------
def _tagger_kernel(T, H,
                   x_ids_ref, emb_ref,
                   wih0_ref, whh0_ref, b0_ref,
                   wih1_ref, whh1_ref, b1_ref,
                   wtag_ref, btag_ref,
                   out_ref,
                   l0_scr, l1_scr):
    H2 = 2 * H
    G = 4 * H2

    # --- embedding lookup as a one-hot matmul (no XLA gather dispatch) -------
    vocab_p = emb_ref.shape[0]
    ids = x_ids_ref[...]                                             # (T, 1) i32
    onehot = (ids == lax.broadcasted_iota(jnp.int32, (T, vocab_p), 1)
              ).astype(jnp.float32)                                  # (T, Vp)
    x = jnp.dot(onehot, emb_ref[...], preferred_element_type=jnp.float32)

    # Lane masks (computed once): within every 2H gate block the first H lanes
    # belong to the forward direction.
    lane = lax.broadcasted_iota(jnp.int32, (1, G), 1)
    if (H2 & (H2 - 1)) == 0:
        pos = jnp.bitwise_and(lane, H2 - 1)
    else:
        pos = lane % H2
    gate_fwd_mask = pos < H                                          # (1, G)
    state_fwd_mask = lax.broadcasted_iota(jnp.int32, (1, H2), 1) < H # (1, 2H)

    def run_layer(x_in, wih_ref, whh_ref, b_ref, out_scr):
        # Hoisted input projection: ONE matmul for both directions of the layer.
        gin = (jnp.dot(x_in, wih_ref[...], preferred_element_type=jnp.float32)
               + b_ref[...])                                         # (T, G)
        # Compact recurrent weights: (2H, 8H) f32 = 16 vregs -> safe to hoist.
        W = whh_ref[...]

        h = jnp.zeros((1, H2), jnp.float32)                          # [h_fwd|h_bwd]
        c = jnp.zeros((1, H2), jnp.float32)
        hs = []
        for t in range(T):               # statically unrolled (T small & static)
            tb = T - 1 - t
            # Forward direction consumes position t, backward position T-1-t;
            # one lane-masked select combines both input-projection rows.
            g_in = jnp.where(gate_fwd_mask, gin[t:t + 1, :], gin[tb:tb + 1, :])
            g = g_in + jnp.dot(h, W, preferred_element_type=jnp.float32)  # (1, G)
            s = jax.nn.sigmoid(g)                    # one EUP pass: i, f, o slots
            tg = jnp.tanh(g[:, 2 * H2:3 * H2])       # g slot only
            c = s[:, H2:2 * H2] * c + s[:, 0:H2] * tg
            h = s[:, 3 * H2:4 * H2] * jnp.tanh(c)
            hs.append(h)

        # out[t] = [h_fwd(t) | h_bwd(t)]; the backward output for position t was
        # produced at unrolled step T-1-t.
        for t in range(T):
            out_scr[pl.ds(t, 1), :] = jnp.where(state_fwd_mask,
                                                hs[t], hs[T - 1 - t])
        return out_scr[...]

    h0 = run_layer(x, wih0_ref, whh0_ref, b0_ref, l0_scr)            # (T, 2H)
    # TODO(synk): inter-layer dropout(0.3) is training-only; eval skips it.
    h1 = run_layer(h0, wih1_ref, whh1_ref, b1_ref, l1_scr)           # (T, 2H)

    # Head: Linear(2H -> tags) + log_softmax.  Padded tag columns already carry
    # a large negative bias (mask baked into b_tag), so no iota/where needed.
    logits = (jnp.dot(h1, wtag_ref[...], preferred_element_type=jnp.float32)
              + btag_ref[...])                                       # (T, Np)
    m = jnp.max(logits, axis=-1, keepdims=True)
    sh = logits - m
    lse = jnp.log(jnp.sum(jnp.exp(sh), axis=-1, keepdims=True))
    out_ref[...] = sh - lse


# ----------------------------------------------------------------------------
# Forward pass: everything (embedding lookup, 2-layer biLSTM, head, softmax)
# runs in one fused pallas_call; all weights are VMEM-resident (~0.35 MiB).
# ----------------------------------------------------------------------------
def lstm_tagger_forward(params, x_ids, *, n_tags):
    T = x_ids.shape[0]
    H = params["whh0"].shape[0] // 2
    Np = params["w_tag"].shape[1]

    kernel = functools.partial(_tagger_kernel, T, H)
    vmem = pl.BlockSpec(memory_space=pltpu.MemorySpace.VMEM)

    out_pad = pl.pallas_call(
        kernel,
        out_shape=jax.ShapeDtypeStruct((T, Np), jnp.float32),
        in_specs=[vmem] * 10,
        out_specs=vmem,
        scratch_shapes=[pltpu.VMEM((T, 2 * H), jnp.float32),   # layer-0 output
                        pltpu.VMEM((T, 2 * H), jnp.float32)],  # layer-1 output
    )(x_ids.reshape(T, 1).astype(jnp.int32),
      params["embedding"],
      params["wih0"], params["whh0"], params["b0"],
      params["wih1"], params["whh1"], params["b1"],
      params["w_tag"], params["b_tag"])

    return out_pad[:, :n_tags]


# ----------------------------------------------------------------------------
# Deterministic PyTorch-shaped parameter init.
# ----------------------------------------------------------------------------
def init_raw_params(key, vocab_size, emb_dim, hidden_dim, num_layers, tagset_size):
    H = hidden_dim
    bound = 1.0 / (H ** 0.5)
    keys = iter(jax.random.split(key, 4 + num_layers * 16))

    def unif(shape):
        return jax.random.uniform(next(keys), shape, jnp.float32, -bound, bound)

    raw = {
        "embedding": jax.random.normal(next(keys), (vocab_size, emb_dim),
                                       jnp.float32) * 0.1,
        "layers": [],
        "w_tag": unif((tagset_size, 2 * H)),   # Linear weight (tagset, 2H)
        "b_tag": unif((tagset_size,)),
    }
    for layer in range(num_layers):
        d_in = emb_dim if layer == 0 else 2 * H
        lp = {}
        for d in ("f", "b"):
            lp["w_ih_" + d] = unif((4 * H, d_in))   # PyTorch weight_ih_l{k}
            lp["w_hh_" + d] = unif((4 * H, H))      # PyTorch weight_hh_l{k}
            lp["b_ih_" + d] = unif((4 * H,))
            lp["b_hh_" + d] = unif((4 * H,))
        raw["layers"].append(lp)
    return raw


def pack_params(raw, lane=LANE):
    """Pre-transpose and pack weights into the compact fused-direction layout."""
    H = raw["layers"][0]["w_hh_f"].shape[1]
    V, E = raw["embedding"].shape
    n_tags = raw["b_tag"].shape[0]
    H2, G = 2 * H, 8 * H
    Ep = _round_up(E, lane)
    Vp = _round_up(V, lane)
    Np = _round_up(n_tags, lane)

    def pack_cols(wf_t, wb_t):
        # wf_t / wb_t: (d_in, 4H) -> (d_in, G); gate block k = [fwd(H) | bwd(H)].
        out = jnp.zeros((wf_t.shape[0], G), jnp.float32)
        for k in range(4):
            out = out.at[:, k * H2:k * H2 + H].set(wf_t[:, k * H:(k + 1) * H])
            out = out.at[:, k * H2 + H:(k + 1) * H2].set(wb_t[:, k * H:(k + 1) * H])
        return out

    def pad_rows(w, rows):
        return jnp.zeros((rows, w.shape[1]), w.dtype).at[:w.shape[0], :].set(w)

    p = {}
    p["embedding"] = jnp.zeros((Vp, Ep), jnp.float32).at[:V, :E].set(raw["embedding"])

    for li, lp in enumerate(raw["layers"]):
        wih = pack_cols(lp["w_ih_f"].T, lp["w_ih_b"].T)              # (d_in, G)
        if li == 0:
            wih = pad_rows(wih, Ep)                                  # (Ep, G)
        # Block-diagonal recurrent weights: fwd rows -> fwd gate columns only.
        whh = jnp.zeros((H2, G), jnp.float32)
        whh_f_t, whh_b_t = lp["w_hh_f"].T, lp["w_hh_b"].T            # (H, 4H)
        for k in range(4):
            whh = whh.at[:H, k * H2:k * H2 + H].set(whh_f_t[:, k * H:(k + 1) * H])
            whh = whh.at[H:, k * H2 + H:(k + 1) * H2].set(whh_b_t[:, k * H:(k + 1) * H])
        bias = pack_cols((lp["b_ih_f"] + lp["b_hh_f"]).reshape(1, -1),
                         (lp["b_ih_b"] + lp["b_hh_b"]).reshape(1, -1))   # (1, G)
        p[f"wih{li}"] = wih
        p[f"whh{li}"] = whh
        p[f"b{li}"] = bias

    # Head: transpose + zero-pad tag columns; bake the tag mask into the bias
    # (finite -1e30, safe for f32 exp()).
    wt = raw["w_tag"].T                                              # (2H, tags)
    p["w_tag"] = jnp.zeros((H2, Np), jnp.float32).at[:, :n_tags].set(wt)
    p["b_tag"] = (jnp.full((1, Np), -1e30, jnp.float32)
                  .at[0, :n_tags].set(raw["b_tag"]))
    return p


# ----------------------------------------------------------------------------
# Pure-JAX reference (unpadded, PyTorch semantics), precision=HIGHEST matmuls.
# ----------------------------------------------------------------------------
def reference_forward(raw, x_ids):
    prec = lax.Precision.HIGHEST
    h = raw["embedding"][x_ids]                                      # (T, E)
    for lp in raw["layers"]:
        outs = []
        for d, rev in (("f", False), ("b", True)):
            w_ih, w_hh = lp["w_ih_" + d], lp["w_hh_" + d]
            b = lp["b_ih_" + d] + lp["b_hh_" + d]
            Hd = w_hh.shape[1]
            xs = h[::-1] if rev else h
            hh = jnp.zeros((Hd,), jnp.float32)
            cc = jnp.zeros((Hd,), jnp.float32)
            seq = []
            for t in range(xs.shape[0]):
                g = (jnp.dot(w_ih, xs[t], precision=prec)
                     + jnp.dot(w_hh, hh, precision=prec) + b)
                i_g = jax.nn.sigmoid(g[0:Hd])
                f_g = jax.nn.sigmoid(g[Hd:2 * Hd])
                g_g = jnp.tanh(g[2 * Hd:3 * Hd])
                o_g = jax.nn.sigmoid(g[3 * Hd:4 * Hd])
                cc = f_g * cc + i_g * g_g
                hh = o_g * jnp.tanh(cc)
                seq.append(hh)
            seq = jnp.stack(seq)
            outs.append(seq[::-1] if rev else seq)
        h = jnp.concatenate(outs, axis=-1)
    logits = jnp.dot(h, raw["w_tag"].T, precision=prec) + raw["b_tag"]
    return jax.nn.log_softmax(logits, axis=-1)


if __name__ == "__main__":
    # Small shapes consistent with the module's forward:
    #   x: (T,) int ids -> embeds (T, E) -> 2-layer biLSTM (T, 2H) -> (T, tags).
    T = 8          # sequence length
    EMB = 128      # input_size / embedding dim (200 in original, shrunk)
    HID = 32       # hidden_dim
    LAYERS = 2     # num_layers (undefined global in the original; chosen = 2)
    VOCAB = 16
    TAGSET = 8

    root = jax.random.PRNGKey(0)
    k_params, k_ids = jax.random.split(root)
    raw = init_raw_params(k_params, VOCAB, EMB, HID, LAYERS, TAGSET)
    params = pack_params(raw)
    x_ids = jax.random.randint(k_ids, (T,), 0, VOCAB, dtype=jnp.int32)

    fwd = jax.jit(functools.partial(lstm_tagger_forward, n_tags=TAGSET))
    tag_scores = jax.block_until_ready(fwd(params, x_ids))

    assert tag_scores.shape == (T, TAGSET)
    assert tag_scores.dtype == jnp.float32
    # log_softmax rows must (log-)sum to ~1
    row_sums = jnp.sum(jnp.exp(tag_scores), axis=-1)
    assert bool(jnp.all(jnp.abs(row_sums - 1.0) < 1e-4))

    # Cross-check against the unpadded pure-JAX reference (tightened tolerance).
    ref = jax.jit(reference_forward)(raw, x_ids)
    err = float(jnp.max(jnp.abs(tag_scores - ref)))
    assert err < 5e-5, f"max abs err vs reference: {err}"

    print("KERNEL_OK")
</pallas_src>

<mosaic_0001>
module attributes {stable_mosaic.version = 11 : i64} {
  func.func @_tagger_kernel(%arg0: memref<8x1xi32, #tpu.memory_space<vmem>>, %arg1: memref<128x128xf32, #tpu.memory_space<vmem>>, %arg2: memref<128x256xf32, #tpu.memory_space<vmem>>, %arg3: memref<64x256xf32, #tpu.memory_space<vmem>>, %arg4: memref<1x256xf32, #tpu.memory_space<vmem>>, %arg5: memref<64x256xf32, #tpu.memory_space<vmem>>, %arg6: memref<64x256xf32, #tpu.memory_space<vmem>>, %arg7: memref<1x256xf32, #tpu.memory_space<vmem>>, %arg8: memref<64x128xf32, #tpu.memory_space<vmem>>, %arg9: memref<1x128xf32, #tpu.memory_space<vmem>>, %arg10: memref<8x128xf32, #tpu.memory_space<vmem>>, %arg11: memref<8x64xf32, #tpu.memory_space<vmem>>, %arg12: memref<8x64xf32, #tpu.memory_space<vmem>>) attributes {dimension_semantics = [], scalar_prefetch = 0 : i64, scratch_operands = 2 : i64, tpu.core_type = #tpu.core_type<tc>} {
    %c0 = arith.constant 0 : index
    %c0_0 = arith.constant 0 : index
    %0 = vector.load %arg0[%c0, %c0_0] : memref<8x1xi32, #tpu.memory_space<vmem>>, vector<8x1xi32>
    %1 = tpu.iota {dimensions = array<i32: 1>} : vector<8x128xi32>
    %2 = vector.broadcast %0 : vector<8x1xi32> to vector<8x128xi32>
    %3 = arith.cmpi eq, %2, %1 : vector<8x128xi32>
    %4 = arith.extui %3 : vector<8x128xi1> to vector<8x128xi32>
    %5 = arith.sitofp %4 : vector<8x128xi32> to vector<8x128xf32>
    %c0_1 = arith.constant 0 : index
    %c0_2 = arith.constant 0 : index
    %6 = vector.load %arg1[%c0_1, %c0_2] : memref<128x128xf32, #tpu.memory_space<vmem>>, vector<128x128xf32>
    %cst = arith.constant dense<0.000000e+00> : vector<8x128xf32>
    %7 = tpu.matmul %5, %6, %cst {dimension_numbers = #tpu.dot_dimension_numbers<[1], [0], [0], [1], [0, 0, 1, 1], [], []>} : vector<8x128xf32>, vector<128x128xf32>, vector<8x128xf32> -> vector<8x128xf32>
    %8 = tpu.iota {dimensions = array<i32: 1>} : vector<1x256xi32>
    %c63_i32 = arith.constant 63 : i32
    %9 = vector.broadcast %c63_i32 : i32 to vector<1x256xi32>
    %10 = arith.andi %8, %9 : vector<1x256xi32>
    %c32_i32 = arith.constant 32 : i32
    %11 = vector.broadcast %c32_i32 : i32 to vector<1x256xi32>
    %12 = arith.cmpi slt, %10, %11 : vector<1x256xi32>
    %13 = tpu.iota {dimensions = array<i32: 1>} : vector<1x64xi32>
    %c32_i32_3 = arith.constant 32 : i32
    %14 = vector.broadcast %c32_i32_3 : i32 to vector<1x64xi32>
    %15 = arith.cmpi slt, %13, %14 : vector<1x64xi32>
    %c0_4 = arith.constant 0 : index
    %c0_5 = arith.constant 0 : index
    %16 = vector.load %arg2[%c0_4, %c0_5] : memref<128x256xf32, #tpu.memory_space<vmem>>, vector<128x256xf32>
    %cst_6 = arith.constant dense<0.000000e+00> : vector<8x256xf32>
    %17 = tpu.matmul %7, %16, %cst_6 {dimension_numbers = #tpu.dot_dimension_numbers<[1], [0], [0], [1], [0, 0, 1, 1], [], []>} : vector<8x128xf32>, vector<128x256xf32>, vector<8x256xf32> -> vector<8x256xf32>
    %c0_7 = arith.constant 0 : index
    %c0_8 = arith.constant 0 : index
    %18 = vector.load %arg4[%c0_7, %c0_8] : memref<1x256xf32, #tpu.memory_space<vmem>>, vector<1x256xf32>
    %19 = vector.broadcast %18 : vector<1x256xf32> to vector<8x256xf32>
    %20 = arith.addf %17, %19 : vector<8x256xf32>
    %c0_9 = arith.constant 0 : index
    %c0_10 = arith.constant 0 : index
    %21 = vector.load %arg3[%c0_9, %c0_10] : memref<64x256xf32, #tpu.memory_space<vmem>>, vector<64x256xf32>
    %cst_11 = arith.constant 0.000000e+00 : f32
    %22 = vector.broadcast %cst_11 : f32 to vector<1x64xf32>
    %cst_12 = arith.constant 0.000000e+00 : f32
    %23 = vector.broadcast %cst_12 : f32 to vector<1x64xf32>
    %24 = vector.extract_strided_slice %20 {offsets = [0, 0], sizes = [1, 256], strides = [1, 1]} : vector<8x256xf32> to vector<1x256xf32>
    %25 = vector.extract_strided_slice %20 {offsets = [7, 0], sizes = [1, 256], strides = [1, 1]} : vector<8x256xf32> to vector<1x256xf32>
    %26 = arith.select %12, %24, %25 : vector<1x256xi1>, vector<1x256xf32>
    %cst_13 = arith.constant dense<0.000000e+00> : vector<1x256xf32>
    %27 = tpu.matmul %22, %21, %cst_13 {dimension_numbers = #tpu.dot_dimension_numbers<[1], [0], [0], [1], [0, 0, 1, 1], [], []>} : vector<1x64xf32>, vector<64x256xf32>, vector<1x256xf32> -> vector<1x256xf32>
    %28 = arith.addf %26, %27 : vector<1x256xf32>
    %29 = arith.negf %28 : vector<1x256xf32>
    %30 = math.exp %29 : vector<1x256xf32>
    %cst_14 = arith.constant 1.000000e+00 : f32
    %31 = vector.broadcast %cst_14 : f32 to vector<1x256xf32>
    %32 = arith.addf %31, %30 : vector<1x256xf32>
    %33 = arith.divf %31, %32 : vector<1x256xf32>
    %34 = vector.extract_strided_slice %28 {offsets = [0, 128], sizes = [1, 64], strides = [1, 1]} : vector<1x256xf32> to vector<1x64xf32>
    %35 = math.tanh %34 : vector<1x64xf32>
    %36 = vector.extract_strided_slice %33 {offsets = [0, 64], sizes = [1, 64], strides = [1, 1]} : vector<1x256xf32> to vector<1x64xf32>
    %37 = arith.mulf %36, %23 : vector<1x64xf32>
    %38 = vector.extract_strided_slice %33 {offsets = [0, 0], sizes = [1, 64], strides = [1, 1]} : vector<1x256xf32> to vector<1x64xf32>
    %39 = arith.mulf %38, %35 : vector<1x64xf32>
    %40 = arith.addf %37, %39 : vector<1x64xf32>
    %41 = vector.extract_strided_slice %33 {offsets = [0, 192], sizes = [1, 64], strides = [1, 1]} : vector<1x256xf32> to vector<1x64xf32>
    %42 = math.tanh %40 : vector<1x64xf32>
    %43 = arith.mulf %41, %42 : vector<1x64xf32>
    %44 = vector.extract_strided_slice %20 {offsets = [1, 0], sizes = [1, 256], strides = [1, 1]} : vector<8x256xf32> to vector<1x256xf32>
    %45 = vector.extract_strided_slice %20 {offsets = [6, 0], sizes = [1, 256], strides = [1, 1]} : vector<8x256xf32> to vector<1x256xf32>
    %46 = arith.select %12, %44, %45 : vector<1x256xi1>, vector<1x256xf32>
    %cst_15 = arith.constant dense<0.000000e+00> : vector<1x256xf32>
    %47 = tpu.matmul %43, %21, %cst_15 {dimension_numbers = #tpu.dot_dimension_numbers<[1], [0], [0], [1], [0, 0, 1, 1], [], []>} : vector<1x64xf32>, vector<64x256xf32>, vector<1x256xf32> -> vector<1x256xf32>
    %48 = arith.addf %46, %47 : vector<1x256xf32>
    %49 = arith.negf %48 : vector<1x256xf32>
    %50 = math.exp %49 : vector<1x256xf32>
    %cst_16 = arith.constant 1.000000e+00 : f32
    %51 = vector.broadcast %cst_16 : f32 to vector<1x256xf32>
    %52 = arith.addf %51, %50 : vector<1x256xf32>
    %53 = arith.divf %51, %52 : vector<1x256xf32>
    %54 = vector.extract_strided_slice %48 {offsets = [0, 128], sizes = [1, 64], strides = [1, 1]} : vector<1x256xf32> to vector<1x64xf32>
    %55 = math.tanh %54 : vector<1x64xf32>
    %56 = vector.extract_strided_slice %53 {offsets = [0, 64], sizes = [1, 64], strides = [1, 1]} : vector<1x256xf32> to vector<1x64xf32>
    %57 = arith.mulf %56, %40 : vector<1x64xf32>
    %58 = vector.extract_strided_slice %53 {offsets = [0, 0], sizes = [1, 64], strides = [1, 1]} : vector<1x256xf32> to vector<1x64xf32>
    %59 = arith.mulf %58, %55 : vector<1x64xf32>
    %60 = arith.addf %57, %59 : vector<1x64xf32>
    %61 = vector.extract_strided_slice %53 {offsets = [0, 192], sizes = [1, 64], strides = [1, 1]} : vector<1x256xf32> to vector<1x64xf32>
    %62 = math.tanh %60 : vector<1x64xf32>
    %63 = arith.mulf %61, %62 : vector<1x64xf32>
    %64 = vector.extract_strided_slice %20 {offsets = [2, 0], sizes = [1, 256], strides = [1, 1]} : vector<8x256xf32> to vector<1x256xf32>
    %65 = vector.extract_strided_slice %20 {offsets = [5, 0], sizes = [1, 256], strides = [1, 1]} : vector<8x256xf32> to vector<1x256xf32>
    %66 = arith.select %12, %64, %65 : vector<1x256xi1>, vector<1x256xf32>
    %cst_17 = arith.constant dense<0.000000e+00> : vector<1x256xf32>
    %67 = tpu.matmul %63, %21, %cst_17 {dimension_numbers = #tpu.dot_dimension_numbers<[1], [0], [0], [1], [0, 0, 1, 1], [], []>} : vector<1x64xf32>, vector<64x256xf32>, vector<1x256xf32> -> vector<1x256xf32>
    %68 = arith.addf %66, %67 : vector<1x256xf32>
    %69 = arith.negf %68 : vector<1x256xf32>
    %70 = math.exp %69 : vector<1x256xf32>
    %cst_18 = arith.constant 1.000000e+00 : f32
    %71 = vector.broadcast %cst_18 : f32 to vector<1x256xf32>
    %72 = arith.addf %71, %70 : vector<1x256xf32>
    %73 = arith.divf %71, %72 : vector<1x256xf32>
    %74 = vector.extract_strided_slice %68 {offsets = [0, 128], sizes = [1, 64], strides = [1, 1]} : vector<1x256xf32> to vector<1x64xf32>
    %75 = math.tanh %74 : vector<1x64xf32>
    %76 = vector.extract_strided_slice %73 {offsets = [0, 64], sizes = [1, 64], strides = [1, 1]} : vector<1x256xf32> to vector<1x64xf32>
    %77 = arith.mulf %76, %60 : vector<1x64xf32>
    %78 = vector.extract_strided_slice %73 {offsets = [0, 0], sizes = [1, 64], strides = [1, 1]} : vector<1x256xf32> to vector<1x64xf32>
    %79 = arith.mulf %78, %75 : vector<1x64xf32>
    %80 = arith.addf %77, %79 : vector<1x64xf32>
    %81 = vector.extract_strided_slice %73 {offsets = [0, 192], sizes = [1, 64], strides = [1, 1]} : vector<1x256xf32> to vector<1x64xf32>
    %82 = math.tanh %80 : vector<1x64xf32>
    %83 = arith.mulf %81, %82 : vector<1x64xf32>
    %84 = vector.extract_strided_slice %20 {offsets = [3, 0], sizes = [1, 256], strides = [1, 1]} : vector<8x256xf32> to vector<1x256xf32>
    %85 = vector.extract_strided_slice %20 {offsets = [4, 0], sizes = [1, 256], strides = [1, 1]} : vector<8x256xf32> to vector<1x256xf32>
    %86 = arith.select %12, %84, %85 : vector<1x256xi1>, vector<1x256xf32>
    %cst_19 = arith.constant dense<0.000000e+00> : vector<1x256xf32>
    %87 = tpu.matmul %83, %21, %cst_19 {dimension_numbers = #tpu.dot_dimension_numbers<[1], [0], [0], [1], [0, 0, 1, 1], [], []>} : vector<1x64xf32>, vector<64x256xf32>, vector<1x256xf32> -> vector<1x256xf32>
    %88 = arith.addf %86, %87 : vector<1x256xf32>
    %89 = arith.negf %88 : vector<1x256xf32>
    %90 = math.exp %89 : vector<1x256xf32>
    %cst_20 = arith.constant 1.000000e+00 : f32
    %91 = vector.broadcast %cst_20 : f32 to vector<1x256xf32>
    %92 = arith.addf %91, %90 : vector<1x256xf32>
    %93 = arith.divf %91, %92 : vector<1x256xf32>
    %94 = vector.extract_strided_slice %88 {offsets = [0, 128], sizes = [1, 64], strides = [1, 1]} : vector<1x256xf32> to vector<1x64xf32>
    %95 = math.tanh %94 : vector<1x64xf32>
    %96 = vector.extract_strided_slice %93 {offsets = [0, 64], sizes = [1, 64], strides = [1, 1]} : vector<1x256xf32> to vector<1x64xf32>
    %97 = arith.mulf %96, %80 : vector<1x64xf32>
    %98 = vector.extract_strided_slice %93 {offsets = [0, 0], sizes = [1, 64], strides = [1, 1]} : vector<1x256xf32> to vector<1x64xf32>
    %99 = arith.mulf %98, %95 : vector<1x64xf32>
    %100 = arith.addf %97, %99 : vector<1x64xf32>
    %101 = vector.extract_strided_slice %93 {offsets = [0, 192], sizes = [1, 64], strides = [1, 1]} : vector<1x256xf32> to vector<1x64xf32>
    %102 = math.tanh %100 : vector<1x64xf32>
    %103 = arith.mulf %101, %102 : vector<1x64xf32>
    %104 = vector.extract_strided_slice %20 {offsets = [4, 0], sizes = [1, 256], strides = [1, 1]} : vector<8x256xf32> to vector<1x256xf32>
    %105 = vector.extract_strided_slice %20 {offsets = [3, 0], sizes = [1, 256], strides = [1, 1]} : vector<8x256xf32> to vector<1x256xf32>
    %106 = arith.select %12, %104, %105 : vector<1x256xi1>, vector<1x256xf32>
    %cst_21 = arith.constant dense<0.000000e+00> : vector<1x256xf32>
    %107 = tpu.matmul %103, %21, %cst_21 {dimension_numbers = #tpu.dot_dimension_numbers<[1], [0], [0], [1], [0, 0, 1, 1], [], []>} : vector<1x64xf32>, vector<64x256xf32>, vector<1x256xf32> -> vector<1x256xf32>
    %108 = arith.addf %106, %107 : vector<1x256xf32>
    %109 = arith.negf %108 : vector<1x256xf32>
    %110 = math.exp %109 : vector<1x256xf32>
    %cst_22 = arith.constant 1.000000e+00 : f32
    %111 = vector.broadcast %cst_22 : f32 to vector<1x256xf32>
    %112 = arith.addf %111, %110 : vector<1x256xf32>
    %113 = arith.divf %111, %112 : vector<1x256xf32>
    %114 = vector.extract_strided_slice %108 {offsets = [0, 128], sizes = [1, 64], strides = [1, 1]} : vector<1x256xf32> to vector<1x64xf32>
    %115 = math.tanh %114 : vector<1x64xf32>
    %116 = vector.extract_strided_slice %113 {offsets = [0, 64], sizes = [1, 64], strides = [1, 1]} : vector<1x256xf32> to vector<1x64xf32>
    %117 = arith.mulf %116, %100 : vector<1x64xf32>
    %118 = vector.extract_strided_slice %113 {offsets = [0, 0], sizes = [1, 64], strides = [1, 1]} : vector<1x256xf32> to vector<1x64xf32>
    %119 = arith.mulf %118, %115 : vector<1x64xf32>
    %120 = arith.addf %117, %119 : vector<1x64xf32>
    %121 = vector.extract_strided_slice %113 {offsets = [0, 192], sizes = [1, 64], strides = [1, 1]} : vector<1x256xf32> to vector<1x64xf32>
    %122 = math.tanh %120 : vector<1x64xf32>
    %123 = arith.mulf %121, %122 : vector<1x64xf32>
    %124 = vector.extract_strided_slice %20 {offsets = [5, 0], sizes = [1, 256], strides = [1, 1]} : vector<8x256xf32> to vector<1x256xf32>
    %125 = vector.extract_strided_slice %20 {offsets = [2, 0], sizes = [1, 256], strides = [1, 1]} : vector<8x256xf32> to vector<1x256xf32>
    %126 = arith.select %12, %124, %125 : vector<1x256xi1>, vector<1x256xf32>
    %cst_23 = arith.constant dense<0.000000e+00> : vector<1x256xf32>
    %127 = tpu.matmul %123, %21, %cst_23 {dimension_numbers = #tpu.dot_dimension_numbers<[1], [0], [0], [1], [0, 0, 1, 1], [], []>} : vector<1x64xf32>, vector<64x256xf32>, vector<1x256xf32> -> vector<1x256xf32>
    %128 = arith.addf %126, %127 : vector<1x256xf32>
    %129 = arith.negf %128 : vector<1x256xf32>
    %130 = math.exp %129 : vector<1x256xf32>
    %cst_24 = arith.constant 1.000000e+00 : f32
    %131 = vector.broadcast %cst_24 : f32 to vector<1x256xf32>
    %132 = arith.addf %131, %130 : vector<1x256xf32>
    %133 = arith.divf %131, %132 : vector<1x256xf32>
    %134 = vector.extract_strided_slice %128 {offsets = [0, 128], sizes = [1, 64], strides = [1, 1]} : vector<1x256xf32> to vector<1x64xf32>
    %135 = math.tanh %134 : vector<1x64xf32>
    %136 = vector.extract_strided_slice %133 {offsets = [0, 64], sizes = [1, 64], strides = [1, 1]} : vector<1x256xf32> to vector<1x64xf32>
    %137 = arith.mulf %136, %120 : vector<1x64xf32>
    %138 = vector.extract_strided_slice %133 {offsets = [0, 0], sizes = [1, 64], strides = [1, 1]} : vector<1x256xf32> to vector<1x64xf32>
    %139 = arith.mulf %138, %135 : vector<1x64xf32>
    %140 = arith.addf %137, %139 : vector<1x64xf32>
    %141 = vector.extract_strided_slice %133 {offsets = [0, 192], sizes = [1, 64], strides = [1, 1]} : vector<1x256xf32> to vector<1x64xf32>
    %142 = math.tanh %140 : vector<1x64xf32>
    %143 = arith.mulf %141, %142 : vector<1x64xf32>
    %144 = vector.extract_strided_slice %20 {offsets = [6, 0], sizes = [1, 256], strides = [1, 1]} : vector<8x256xf32> to vector<1x256xf32>
    %145 = vector.extract_strided_slice %20 {offsets = [1, 0], sizes = [1, 256], strides = [1, 1]} : vector<8x256xf32> to vector<1x256xf32>
    %146 = arith.select %12, %144, %145 : vector<1x256xi1>, vector<1x256xf32>
    %cst_25 = arith.constant dense<0.000000e+00> : vector<1x256xf32>
    %147 = tpu.matmul %143, %21, %cst_25 {dimension_numbers = #tpu.dot_dimension_numbers<[1], [0], [0], [1], [0, 0, 1, 1], [], []>} : vector<1x64xf32>, vector<64x256xf32>, vector<1x256xf32> -> vector<1x256xf32>
    %148 = arith.addf %146, %147 : vector<1x256xf32>
    %149 = arith.negf %148 : vector<1x256xf32>
    %150 = math.exp %149 : vector<1x256xf32>
    %cst_26 = arith.constant 1.000000e+00 : f32
    %151 = vector.broadcast %cst_26 : f32 to vector<1x256xf32>
    %152 = arith.addf %151, %150 : vector<1x256xf32>
    %153 = arith.divf %151, %152 : vector<1x256xf32>
    %154 = vector.extract_strided_slice %148 {offsets = [0, 128], sizes = [1, 64], strides = [1, 1]} : vector<1x256xf32> to vector<1x64xf32>
    %155 = math.tanh %154 : vector<1x64xf32>
    %156 = vector.extract_strided_slice %153 {offsets = [0, 64], sizes = [1, 64], strides = [1, 1]} : vector<1x256xf32> to vector<1x64xf32>
    %157 = arith.mulf %156, %140 : vector<1x64xf32>
    %158 = vector.extract_strided_slice %153 {offsets = [0, 0], sizes = [1, 64], strides = [1, 1]} : vector<1x256xf32> to vector<1x64xf32>
    %159 = arith.mulf %158, %155 : vector<1x64xf32>
    %160 = arith.addf %157, %159 : vector<1x64xf32>
    %161 = vector.extract_strided_slice %153 {offsets = [0, 192], sizes = [1, 64], strides = [1, 1]} : vector<1x256xf32> to vector<1x64xf32>
    %162 = math.tanh %160 : vector<1x64xf32>
    %163 = arith.mulf %161, %162 : vector<1x64xf32>
    %164 = vector.extract_strided_slice %20 {offsets = [7, 0], sizes = [1, 256], strides = [1, 1]} : vector<8x256xf32> to vector<1x256xf32>
    %165 = vector.extract_strided_slice %20 {offsets = [0, 0], sizes = [1, 256], strides = [1, 1]} : vector<8x256xf32> to vector<1x256xf32>
    %166 = arith.select %12, %164, %165 : vector<1x256xi1>, vector<1x256xf32>
    %cst_27 = arith.constant dense<0.000000e+00> : vector<1x256xf32>
    %167 = tpu.matmul %163, %21, %cst_27 {dimension_numbers = #tpu.dot_dimension_numbers<[1], [0], [0], [1], [0, 0, 1, 1], [], []>} : vector<1x64xf32>, vector<64x256xf32>, vector<1x256xf32> -> vector<1x256xf32>
    %168 = arith.addf %166, %167 : vector<1x256xf32>
    %169 = arith.negf %168 : vector<1x256xf32>
    %170 = math.exp %169 : vector<1x256xf32>
    %cst_28 = arith.constant 1.000000e+00 : f32
    %171 = vector.broadcast %cst_28 : f32 to vector<1x256xf32>
    %172 = arith.addf %171, %170 : vector<1x256xf32>
    %173 = arith.divf %171, %172 : vector<1x256xf32>
    %174 = vector.extract_strided_slice %168 {offsets = [0, 128], sizes = [1, 64], strides = [1, 1]} : vector<1x256xf32> to vector<1x64xf32>
    %175 = math.tanh %174 : vector<1x64xf32>
    %176 = vector.extract_strided_slice %173 {offsets = [0, 64], sizes = [1, 64], strides = [1, 1]} : vector<1x256xf32> to vector<1x64xf32>
    %177 = arith.mulf %176, %160 : vector<1x64xf32>
    %178 = vector.extract_strided_slice %173 {offsets = [0, 0], sizes = [1, 64], strides = [1, 1]} : vector<1x256xf32> to vector<1x64xf32>
    %179 = arith.mulf %178, %175 : vector<1x64xf32>
    %180 = arith.addf %177, %179 : vector<1x64xf32>
    %181 = vector.extract_strided_slice %173 {offsets = [0, 192], sizes = [1, 64], strides = [1, 1]} : vector<1x256xf32> to vector<1x64xf32>
    %182 = math.tanh %180 : vector<1x64xf32>
    %183 = arith.mulf %181, %182 : vector<1x64xf32>
    %184 = arith.select %15, %43, %183 : vector<1x64xi1>, vector<1x64xf32>
    %c0_29 = arith.constant 0 : index
    %c0_30 = arith.constant 0 : index
    %185 = vector.load %arg11[%c0_29, %c0_30] : memref<8x64xf32, #tpu.memory_space<vmem>>, vector<1x64xf32>
    tpu.vector_store %arg11[%c0_29, %c0_30], %184 {strides = array<i32>} : memref<8x64xf32, #tpu.memory_space<vmem>>, vector<1x64xf32>,
    %186 = arith.select %15, %63, %163 : vector<1x64xi1>, vector<1x64xf32>
    %c1 = arith.constant 1 : index
    %c0_31 = arith.constant 0 : index
    %187 = vector.load %arg11[%c1, %c0_31] : memref<8x64xf32, #tpu.memory_space<vmem>>, vector<1x64xf32>
    tpu.vector_store %arg11[%c1, %c0_31], %186 {strides = array<i32>} : memref<8x64xf32, #tpu.memory_space<vmem>>, vector<1x64xf32>,
    %188 = arith.select %15, %83, %143 : vector<1x64xi1>, vector<1x64xf32>
    %c2 = arith.constant 2 : index
    %c0_32 = arith.constant 0 : index
    %189 = vector.load %arg11[%c2, %c0_32] : memref<8x64xf32, #tpu.memory_space<vmem>>, vector<1x64xf32>
    tpu.vector_store %arg11[%c2, %c0_32], %188 {strides = array<i32>} : memref<8x64xf32, #tpu.memory_space<vmem>>, vector<1x64xf32>,
    %190 = arith.select %15, %103, %123 : vector<1x64xi1>, vector<1x64xf32>
    %c3 = arith.constant 3 : index
    %c0_33 = arith.constant 0 : index
    %191 = vector.load %arg11[%c3, %c0_33] : memref<8x64xf32, #tpu.memory_space<vmem>>, vector<1x64xf32>
    tpu.vector_store %arg11[%c3, %c0_33], %190 {strides = array<i32>} : memref<8x64xf32, #tpu.memory_space<vmem>>, vector<1x64xf32>,
    %192 = arith.select %15, %123, %103 : vector<1x64xi1>, vector<1x64xf32>
    %c4 = arith.constant 4 : index
    %c0_34 = arith.constant 0 : index
    %193 = vector.load %arg11[%c4, %c0_34] : memref<8x64xf32, #tpu.memory_space<vmem>>, vector<1x64xf32>
    tpu.vector_store %arg11[%c4, %c0_34], %192 {strides = array<i32>} : memref<8x64xf32, #tpu.memory_space<vmem>>, vector<1x64xf32>,
    %194 = arith.select %15, %143, %83 : vector<1x64xi1>, vector<1x64xf32>
    %c5 = arith.constant 5 : index
    %c0_35 = arith.constant 0 : index
    %195 = vector.load %arg11[%c5, %c0_35] : memref<8x64xf32, #tpu.memory_space<vmem>>, vector<1x64xf32>
    tpu.vector_store %arg11[%c5, %c0_35], %194 {strides = array<i32>} : memref<8x64xf32, #tpu.memory_space<vmem>>, vector<1x64xf32>,
    %196 = arith.select %15, %163, %63 : vector<1x64xi1>, vector<1x64xf32>
    %c6 = arith.constant 6 : index
    %c0_36 = arith.constant 0 : index
    %197 = vector.load %arg11[%c6, %c0_36] : memref<8x64xf32, #tpu.memory_space<vmem>>, vector<1x64xf32>
    tpu.vector_store %arg11[%c6, %c0_36], %196 {strides = array<i32>} : memref<8x64xf32, #tpu.memory_space<vmem>>, vector<1x64xf32>,
    %198 = arith.select %15, %183, %43 : vector<1x64xi1>, vector<1x64xf32>
    %c7 = arith.constant 7 : index
    %c0_37 = arith.constant 0 : index
    %199 = vector.load %arg11[%c7, %c0_37] : memref<8x64xf32, #tpu.memory_space<vmem>>, vector<1x64xf32>
    tpu.vector_store %arg11[%c7, %c0_37], %198 {strides = array<i32>} : memref<8x64xf32, #tpu.memory_space<vmem>>, vector<1x64xf32>,
    %c0_38 = arith.constant 0 : index
    %c0_39 = arith.constant 0 : index
    %200 = vector.load %arg11[%c0_38, %c0_39] : memref<8x64xf32, #tpu.memory_space<vmem>>, vector<8x64xf32>
    %c0_40 = arith.constant 0 : index
    %c0_41 = arith.constant 0 : index
    %201 = vector.load %arg5[%c0_40, %c0_41] : memref<64x256xf32, #tpu.memory_space<vmem>>, vector<64x256xf32>
    %cst_42 = arith.constant dense<0.000000e+00> : vector<8x256xf32>
    %202 = tpu.matmul %200, %201, %cst_42 {dimension_numbers = #tpu.dot_dimension_numbers<[1], [0], [0], [1], [0, 0, 1, 1], [], []>} : vector<8x64xf32>, vector<64x256xf32>, vector<8x256xf32> -> vector<8x256xf32>
    %c0_43 = arith.constant 0 : index
    %c0_44 = arith.constant 0 : index
    %203 = vector.load %arg7[%c0_43, %c0_44] : memref<1x256xf32, #tpu.memory_space<vmem>>, vector<1x256xf32>
    %204 = vector.broadcast %203 : vector<1x256xf32> to vector<8x256xf32>
    %205 = arith.addf %202, %204 : vector<8x256xf32>
    %c0_45 = arith.constant 0 : index
    %c0_46 = arith.constant 0 : index
    %206 = vector.load %arg6[%c0_45, %c0_46] : memref<64x256xf32, #tpu.memory_space<vmem>>, vector<64x256xf32>
    %cst_47 = arith.constant 0.000000e+00 : f32
    %207 = vector.broadcast %cst_47 : f32 to vector<1x64xf32>
    %cst_48 = arith.constant 0.000000e+00 : f32
    %208 = vector.broadcast %cst_48 : f32 to vector<1x64xf32>
    %209 = vector.extract_strided_slice %205 {offsets = [0, 0], sizes = [1, 256], strides = [1, 1]} : vector<8x256xf32> to vector<1x256xf32>
    %210 = vector.extract_strided_slice %205 {offsets = [7, 0], sizes = [1, 256], strides = [1, 1]} : vector<8x256xf32> to vector<1x256xf32>
    %211 = arith.select %12, %209, %210 : vector<1x256xi1>, vector<1x256xf32>
    %cst_49 = arith.constant dense<0.000000e+00> : vector<1x256xf32>
    %212 = tpu.matmul %207, %206, %cst_49 {dimension_numbers = #tpu.dot_dimension_numbers<[1], [0], [0], [1], [0, 0, 1, 1], [], []>} : vector<1x64xf32>, vector<64x256xf32>, vector<1x256xf32> -> vector<1x256xf32>
    %213 = arith.addf %211, %212 : vector<1x256xf32>
    %214 = arith.negf %213 : vector<1x256xf32>
    %215 = math.exp %214 : vector<1x256xf32>
    %cst_50 = arith.constant 1.000000e+00 : f32
    %216 = vector.broadcast %cst_50 : f32 to vector<1x256xf32>
    %217 = arith.addf %216, %215 : vector<1x256xf32>
    %218 = arith.divf %216, %217 : vector<1x256xf32>
    %219 = vector.extract_strided_slice %213 {offsets = [0, 128], sizes = [1, 64], strides = [1, 1]} : vector<1x256xf32> to vector<1x64xf32>
    %220 = math.tanh %219 : vector<1x64xf32>
    %221 = vector.extract_strided_slice %218 {offsets = [0, 64], sizes = [1, 64], strides = [1, 1]} : vector<1x256xf32> to vector<1x64xf32>
    %222 = arith.mulf %221, %208 : vector<1x64xf32>
    %223 = vector.extract_strided_slice %218 {offsets = [0, 0], sizes = [1, 64], strides = [1, 1]} : vector<1x256xf32> to vector<1x64xf32>
    %224 = arith.mulf %223, %220 : vector<1x64xf32>
    %225 = arith.addf %222, %224 : vector<1x64xf32>
    %226 = vector.extract_strided_slice %218 {offsets = [0, 192], sizes = [1, 64], strides = [1, 1]} : vector<1x256xf32> to vector<1x64xf32>
    %227 = math.tanh %225 : vector<1x64xf32>
    %228 = arith.mulf %226, %227 : vector<1x64xf32>
    %229 = vector.extract_strided_slice %205 {offsets = [1, 0], sizes = [1, 256], strides = [1, 1]} : vector<8x256xf32> to vector<1x256xf32>
    %230 = vector.extract_strided_slice %205 {offsets = [6, 0], sizes = [1, 256], strides = [1, 1]} : vector<8x256xf32> to vector<1x256xf32>
    %231 = arith.select %12, %229, %230 : vector<1x256xi1>, vector<1x256xf32>
    %cst_51 = arith.constant dense<0.000000e+00> : vector<1x256xf32>
    %232 = tpu.matmul %228, %206, %cst_51 {dimension_numbers = #tpu.dot_dimension_numbers<[1], [0], [0], [1], [0, 0, 1, 1], [], []>} : vector<1x64xf32>, vector<64x256xf32>, vector<1x256xf32> -> vector<1x256xf32>
    %233 = arith.addf %231, %232 : vector<1x256xf32>
    %234 = arith.negf %233 : vector<1x256xf32>
    %235 = math.exp %234 : vector<1x256xf32>
    %cst_52 = arith.constant 1.000000e+00 : f32
    %236 = vector.broadcast %cst_52 : f32 to vector<1x256xf32>
    %237 = arith.addf %236, %235 : vector<1x256xf32>
    %238 = arith.divf %236, %237 : vector<1x256xf32>
    %239 = vector.extract_strided_slice %233 {offsets = [0, 128], sizes = [1, 64], strides = [1, 1]} : vector<1x256xf32> to vector<1x64xf32>
    %240 = math.tanh %239 : vector<1x64xf32>
    %241 = vector.extract_strided_slice %238 {offsets = [0, 64], sizes = [1, 64], strides = [1, 1]} : vector<1x256xf32> to vector<1x64xf32>
    %242 = arith.mulf %241, %225 : vector<1x64xf32>
    %243 = vector.extract_strided_slice %238 {offsets = [0, 0], sizes = [1, 64], strides = [1, 1]} : vector<1x256xf32> to vector<1x64xf32>
    %244 = arith.mulf %243, %240 : vector<1x64xf32>
    %245 = arith.addf %242, %244 : vector<1x64xf32>
    %246 = vector.extract_strided_slice %238 {offsets = [0, 192], sizes = [1, 64], strides = [1, 1]} : vector<1x256xf32> to vector<1x64xf32>
    %247 = math.tanh %245 : vector<1x64xf32>
    %248 = arith.mulf %246, %247 : vector<1x64xf32>
    %249 = vector.extract_strided_slice %205 {offsets = [2, 0], sizes = [1, 256], strides = [1, 1]} : vector<8x256xf32> to vector<1x256xf32>
    %250 = vector.extract_strided_slice %205 {offsets = [5, 0], sizes = [1, 256], strides = [1, 1]} : vector<8x256xf32> to vector<1x256xf32>
    %251 = arith.select %12, %249, %250 : vector<1x256xi1>, vector<1x256xf32>
    %cst_53 = arith.constant dense<0.000000e+00> : vector<1x256xf32>
    %252 = tpu.matmul %248, %206, %cst_53 {dimension_numbers = #tpu.dot_dimension_numbers<[1], [0], [0], [1], [0, 0, 1, 1], [], []>} : vector<1x64xf32>, vector<64x256xf32>, vector<1x256xf32> -> vector<1x256xf32>
    %253 = arith.addf %251, %252 : vector<1x256xf32>
    %254 = arith.negf %253 : vector<1x256xf32>
    %255 = math.exp %254 : vector<1x256xf32>
    %cst_54 = arith.constant 1.000000e+00 : f32
    %256 = vector.broadcast %cst_54 : f32 to vector<1x256xf32>
    %257 = arith.addf %256, %255 : vector<1x256xf32>
    %258 = arith.divf %256, %257 : vector<1x256xf32>
    %259 = vector.extract_strided_slice %253 {offsets = [0, 128], sizes = [1, 64], strides = [1, 1]} : vector<1x256xf32> to vector<1x64xf32>
    %260 = math.tanh %259 : vector<1x64xf32>
    %261 = vector.extract_strided_slice %258 {offsets = [0, 64], sizes = [1, 64], strides = [1, 1]} : vector<1x256xf32> to vector<1x64xf32>
    %262 = arith.mulf %261, %245 : vector<1x64xf32>
    %263 = vector.extract_strided_slice %258 {offsets = [0, 0], sizes = [1, 64], strides = [1, 1]} : vector<1x256xf32> to vector<1x64xf32>
    %264 = arith.mulf %263, %260 : vector<1x64xf32>
    %265 = arith.addf %262, %264 : vector<1x64xf32>
    %266 = vector.extract_strided_slice %258 {offsets = [0, 192], sizes = [1, 64], strides = [1, 1]} : vector<1x256xf32> to vector<1x64xf32>
    %267 = math.tanh %265 : vector<1x64xf32>
    %268 = arith.mulf %266, %267 : vector<1x64xf32>
    %269 = vector.extract_strided_slice %205 {offsets = [3, 0], sizes = [1, 256], strides = [1, 1]} : vector<8x256xf32> to vector<1x256xf32>
    %270 = vector.extract_strided_slice %205 {offsets = [4, 0], sizes = [1, 256], strides = [1, 1]} : vector<8x256xf32> to vector<1x256xf32>
    %271 = arith.select %12, %269, %270 : vector<1x256xi1>, vector<1x256xf32>
    %cst_55 = arith.constant dense<0.000000e+00> : vector<1x256xf32>
    %272 = tpu.matmul %268, %206, %cst_55 {dimension_numbers = #tpu.dot_dimension_numbers<[1], [0], [0], [1], [0, 0, 1, 1], [], []>} : vector<1x64xf32>, vector<64x256xf32>, vector<1x256xf32> -> vector<1x256xf32>
    %273 = arith.addf %271, %272 : vector<1x256xf32>
    %274 = arith.negf %273 : vector<1x256xf32>
    %275 = math.exp %274 : vector<1x256xf32>
    %cst_56 = arith.constant 1.000000e+00 : f32
    %276 = vector.broadcast %cst_56 : f32 to vector<1x256xf32>
    %277 = arith.addf %276, %275 : vector<1x256xf32>
    %278 = arith.divf %276, %277 : vector<1x256xf32>
    %279 = vector.extract_strided_slice %273 {offsets = [0, 128], sizes = [1, 64], strides = [1, 1]} : vector<1x256xf32> to vector<1x64xf32>
    %280 = math.tanh %279 : vector<1x64xf32>
    %281 = vector.extract_strided_slice %278 {offsets = [0, 64], sizes = [1, 64], strides = [1, 1]} : vector<1x256xf32> to vector<1x64xf32>
    %282 = arith.mulf %281, %265 : vector<1x64xf32>
    %283 = vector.extract_strided_slice %278 {offsets = [0, 0], sizes = [1, 64], strides = [1, 1]} : vector<1x256xf32> to vector<1x64xf32>
    %284 = arith.mulf %283, %280 : vector<1x64xf32>
    %285 = arith.addf %282, %284 : vector<1x64xf32>
    %286 = vector.extract_strided_slice %278 {offsets = [0, 192], sizes = [1, 64], strides = [1, 1]} : vector<1x256xf32> to vector<1x64xf32>
    %287 = math.tanh %285 : vector<1x64xf32>
    %288 = arith.mulf %286, %287 : vector<1x64xf32>
    %289 = vector.extract_strided_slice %205 {offsets = [4, 0], sizes = [1, 256], strides = [1, 1]} : vector<8x256xf32> to vector<1x256xf32>
    %290 = vector.extract_strided_slice %205 {offsets = [3, 0], sizes = [1, 256], strides = [1, 1]} : vector<8x256xf32> to vector<1x256xf32>
    %291 = arith.select %12, %289, %290 : vector<1x256xi1>, vector<1x256xf32>
    %cst_57 = arith.constant dense<0.000000e+00> : vector<1x256xf32>
    %292 = tpu.matmul %288, %206, %cst_57 {dimension_numbers = #tpu.dot_dimension_numbers<[1], [0], [0], [1], [0, 0, 1, 1], [], []>} : vector<1x64xf32>, vector<64x256xf32>, vector<1x256xf32> -> vector<1x256xf32>
    %293 = arith.addf %291, %292 : vector<1x256xf32>
    %294 = arith.negf %293 : vector<1x256xf32>
    %295 = math.exp %294 : vector<1x256xf32>
    %cst_58 = arith.constant 1.000000e+00 : f32
    %296 = vector.broadcast %cst_58 : f32 to vector<1x256xf32>
    %297 = arith.addf %296, %295 : vector<1x256xf32>
    %298 = arith.divf %296, %297 : vector<1x256xf32>
    %299 = vector.extract_strided_slice %293 {offsets = [0, 128], sizes = [1, 64], strides = [1, 1]} : vector<1x256xf32> to vector<1x64xf32>
    %300 = math.tanh %299 : vector<1x64xf32>
    %301 = vector.extract_strided_slice %298 {offsets = [0, 64], sizes = [1, 64], strides = [1, 1]} : vector<1x256xf32> to vector<1x64xf32>
    %302 = arith.mulf %301, %285 : vector<1x64xf32>
    %303 = vector.extract_strided_slice %298 {offsets = [0, 0], sizes = [1, 64], strides = [1, 1]} : vector<1x256xf32> to vector<1x64xf32>
    %304 = arith.mulf %303, %300 : vector<1x64xf32>
    %305 = arith.addf %302, %304 : vector<1x64xf32>
    %306 = vector.extract_strided_slice %298 {offsets = [0, 192], sizes = [1, 64], strides = [1, 1]} : vector<1x256xf32> to vector<1x64xf32>
    %307 = math.tanh %305 : vector<1x64xf32>
    %308 = arith.mulf %306, %307 : vector<1x64xf32>
    %309 = vector.extract_strided_slice %205 {offsets = [5, 0], sizes = [1, 256], strides = [1, 1]} : vector<8x256xf32> to vector<1x256xf32>
    %310 = vector.extract_strided_slice %205 {offsets = [2, 0], sizes = [1, 256], strides = [1, 1]} : vector<8x256xf32> to vector<1x256xf32>
    %311 = arith.select %12, %309, %310 : vector<1x256xi1>, vector<1x256xf32>
    %cst_59 = arith.constant dense<0.000000e+00> : vector<1x256xf32>
    %312 = tpu.matmul %308, %206, %cst_59 {dimension_numbers = #tpu.dot_dimension_numbers<[1], [0], [0], [1], [0, 0, 1, 1], [], []>} : vector<1x64xf32>, vector<64x256xf32>, vector<1x256xf32> -> vector<1x256xf32>
    %313 = arith.addf %311, %312 : vector<1x256xf32>
    %314 = arith.negf %313 : vector<1x256xf32>
    %315 = math.exp %314 : vector<1x256xf32>
    %cst_60 = arith.constant 1.000000e+00 : f32
    %316 = vector.broadcast %cst_60 : f32 to vector<1x256xf32>
    %317 = arith.addf %316, %315 : vector<1x256xf32>
    %318 = arith.divf %316, %317 : vector<1x256xf32>
    %319 = vector.extract_strided_slice %313 {offsets = [0, 128], sizes = [1, 64], strides = [1, 1]} : vector<1x256xf32> to vector<1x64xf32>
    %320 = math.tanh %319 : vector<1x64xf32>
    %321 = vector.extract_strided_slice %318 {offsets = [0, 64], sizes = [1, 64], strides = [1, 1]} : vector<1x256xf32> to vector<1x64xf32>
    %322 = arith.mulf %321, %305 : vector<1x64xf32>
    %323 = vector.extract_strided_slice %318 {offsets = [0, 0], sizes = [1, 64], strides = [1, 1]} : vector<1x256xf32> to vector<1x64xf32>
    %324 = arith.mulf %323, %320 : vector<1x64xf32>
    %325 = arith.addf %322, %324 : vector<1x64xf32>
    %326 = vector.extract_strided_slice %318 {offsets = [0, 192], sizes = [1, 64], strides = [1, 1]} : vector<1x256xf32> to vector<1x64xf32>
    %327 = math.tanh %325 : vector<1x64xf32>
    %328 = arith.mulf %326, %327 : vector<1x64xf32>
    %329 = vector.extract_strided_slice %205 {offsets = [6, 0], sizes = [1, 256], strides = [1, 1]} : vector<8x256xf32> to vector<1x256xf32>
    %330 = vector.extract_strided_slice %205 {offsets = [1, 0], sizes = [1, 256], strides = [1, 1]} : vector<8x256xf32> to vector<1x256xf32>
    %331 = arith.select %12, %329, %330 : vector<1x256xi1>, vector<1x256xf32>
    %cst_61 = arith.constant dense<0.000000e+00> : vector<1x256xf32>
    %332 = tpu.matmul %328, %206, %cst_61 {dimension_numbers = #tpu.dot_dimension_numbers<[1], [0], [0], [1], [0, 0, 1, 1], [], []>} : vector<1x64xf32>, vector<64x256xf32>, vector<1x256xf32> -> vector<1x256xf32>
    %333 = arith.addf %331, %332 : vector<1x256xf32>
    %334 = arith.negf %333 : vector<1x256xf32>
    %335 = math.exp %334 : vector<1x256xf32>
    %cst_62 = arith.constant 1.000000e+00 : f32
    %336 = vector.broadcast %cst_62 : f32 to vector<1x256xf32>
    %337 = arith.addf %336, %335 : vector<1x256xf32>
    %338 = arith.divf %336, %337 : vector<1x256xf32>
    %339 = vector.extract_strided_slice %333 {offsets = [0, 128], sizes = [1, 64], strides = [1, 1]} : vector<1x256xf32> to vector<1x64xf32>
    %340 = math.tanh %339 : vector<1x64xf32>
    %341 = vector.extract_strided_slice %338 {offsets = [0, 64], sizes = [1, 64], strides = [1, 1]} : vector<1x256xf32> to vector<1x64xf32>
    %342 = arith.mulf %341, %325 : vector<1x64xf32>
    %343 = vector.extract_strided_slice %338 {offsets = [0, 0], sizes = [1, 64], strides = [1, 1]} : vector<1x256xf32> to vector<1x64xf32>
    %344 = arith.mulf %343, %340 : vector<1x64xf32>
    %345 = arith.addf %342, %344 : vector<1x64xf32>
    %346 = vector.extract_strided_slice %338 {offsets = [0, 192], sizes = [1, 64], strides = [1, 1]} : vector<1x256xf32> to vector<1x64xf32>
    %347 = math.tanh %345 : vector<1x64xf32>
    %348 = arith.mulf %346, %347 : vector<1x64xf32>
    %349 = vector.extract_strided_slice %205 {offsets = [7, 0], sizes = [1, 256], strides = [1, 1]} : vector<8x256xf32> to vector<1x256xf32>
    %350 = vector.extract_strided_slice %205 {offsets = [0, 0], sizes = [1, 256], strides = [1, 1]} : vector<8x256xf32> to vector<1x256xf32>
    %351 = arith.select %12, %349, %350 : vector<1x256xi1>, vector<1x256xf32>
    %cst_63 = arith.constant dense<0.000000e+00> : vector<1x256xf32>
    %352 = tpu.matmul %348, %206, %cst_63 {dimension_numbers = #tpu.dot_dimension_numbers<[1], [0], [0], [1], [0, 0, 1, 1], [], []>} : vector<1x64xf32>, vector<64x256xf32>, vector<1x256xf32> -> vector<1x256xf32>
    %353 = arith.addf %351, %352 : vector<1x256xf32>
    %354 = arith.negf %353 : vector<1x256xf32>
    %355 = math.exp %354 : vector<1x256xf32>
    %cst_64 = arith.constant 1.000000e+00 : f32
    %356 = vector.broadcast %cst_64 : f32 to vector<1x256xf32>
    %357 = arith.addf %356, %355 : vector<1x256xf32>
    %358 = arith.divf %356, %357 : vector<1x256xf32>
    %359 = vector.extract_strided_slice %353 {offsets = [0, 128], sizes = [1, 64], strides = [1, 1]} : vector<1x256xf32> to vector<1x64xf32>
    %360 = math.tanh %359 : vector<1x64xf32>
    %361 = vector.extract_strided_slice %358 {offsets = [0, 64], sizes = [1, 64], strides = [1, 1]} : vector<1x256xf32> to vector<1x64xf32>
    %362 = arith.mulf %361, %345 : vector<1x64xf32>
    %363 = vector.extract_strided_slice %358 {offsets = [0, 0], sizes = [1, 64], strides = [1, 1]} : vector<1x256xf32> to vector<1x64xf32>
    %364 = arith.mulf %363, %360 : vector<1x64xf32>
    %365 = arith.addf %362, %364 : vector<1x64xf32>
    %366 = vector.extract_strided_slice %358 {offsets = [0, 192], sizes = [1, 64], strides = [1, 1]} : vector<1x256xf32> to vector<1x64xf32>
    %367 = math.tanh %365 : vector<1x64xf32>
    %368 = arith.mulf %366, %367 : vector<1x64xf32>
    %369 = arith.select %15, %228, %368 : vector<1x64xi1>, vector<1x64xf32>
    %c0_65 = arith.constant 0 : index
    %c0_66 = arith.constant 0 : index
    %370 = vector.load %arg12[%c0_65, %c0_66] : memref<8x64xf32, #tpu.memory_space<vmem>>, vector<1x64xf32>
    tpu.vector_store %arg12[%c0_65, %c0_66], %369 {strides = array<i32>} : memref<8x64xf32, #tpu.memory_space<vmem>>, vector<1x64xf32>,
    %371 = arith.select %15, %248, %348 : vector<1x64xi1>, vector<1x64xf32>
    %c1_67 = arith.constant 1 : index
    %c0_68 = arith.constant 0 : index
    %372 = vector.load %arg12[%c1_67, %c0_68] : memref<8x64xf32, #tpu.memory_space<vmem>>, vector<1x64xf32>
    tpu.vector_store %arg12[%c1_67, %c0_68], %371 {strides = array<i32>} : memref<8x64xf32, #tpu.memory_space<vmem>>, vector<1x64xf32>,
    %373 = arith.select %15, %268, %328 : vector<1x64xi1>, vector<1x64xf32>
    %c2_69 = arith.constant 2 : index
    %c0_70 = arith.constant 0 : index
    %374 = vector.load %arg12[%c2_69, %c0_70] : memref<8x64xf32, #tpu.memory_space<vmem>>, vector<1x64xf32>
    tpu.vector_store %arg12[%c2_69, %c0_70], %373 {strides = array<i32>} : memref<8x64xf32, #tpu.memory_space<vmem>>, vector<1x64xf32>,
    %375 = arith.select %15, %288, %308 : vector<1x64xi1>, vector<1x64xf32>
    %c3_71 = arith.constant 3 : index
    %c0_72 = arith.constant 0 : index
    %376 = vector.load %arg12[%c3_71, %c0_72] : memref<8x64xf32, #tpu.memory_space<vmem>>, vector<1x64xf32>
    tpu.vector_store %arg12[%c3_71, %c0_72], %375 {strides = array<i32>} : memref<8x64xf32, #tpu.memory_space<vmem>>, vector<1x64xf32>,
    %377 = arith.select %15, %308, %288 : vector<1x64xi1>, vector<1x64xf32>
    %c4_73 = arith.constant 4 : index
    %c0_74 = arith.constant 0 : index
    %378 = vector.load %arg12[%c4_73, %c0_74] : memref<8x64xf32, #tpu.memory_space<vmem>>, vector<1x64xf32>
    tpu.vector_store %arg12[%c4_73, %c0_74], %377 {strides = array<i32>} : memref<8x64xf32, #tpu.memory_space<vmem>>, vector<1x64xf32>,
    %379 = arith.select %15, %328, %268 : vector<1x64xi1>, vector<1x64xf32>
    %c5_75 = arith.constant 5 : index
    %c0_76 = arith.constant 0 : index
    %380 = vector.load %arg12[%c5_75, %c0_76] : memref<8x64xf32, #tpu.memory_space<vmem>>, vector<1x64xf32>
    tpu.vector_store %arg12[%c5_75, %c0_76], %379 {strides = array<i32>} : memref<8x64xf32, #tpu.memory_space<vmem>>, vector<1x64xf32>,
    %381 = arith.select %15, %348, %248 : vector<1x64xi1>, vector<1x64xf32>
    %c6_77 = arith.constant 6 : index
    %c0_78 = arith.constant 0 : index
    %382 = vector.load %arg12[%c6_77, %c0_78] : memref<8x64xf32, #tpu.memory_space<vmem>>, vector<1x64xf32>
    tpu.vector_store %arg12[%c6_77, %c0_78], %381 {strides = array<i32>} : memref<8x64xf32, #tpu.memory_space<vmem>>, vector<1x64xf32>,
    %383 = arith.select %15, %368, %228 : vector<1x64xi1>, vector<1x64xf32>
    %c7_79 = arith.constant 7 : index
    %c0_80 = arith.constant 0 : index
    %384 = vector.load %arg12[%c7_79, %c0_80] : memref<8x64xf32, #tpu.memory_space<vmem>>, vector<1x64xf32>
    tpu.vector_store %arg12[%c7_79, %c0_80], %383 {strides = array<i32>} : memref<8x64xf32, #tpu.memory_space<vmem>>, vector<1x64xf32>,
    %c0_81 = arith.constant 0 : index
    %c0_82 = arith.constant 0 : index
    %385 = vector.load %arg12[%c0_81, %c0_82] : memref<8x64xf32, #tpu.memory_space<vmem>>, vector<8x64xf32>
    %c0_83 = arith.constant 0 : index
    %c0_84 = arith.constant 0 : index
    %386 = vector.load %arg8[%c0_83, %c0_84] : memref<64x128xf32, #tpu.memory_space<vmem>>, vector<64x128xf32>
    %cst_85 = arith.constant dense<0.000000e+00> : vector<8x128xf32>
    %387 = tpu.matmul %385, %386, %cst_85 {dimension_numbers = #tpu.dot_dimension_numbers<[1], [0], [0], [1], [0, 0, 1, 1], [], []>} : vector<8x64xf32>, vector<64x128xf32>, vector<8x128xf32> -> vector<8x128xf32>
    %c0_86 = arith.constant 0 : index
    %c0_87 = arith.constant 0 : index
    %388 = vector.load %arg9[%c0_86, %c0_87] : memref<1x128xf32, #tpu.memory_space<vmem>>, vector<1x128xf32>
    %389 = vector.broadcast %388 : vector<1x128xf32> to vector<8x128xf32>
    %390 = arith.addf %387, %389 : vector<8x128xf32>
    %cst_88 = arith.constant dense<0xFF800000> : vector<8xf32>
    %391 = vector.multi_reduction <maximumf>, %390, %cst_88 [1] : vector<8x128xf32> to vector<8xf32>
    %392 = vector.shape_cast %391 : vector<8xf32> to vector<8x1xf32>
    %393 = vector.broadcast %392 : vector<8x1xf32> to vector<8x128xf32>
    %394 = arith.subf %390, %393 : vector<8x128xf32>
    %395 = math.exp %394 : vector<8x128xf32>
    %cst_89 = arith.constant dense<0.000000e+00> : vector<8xf32>
    %396 = vector.multi_reduction <add>, %395, %cst_89 [1] : vector<8x128xf32> to vector<8xf32>
    %397 = vector.shape_cast %396 : vector<8xf32> to vector<8x1xf32>
    %398 = math.log %397 : vector<8x1xf32>
    %399 = vector.broadcast %398 : vector<8x1xf32> to vector<8x128xf32>
    %400 = arith.subf %394, %399 : vector<8x128xf32>
    %c0_90 = arith.constant 0 : index
    %c0_91 = arith.constant 0 : index
    %401 = vector.load %arg10[%c0_90, %c0_91] : memref<8x128xf32, #tpu.memory_space<vmem>>, vector<8x128xf32>
    tpu.vector_store %arg10[%c0_90, %c0_91], %400 {strides = array<i32>} : memref<8x128xf32, #tpu.memory_space<vmem>>, vector<8x128xf32>,
    return
  }
}

</mosaic_0001>

<llo_original>
// kernel: lstm_tagger_forward.1
$region0: #{lstm_tagger_forward.1}
  #allocation0 [shape = 'u32[]', space=smem, size = 0x4, offset = 0x4, fixed_abs, tag = 'smem constant byte address 0x4 - core index']
  #allocation1 [shape = 'u32[144,128]{1,0:T(1,128)}', space=vmem, size = 0x12000, scoped, tag = 'internal scratch']
  #allocation2 [shape = 'f32[8,64]{1,0:T(8,128)}', space=vmem, size = 0x1000, scoped, tag = 'scratch operand']
  #allocation3 [shape = 'f32[8,64]{1,0:T(8,128)}', space=vmem, size = 0x1000, scoped, tag = 'scratch operand']
  %s0 = inlined_call_operand.vmem [shape: s32[8,1], index: 0, kind: input, shape index: {}]
  %s1 = inlined_call_operand.hbm [shape: f32[128,128], index: 1, kind: input, shape index: {}]
  %s2 = inlined_call_operand.hbm [shape: f32[128,256], index: 2, kind: input, shape index: {}]
  %s3 = inlined_call_operand.hbm [shape: f32[64,256], index: 3, kind: input, shape index: {}]
  %s4 = inlined_call_operand.vmem [shape: f32[1,256], index: 4, kind: input, shape index: {}]
  %s5 = inlined_call_operand.hbm [shape: f32[64,256], index: 5, kind: input, shape index: {}]
  %s6 = inlined_call_operand.hbm [shape: f32[64,256], index: 6, kind: input, shape index: {}]
  %s7 = inlined_call_operand.vmem [shape: f32[1,256], index: 7, kind: input, shape index: {}]
  %s8 = inlined_call_operand.hbm [shape: f32[64,128], index: 8, kind: input, shape index: {}]
  %s9 = inlined_call_operand.vmem [shape: f32[1,128], index: 9, kind: input, shape index: {}]
  %s10 = inlined_call_operand.hbm [shape: f32[8,128], index: 10, kind: output, shape index: {}]
  %s11 = sld [smem:[#allocation0]]
  $region74: #{lstm_tagger_forward.1} parent=0
    _
  %s13 = ssub.s32 1, %s11
  %s14 = scalar_select 0, %s13, %s11
  $region1: #{lstm_tagger_forward.1} parent=0
    #allocation4 [shape = 'u8[65536]{0}', space=vmem, size = 0x10000, scoped, tag = 'input window, operand 1, single buffered']
    #allocation5 [shape = 's32[1]{0}', space=sflag, size = 0x4, scoped, tag = 'scoped memory for lstm_tagger_forward.1']
    #allocation6 [shape = 's32[1]{0}', space=sflag, size = 0x4, scoped, tag = 'scoped memory for lstm_tagger_forward.1']
    #allocation7 [shape = 'u8[131072]{0}', space=vmem, size = 0x20000, scoped, tag = 'input window, operand 2, single buffered']
    #allocation8 [shape = 's32[1]{0}', space=sflag, size = 0x4, scoped, tag = 'scoped memory for lstm_tagger_forward.1']
    #allocation9 [shape = 'u8[65536]{0}', space=vmem, size = 0x10000, scoped, tag = 'input window, operand 3, single buffered']
    #allocation10 [shape = 'u8[65536]{0}', space=vmem, size = 0x10000, scoped, tag = 'input window, operand 5, single buffered']
    #allocation11 [shape = 's32[1]{0}', space=sflag, size = 0x4, scoped, tag = 'scoped memory for lstm_tagger_forward.1']
    #allocation12 [shape = 'u8[65536]{0}', space=vmem, size = 0x10000, scoped, tag = 'input window, operand 6, single buffered']
    #allocation13 [shape = 'u8[32768]{0}', space=vmem, size = 0x8000, scoped, tag = 'input window, operand 8, single buffered']
    #allocation14 [shape = 's32[1]{0}', space=sflag, size = 0x4, scoped, tag = 'scoped memory for lstm_tagger_forward.1']
    #allocation15 [shape = 'u8[4096]{0}', space=vmem, size = 0x1000, scoped, tag = 'output window, operand 0, single buffered']
    %15 = vsyncpa [#allocation5], 0
    %16 = vsyncpa [#allocation8], 0
    %17 = vsyncpa [#allocation11], 0
    %18 = vsyncpa [#allocation14], 0
    %19 = vsyncpa [#allocation6], 0
    // Predicated region
    $region2: #{lstm_tagger_forward.1} parent=1 // pred_check
      _
    $region3: #{lstm_tagger_forward.1} parent=1 // pred_check_branch
      %21 = sbr.rel (0) target = $region5
    $region4: #{lstm_tagger_forward.1} parent=1 // pred_region
      _
    $region5: #{lstm_tagger_forward.1} parent=1 // pred_fallthru
      _
    // Predicated region
    $region6: #{lstm_tagger_forward.1} parent=1 // pred_check
      _
    $region7: #{lstm_tagger_forward.1} parent=1 // pred_check_branch
      %23 = sbr.rel (0) target = $region9
    $region8: #{lstm_tagger_forward.1} parent=1 // pred_region
      %s25 = ssub.s32 2048, 2048
      %26 = vsyncadd [#allocation5], %s25
      %s27 = sshll.u32 [#allocation4], 4
      %s28 = int_to_ptr.vmem [resolvable:$true] %s27
      %33 = dma.hbm_to_vmem [thread:$0]  %s1, 2048, %s28, [#allocation5], 128, 128, 8
    $region9: #{lstm_tagger_forward.1} parent=1 // pred_fallthru
      _
    // Predicated region
    $region10: #{lstm_tagger_forward.1} parent=1 // pred_check
      _
    $region11: #{lstm_tagger_forward.1} parent=1 // pred_check_branch
      %35 = sbr.rel (0) target = $region13
    $region12: #{lstm_tagger_forward.1} parent=1 // pred_region
      %s37 = ssub.s32 4096, 4096
      %38 = vsyncadd [#allocation8], %s37
      %s39 = sshll.u32 [#allocation7], 4
      %s40 = int_to_ptr.vmem [resolvable:$true] %s39
      %45 = dma.hbm_to_vmem [thread:$0]  %s2, 4096, %s40, [#allocation8], 256, 256, 16
    $region13: #{lstm_tagger_forward.1} parent=1 // pred_fallthru
      _
    // Predicated region
    $region14: #{lstm_tagger_forward.1} parent=1 // pred_check
      _
    $region15: #{lstm_tagger_forward.1} parent=1 // pred_check_branch
      %47 = sbr.rel (0) target = $region17
    $region16: #{lstm_tagger_forward.1} parent=1 // pred_region
      %s49 = ssub.s32 2048, 2048
      %50 = vsyncadd [#allocation8], %s49
      %s51 = sshll.u32 [#allocation9], 4
      %s52 = int_to_ptr.vmem [resolvable:$true] %s51
      %57 = dma.hbm_to_vmem [thread:$0]  %s3, 2048, %s52, [#allocation8], 256, 256, 16
    $region17: #{lstm_tagger_forward.1} parent=1 // pred_fallthru
      _
    // Predicated region
    $region18: #{lstm_tagger_forward.1} parent=1 // pred_check
      _
    $region19: #{lstm_tagger_forward.1} parent=1 // pred_check_branch
      %59 = sbr.rel (0) target = $region21
    $region20: #{lstm_tagger_forward.1} parent=1 // pred_region
      _
    $region21: #{lstm_tagger_forward.1} parent=1 // pred_fallthru
      _
    // Predicated region
    $region22: #{lstm_tagger_forward.1} parent=1 // pred_check
      _
    $region23: #{lstm_tagger_forward.1} parent=1 // pred_check_branch
      %61 = sbr.rel (0) target = $region25
    $region24: #{lstm_tagger_forward.1} parent=1 // pred_region
      %s63 = ssub.s32 2048, 2048
      %64 = vsyncadd [#allocation11], %s63
      %s65 = sshll.u32 [#allocation10], 4
      %s66 = int_to_ptr.vmem [resolvable:$true] %s65
      %71 = dma.hbm_to_vmem [thread:$0]  %s5, 2048, %s66, [#allocation11], 256, 256, 16
    $region25: #{lstm_tagger_forward.1} parent=1 // pred_fallthru
      _
    // Predicated region
    $region26: #{lstm_tagger_forward.1} parent=1 // pred_check
      _
    $region27: #{lstm_tagger_forward.1} parent=1 // pred_check_branch
      %73 = sbr.rel (0) target = $region29
    $region28: #{lstm_tagger_forward.1} parent=1 // pred_region
      %s75 = ssub.s32 2048, 2048
      %76 = vsyncadd [#allocation11], %s75
      %s77 = sshll.u32 [#allocation12], 4
      %s78 = int_to_ptr.vmem [resolvable:$true] %s77
      %83 = dma.hbm_to_vmem [thread:$0]  %s6, 2048, %s78, [#allocation11], 256, 256, 16
    $region29: #{lstm_tagger_forward.1} parent=1 // pred_fallthru
      _
    // Predicated region
    $region30: #{lstm_tagger_forward.1} parent=1 // pred_check
      _
    $region31: #{lstm_tagger_forward.1} parent=1 // pred_check_branch
      %85 = sbr.rel (0) target = $region33
    $region32: #{lstm_tagger_forward.1} parent=1 // pred_region
      _
    $region33: #{lstm_tagger_forward.1} parent=1 // pred_fallthru
      _
    // Predicated region
    $region34: #{lstm_tagger_forward.1} parent=1 // pred_check
      _
    $region35: #{lstm_tagger_forward.1} parent=1 // pred_check_branch
      %87 = sbr.rel (0) target = $region37
    $region36: #{lstm_tagger_forward.1} parent=1 // pred_region
      %s89 = ssub.s32 1024, 1024
      %90 = vsyncadd [#allocation14], %s89
      %s91 = sshll.u32 [#allocation13], 4
      %s92 = int_to_ptr.vmem [resolvable:$true] %s91
      %97 = dma.hbm_to_vmem [thread:$0]  %s8, 1024, %s92, [#allocation14], 128, 128, 8
    $region37: #{lstm_tagger_forward.1} parent=1 // pred_fallthru
      _
    // Predicated region
    $region38: #{lstm_tagger_forward.1} parent=1 // pred_check
      _
    $region39: #{lstm_tagger_forward.1} parent=1 // pred_check_branch
      %99 = sbr.rel (0) target = $region41
    $region40: #{lstm_tagger_forward.1} parent=1 // pred_region
      _
    $region41: #{lstm_tagger_forward.1} parent=1 // pred_fallthru
      _
    // Predicated region
    $region42: #{lstm_tagger_forward.1} parent=1 // pred_check
      _
    $region43: #{lstm_tagger_forward.1} parent=1 // pred_check_branch
      %101 = sbr.rel (0) target = $region45
    $region44: #{lstm_tagger_forward.1} parent=1 // pred_region
      %102 = dma.done [#allocation5], 2048
    $region45: #{lstm_tagger_forward.1} parent=1 // pred_fallthru
      _
    // Predicated region
    $region46: #{lstm_tagger_forward.1} parent=1 // pred_check
      _
    $region47: #{lstm_tagger_forward.1} parent=1 // pred_check_branch
      %104 = sbr.rel (0) target = $region49
    $region48: #{lstm_tagger_forward.1} parent=1 // pred_region
      %105 = dma.done [#allocation8], 4096
    $region49: #{lstm_tagger_forward.1} parent=1 // pred_fallthru
      _
    // Predicated region
    $region50: #{lstm_tagger_forward.1} parent=1 // pred_check
      _
    $region51: #{lstm_tagger_forward.1} parent=1 // pred_check_branch
      %107 = sbr.rel (0) target = $region53
    $region52: #{lstm_tagger_forward.1} parent=1 // pred_region
      %108 = dma.done [#allocation8], 2048
    $region53: #{lstm_tagger_forward.1} parent=1 // pred_fallthru
      _
    // Predicated region
    $region54: #{lstm_tagger_forward.1} parent=1 // pred_check
      _
    $region55: #{lstm_tagger_forward.1} parent=1 // pred_check_branch
      %110 = sbr.rel (0) target = $region57
    $region56: #{lstm_tagger_forward.1} parent=1 // pred_region
      %111 = dma.done [#allocation11], 2048
    $region57: #{lstm_tagger_forward.1} parent=1 // pred_fallthru
      _
    // Predicated region
    $region58: #{lstm_tagger_forward.1} parent=1 // pred_check
      _
    $region59: #{lstm_tagger_forward.1} parent=1 // pred_check_branch
      %113 = sbr.rel (0) target = $region61
    $region60: #{lstm_tagger_forward.1} parent=1 // pred_region
      %114 = dma.done [#allocation11], 2048
    $region61: #{lstm_tagger_forward.1} parent=1 // pred_fallthru
      _
    // Predicated region
    $region62: #{lstm_tagger_forward.1} parent=1 // pred_check
      _
    $region63: #{lstm_tagger_forward.1} parent=1 // pred_check_branch
      %116 = sbr.rel (0) target = $region65
    $region64: #{lstm_tagger_forward.1} parent=1 // pred_region
      %117 = dma.done [#allocation14], 1024
    $region65: #{lstm_tagger_forward.1} parent=1 // pred_fallthru
      _
    %v118 = vld [vmem:[%s0] sm:$0xff]
    %v119 = vlaneseq
    %v120 = vand.u32 %v119, 127
    %121 = vset.pattern.permute.xlu0 0
    %122 = vperm.xlu0 %121, %v118
    %v123 = vpop.permute.xlu0 %122
    %vm124 = vcmp.eq.s32.totalorder %v123, %v120
    %v125 = vsel %vm124, 1, 0
    %v126 = vcvt.s32.f32 %v125
    %v127 = vld [vmem:[#allocation4] sm:$0xff]
    %v128 = vld [vmem:[#allocation4 + $0x8] sm:$0xff]
    %v129 = vld [vmem:[#allocation4 + $0x10] sm:$0xff]
    %v130 = vld [vmem:[#allocation4 + $0x18] sm:$0xff]
    %v131 = vld [vmem:[#allocation4 + $0x20] sm:$0xff]
    %v132 = vld [vmem:[#allocation4 + $0x28] sm:$0xff]
    %v133 = vld [vmem:[#allocation4 + $0x30] sm:$0xff]
    %v134 = vld [vmem:[#allocation4 + $0x38] sm:$0xff]
    %v135 = vld [vmem:[#allocation4 + $0x40] sm:$0xff]
    %v136 = vld [vmem:[#allocation4 + $0x48] sm:$0xff]
    %v137 = vld [vmem:[#allocation4 + $0x50] sm:$0xff]
    %v138 = vld [vmem:[#allocation4 + $0x58] sm:$0xff]
    %v139 = vld [vmem:[#allocation4 + $0x60] sm:$0xff]
    %v140 = vld [vmem:[#allocation4 + $0x68] sm:$0xff]
    %v141 = vld [vmem:[#allocation4 + $0x70] sm:$0xff]
    %v142 = vld [vmem:[#allocation4 + $0x78] sm:$0xff]
    %143 = vmatprep.subr.mxu0 0.0
    %144 = vmatpush1.msra.mxu0 %v127
    %145 = vmatprep.subr.mxu0 0.0
    %146 = vmatpush1.msra.mxu0 %v128
    %147 = vmatprep.subr.mxu0 0.0
    %148 = vmatpush1.msra.mxu0 %v129
    %149 = vmatprep.subr.mxu0 0.0
    %150 = vmatpush1.msra.mxu0 %v130
    %151 = vmatprep.subr.mxu0 0.0
    %152 = vmatpush1.msra.mxu0 %v131
    %153 = vmatprep.subr.mxu0 0.0
    %154 = vmatpush1.msra.mxu0 %v132
    %155 = vmatprep.subr.mxu0 0.0
    %156 = vmatpush1.msra.mxu0 %v133
    %157 = vmatprep.subr.mxu0 0.0
    %158 = vmatpush1.msra.mxu0 %v134
    %159 = vmatprep.subr.mxu0 0.0
    %160 = vmatpush1.msra.mxu0 %v135
    %161 = vmatprep.subr.mxu0 0.0
    %162 = vmatpush1.msra.mxu0 %v136
    %163 = vmatprep.subr.mxu0 0.0
    %164 = vmatpush1.msra.mxu0 %v137
    %165 = vmatprep.subr.mxu0 0.0
    %166 = vmatpush1.msra.mxu0 %v138
    %167 = vmatprep.subr.mxu0 0.0
    %168 = vmatpush1.msra.mxu0 %v139
    %169 = vmatprep.subr.mxu0 0.0
    %170 = vmatpush1.msra.mxu0 %v140
    %171 = vmatprep.subr.mxu0 0.0
    %172 = vmatpush1.msra.mxu0 %v141
    %173 = vmatprep.subr.mxu0 0.0
    %174 = vmatpush1.msra.mxu0 %v142
    %175 = vmatprep.subr.mxu0 0.0
    %176 = vmatpush1.msra.mxu0 0.0
    %177 = vmatprep.subr.mxu0 0.0
    %178 = vmatpush1.msra.mxu0 0.0
    %179 = vmatprep.subr.mxu0 0.0
    %180 = vmatpush1.msra.mxu0 0.0
    %181 = vmatprep.subr.mxu0 0.0
    %182 = vmatpush1.msra.mxu0 0.0
    %183 = vmatprep.subr.mxu0 0.0
    %184 = vmatpush1.msra.mxu0 0.0
    %185 = vmatprep.subr.mxu0 0.0
    %186 = vmatpush1.msra.mxu0 0.0
    %187 = vmatprep.subr.mxu0 0.0
    %188 = vmatpush1.msra.mxu0 0.0
    %189 = vmatprep.subr.mxu0 0.0
    %190 = vmatpush1.msra.mxu0 0.0
    %191 = vmatprep.subr.mxu0 0.0
    %192 = vmatpush1.msra.mxu0 0.0
    %193 = vmatprep.subr.mxu0 0.0
    %194 = vmatpush1.msra.mxu0 0.0
    %195 = vmatprep.subr.mxu0 0.0
    %196 = vmatpush1.msra.mxu0 0.0
    %197 = vmatprep.subr.mxu0 0.0
    %198 = vmatpush1.msra.mxu0 0.0
    %199 = vmatprep.subr.mxu0 0.0
    %200 = vmatpush1.msra.mxu0 0.0
    %201 = vmatprep.subr.mxu0 0.0
    %202 = vmatpush1.msra.mxu0 0.0
    %203 = vmatprep.subr.mxu0 0.0
    %204 = vmatpush1.msra.mxu0 0.0
    %205 = vmatprep.subr.mxu0 0.0
    %206 = vmatpush1.msra.mxu0 0.0
    %207 = vmatprep.mubr.f32.mxu0 0.0
    %208 = vmatmul.mubr.f32.gmra.mrb[0].mxu0 %v126
    %v209 = vpop.f32.mrb[0].mxu0
    %v210 = vadd.f32 0.0, %v209
    %v211 = vpop.f32.mrb[0].mxu0
    %212 = vdwg.mxu0
    %v213 = vadd.s32 %v120, 128
    %v214 = vand.u32 %v120, 63
    %v215 = vand.u32 %v213, 63
    %vm216 = vcmp.lt.s32.totalorder %v214, 32
    %vm217 = vcmp.lt.s32.totalorder %v215, 32
    %vm218 = vcmp.lt.s32.totalorder %v120, 32
    %v219 = vld [vmem:[#allocation7] sm:$0xff]
    %v220 = vld [vmem:[#allocation7 + $0x8] sm:$0xff]
    %v221 = vld [vmem:[#allocation7 + $0x10] sm:$0xff]
    %v222 = vld [vmem:[#allocation7 + $0x18] sm:$0xff]
    %v223 = vld [vmem:[#allocation7 + $0x20] sm:$0xff]
    %v224 = vld [vmem:[#allocation7 + $0x28] sm:$0xff]
    %v225 = vld [vmem:[#allocation7 + $0x30] sm:$0xff]
    %v226 = vld [vmem:[#allocation7 + $0x38] sm:$0xff]
    %v227 = vld [vmem:[#allocation7 + $0x40] sm:$0xff]
    %v228 = vld [vmem:[#allocation7 + $0x48] sm:$0xff]
    %v229 = vld [vmem:[#allocation7 + $0x50] sm:$0xff]
    %v230 = vld [vmem:[#allocation7 + $0x58] sm:$0xff]
    %v231 = vld [vmem:[#allocation7 + $0x60] sm:$0xff]
    %v232 = vld [vmem:[#allocation7 + $0x68] sm:$0xff]
    %v233 = vld [vmem:[#allocation7 + $0x70] sm:$0xff]
    %v234 = vld [vmem:[#allocation7 + $0x78] sm:$0xff]
    %v235 = vld [vmem:[#allocation7 + $0x80] sm:$0xff]
    %v236 = vld [vmem:[#allocation7 + $0x88] sm:$0xff]
    %v237 = vld [vmem:[#allocation7 + $0x90] sm:$0xff]
    %v238 = vld [vmem:[#allocation7 + $0x98] sm:$0xff]
    %v239 = vld [vmem:[#allocation7 + $0xa0] sm:$0xff]
    %v240 = vld [vmem:[#allocation7 + $0xa8] sm:$0xff]
    %v241 = vld [vmem:[#allocation7 + $0xb0] sm:$0xff]
    %v242 = vld [vmem:[#allocation7 + $0xb8] sm:$0xff]
    %v243 = vld [vmem:[#allocation7 + $0xc0] sm:$0xff]
    %v244 = vld [vmem:[#allocation7 + $0xc8] sm:$0xff]
    %v245 = vld [vmem:[#allocation7 + $0xd0] sm:$0xff]
    %v246 = vld [vmem:[#allocation7 + $0xd8] sm:$0xff]
    %v247 = vld [vmem:[#allocation7 + $0xe0] sm:$0xff]
    %v248 = vld [vmem:[#allocation7 + $0xe8] sm:$0xff]
    %v249 = vld [vmem:[#allocation7 + $0xf0] sm:$0xff]
    %v250 = vld [vmem:[#allocation7 + $0xf8] sm:$0xff]
    %v251 = vld [vmem:[%s4] sm:$0x3]
    %v253 = vlaneseq
    %v254 = vshrl.u32 %v253, 7
    %v255 = vsub.s32 0, %v254
    %v256 = vrot.slane %v251, %v255
    %v257 = vlaneseq
    %v258 = vshrl.u32 %v257, 7
    %v259 = vsub.s32 1, %v258
    %v260 = vrot.slane %v251, %v259
    %263 = vmatprep.subr.mxu0 %v220
    %264 = vmatpush1.msra.mxu0 %v219
    %265 = vmatprep.subr.mxu0 %v222
    %266 = vmatpush1.msra.mxu0 %v221
    %267 = vmatprep.subr.mxu0 %v224
    %268 = vmatpush1.msra.mxu0 %v223
    %269 = vmatprep.subr.mxu0 %v226
    %270 = vmatpush1.msra.mxu0 %v225
    %271 = vmatprep.subr.mxu0 %v228
    %272 = vmatpush1.msra.mxu0 %v227
    %273 = vmatprep.subr.mxu0 %v230
    %274 = vmatpush1.msra.mxu0 %v229
    %275 = vmatprep.subr.mxu0 %v232
    %276 = vmatpush1.msra.mxu0 %v231
    %277 = vmatprep.subr.mxu0 %v234
    %278 = vmatpush1.msra.mxu0 %v233
    %279 = vmatprep.subr.mxu0 %v236
    %280 = vmatpush1.msra.mxu0 %v235
    %281 = vmatprep.subr.mxu0 %v238
    %282 = vmatpush1.msra.mxu0 %v237
    %283 = vmatprep.subr.mxu0 %v240
    %284 = vmatpush1.msra.mxu0 %v239
    %285 = vmatprep.subr.mxu0 %v242
    %286 = vmatpush1.msra.mxu0 %v241
    %287 = vmatprep.subr.mxu0 %v244
    %288 = vmatpush1.msra.mxu0 %v243
    %289 = vmatprep.subr.mxu0 %v246
    %290 = vmatpush1.msra.mxu0 %v245
    %291 = vmatprep.subr.mxu0 %v248
    %292 = vmatpush1.msra.mxu0 %v247
    %293 = vmatprep.subr.mxu0 %v250
    %294 = vmatpush1.msra.mxu0 %v249
    %295 = vmatprep.subr.mxu0 0.0
    %296 = vmatpush1.msra.mxu0 0.0
    %297 = vmatprep.subr.mxu0 0.0
    %298 = vmatpush1.msra.mxu0 0.0
    %299 = vmatprep.subr.mxu0 0.0
    %300 = vmatpush1.msra.mxu0 0.0
    %301 = vmatprep.subr.mxu0 0.0
    %302 = vmatpush1.msra.mxu0 0.0
    %303 = vmatprep.subr.mxu0 0.0
    %304 = vmatpush1.msra.mxu0 0.0
    %305 = vmatprep.subr.mxu0 0.0
    %306 = vmatpush1.msra.mxu0 0.0
    %307 = vmatprep.subr.mxu0 0.0
    %308 = vmatpush1.msra.mxu0 0.0
    %309 = vmatprep.subr.mxu0 0.0
    %310 = vmatpush1.msra.mxu0 0.0
    %311 = vmatprep.subr.mxu0 0.0
    %312 = vmatpush1.msra.mxu0 0.0
    %313 = vmatprep.subr.mxu0 0.0
    %314 = vmatpush1.msra.mxu0 0.0
    %315 = vmatprep.subr.mxu0 0.0
    %316 = vmatpush1.msra.mxu0 0.0
    %317 = vmatprep.subr.mxu0 0.0
    %318 = vmatpush1.msra.mxu0 0.0
    %319 = vmatprep.subr.mxu0 0.0
    %320 = vmatpush1.msra.mxu0 0.0
    %321 = vmatprep.subr.mxu0 0.0
    %322 = vmatpush1.msra.mxu0 0.0
    %323 = vmatprep.subr.mxu0 0.0
    %324 = vmatpush1.msra.mxu0 0.0
    %325 = vmatprep.subr.mxu0 0.0
    %326 = vmatpush1.msra.mxu0 0.0
    %327 = vmatprep.mubr.f32.mxu0 0.0
    %328 = vmatmul.mubr.f32.gmra.mrb[0].mxu0 %v210
    %v329 = vpop.f32.mrb[0].mxu0
    %v330 = vadd.f32 %v256, %v329
    %v331 = vpop.f32.mrb[0].mxu0
    %v332 = vadd.f32 %v260, %v331
    %333 = vdwg.mxu0
    %v334 = vld [vmem:[#allocation9] sm:$0xff]
    %v335 = vld [vmem:[#allocation9 + $0x8] sm:$0xff]
    %v336 = vld [vmem:[#allocation9 + $0x10] sm:$0xff]
    %v337 = vld [vmem:[#allocation9 + $0x18] sm:$0xff]
    %v338 = vld [vmem:[#allocation9 + $0x20] sm:$0xff]
    %v339 = vld [vmem:[#allocation9 + $0x28] sm:$0xff]
    %v340 = vld [vmem:[#allocation9 + $0x30] sm:$0xff]
    %v341 = vld [vmem:[#allocation9 + $0x38] sm:$0xff]
    %v342 = vld [vmem:[#allocation9 + $0x40] sm:$0xff]
    %v343 = vld [vmem:[#allocation9 + $0x48] sm:$0xff]
    %v344 = vld [vmem:[#allocation9 + $0x50] sm:$0xff]
    %v345 = vld [vmem:[#allocation9 + $0x58] sm:$0xff]
    %v346 = vld [vmem:[#allocation9 + $0x60] sm:$0xff]
    %v347 = vld [vmem:[#allocation9 + $0x68] sm:$0xff]
    %v348 = vld [vmem:[#allocation9 + $0x70] sm:$0xff]
    %v349 = vld [vmem:[#allocation9 + $0x78] sm:$0xff]
    %v352 = vrot.slane %v330, 7
    %v353 = vrot.slane %v332, 7
    %v356 = vsel %vm216, %v330, %v352
    %v357 = vsel %vm217, %v332, %v353
    %vm358 = vcmask 523264
    %v360 = vsel %vm358, 0.0, 0
    %362 = vmatprep.subr.mxu0 %v335
    %363 = vmatpush1.msra.mxu0 %v334
    %364 = vmatprep.subr.mxu0 %v337
    %365 = vmatpush1.msra.mxu0 %v336
    %366 = vmatprep.subr.mxu0 %v339
    %367 = vmatpush1.msra.mxu0 %v338
    %368 = vmatprep.subr.mxu0 %v341
    %369 = vmatpush1.msra.mxu0 %v340
    %370 = vmatprep.subr.mxu0 %v343
    %371 = vmatpush1.msra.mxu0 %v342
    %372 = vmatprep.subr.mxu0 %v345
    %373 = vmatpush1.msra.mxu0 %v344
    %374 = vmatprep.subr.mxu0 %v347
    %375 = vmatpush1.msra.mxu0 %v346
    %376 = vmatprep.subr.mxu0 %v349
    %377 = vmatpush1.msra.mxu0 %v348
    %378 = vmatprep.subr.mxu0 0.0
    %379 = vmatpush1.msra.mxu0 0.0
    %380 = vmatprep.subr.mxu0 0.0
    %381 = vmatpush1.msra.mxu0 0.0
    %382 = vmatprep.subr.mxu0 0.0
    %383 = vmatpush1.msra.mxu0 0.0
    %384 = vmatprep.subr.mxu0 0.0
    %385 = vmatpush1.msra.mxu0 0.0
    %386 = vmatprep.subr.mxu0 0.0
    %387 = vmatpush1.msra.mxu0 0.0
    %388 = vmatprep.subr.mxu0 0.0
    %389 = vmatpush1.msra.mxu0 0.0
    %390 = vmatprep.subr.mxu0 0.0
    %391 = vmatpush1.msra.mxu0 0.0
    %392 = vmatprep.subr.mxu0 0.0
    %393 = vmatpush1.msra.mxu0 0.0
    %394 = vmatprep.subr.mxu0 0.0
    %395 = vmatpush1.msra.mxu0 0.0
    %396 = vmatprep.subr.mxu0 0.0
    %397 = vmatpush1.msra.mxu0 0.0
    %398 = vmatprep.subr.mxu0 0.0
    %399 = vmatpush1.msra.mxu0 0.0
    %400 = vmatprep.subr.mxu0 0.0
    %401 = vmatpush1.msra.mxu0 0.0
    %402 = vmatprep.subr.mxu0 0.0
    %403 = vmatpush1.msra.mxu0 0.0
    %404 = vmatprep.subr.mxu0 0.0
    %405 = vmatpush1.msra.mxu0 0.0
    %406 = vmatprep.subr.mxu0 0.0
    %407 = vmatpush1.msra.mxu0 0.0
    %408 = vmatprep.subr.mxu0 0.0
    %409 = vmatpush1.msra.mxu0 0.0
    %410 = vmatprep.subr.mxu0 0.0
    %411 = vmatpush1.msra.mxu0 0.0
    %412 = vmatprep.subr.mxu0 0.0
    %413 = vmatpush1.msra.mxu0 0.0
    %414 = vmatprep.subr.mxu0 0.0
    %415 = vmatpush1.msra.mxu0 0.0
    %416 = vmatprep.subr.mxu0 0.0
    %417 = vmatpush1.msra.mxu0 0.0
    %418 = vmatprep.subr.mxu0 0.0
    %419 = vmatpush1.msra.mxu0 0.0
    %420 = vmatprep.subr.mxu0 0.0
    %421 = vmatpush1.msra.mxu0 0.0
    %422 = vmatprep.subr.mxu0 0.0
    %423 = vmatpush1.msra.mxu0 0.0
    %424 = vmatprep.subr.mxu0 0.0
    %425 = vmatpush1.msra.mxu0 0.0
    %426 = vmatprep.mubr.f32.mxu0 0.0
    %427 = vmatmul.mubr.f32.gmra.mrb[0].mxu0 %v360
    %v428 = vpop.f32.mrb[0].mxu0
    %v429 = vadd.f32 0.0, %v428
    %v430 = vpop.f32.mrb[0].mxu0
    %v431 = vadd.f32 0.0, %v430
    %432 = vdwg.mxu0
    %v433 = vadd.f32 %v356, %v429
    %v434 = vadd.f32 %v357, %v431
    %v435 = vxor.u32 %v433, 2147483648
    %v436 = vxor.u32 %v434, 2147483648
    %v437 = vmul.f32 %v435, 1.442695
    %v438 = vpow.pop %v437
    %v439 = vmul.f32 %v436, 1.442695
    %v440 = vpow.pop %v439
    %v441 = vadd.f32 %v438, 1.0
    %v442 = vadd.f32 %v440, 1.0
    %v443 = vrcp.pop %v441
    %v444 = vmul.f32 1.0, %v443
    %v445 = vrcp.pop %v442
    %v446 = vmul.f32 1.0, %v445
    %v447 = vtanh.pop %v434
    %v448 = vmul.f32 %v444, 0.0
    %v449 = vmul.f32 %v444, %v447
    %451 = vrot.lane.b32.xlu0 %v449, 64
    %v452 = vpop.permute.xlu0 %451
    %v454 = vadd.f32 %v448, %v452
    %v455 = vtanh.pop %v454
    %v456 = vmul.f32 %v446, %v455
    %v457 = vrot.slane %v330, 5
    %v458 = vrot.slane %v332, 5
    %v461 = vsel %vm216, %v330, %v457
    %v462 = vsel %vm217, %v332, %v458
    %464 = vrot.lane.b32.xlu0 %v456, 64
    %v465 = vpop.permute.xlu0 %464
    %v466 = vsel %vm358, %v465, 0
    %468 = vmatprep.subr.mxu0 %v335
    %469 = vmatpush1.msra.mxu0 %v334
    %470 = vmatprep.subr.mxu0 %v337
    %471 = vmatpush1.msra.mxu0 %v336
    %472 = vmatprep.subr.mxu0 %v339
    %473 = vmatpush1.msra.mxu0 %v338
    %474 = vmatprep.subr.mxu0 %v341
    %475 = vmatpush1.msra.mxu0 %v340
    %476 = vmatprep.subr.mxu0 %v343
    %477 = vmatpush1.msra.mxu0 %v342
    %478 = vmatprep.subr.mxu0 %v345
    %479 = vmatpush1.msra.mxu0 %v344
    %480 = vmatprep.subr.mxu0 %v347
    %481 = vmatpush1.msra.mxu0 %v346
    %482 = vmatprep.subr.mxu0 %v349
    %483 = vmatpush1.msra.mxu0 %v348
    %484 = vmatprep.subr.mxu0 0.0
    %485 = vmatpush1.msra.mxu0 0.0
    %486 = vmatprep.subr.mxu0 0.0
    %487 = vmatpush1.msra.mxu0 0.0
    %488 = vmatprep.subr.mxu0 0.0
    %489 = vmatpush1.msra.mxu0 0.0
    %490 = vmatprep.subr.mxu0 0.0
    %491 = vmatpush1.msra.mxu0 0.0
    %492 = vmatprep.subr.mxu0 0.0
    %493 = vmatpush1.msra.mxu0 0.0
    %494 = vmatprep.subr.mxu0 0.0
    %495 = vmatpush1.msra.mxu0 0.0
    %496 = vmatprep.subr.mxu0 0.0
    %497 = vmatpush1.msra.mxu0 0.0
    %498 = vmatprep.subr.mxu0 0.0
    %499 = vmatpush1.msra.mxu0 0.0
    %500 = vmatprep.subr.mxu0 0.0
    %501 = vmatpush1.msra.mxu0 0.0
    %502 = vmatprep.subr.mxu0 0.0
    %503 = vmatpush1.msra.mxu0 0.0
    %504 = vmatprep.subr.mxu0 0.0
    %505 = vmatpush1.msra.mxu0 0.0
    %506 = vmatprep.subr.mxu0 0.0
    %507 = vmatpush1.msra.mxu0 0.0
    %508 = vmatprep.subr.mxu0 0.0
    %509 = vmatpush1.msra.mxu0 0.0
    %510 = vmatprep.subr.mxu0 0.0
    %511 = vmatpush1.msra.mxu0 0.0
    %512 = vmatprep.subr.mxu0 0.0
    %513 = vmatpush1.msra.mxu0 0.0
    %514 = vmatprep.subr.mxu0 0.0
    %515 = vmatpush1.msra.mxu0 0.0
    %516 = vmatprep.subr.mxu0 0.0
    %517 = vmatpush1.msra.mxu0 0.0
    %518 = vmatprep.subr.mxu0 0.0
    %519 = vmatpush1.msra.mxu0 0.0
    %520 = vmatprep.subr.mxu0 0.0
    %521 = vmatpush1.msra.mxu0 0.0
    %522 = vmatprep.subr.mxu0 0.0
    %523 = vmatpush1.msra.mxu0 0.0
    %524 = vmatprep.subr.mxu0 0.0
    %525 = vmatpush1.msra.mxu0 0.0
    %526 = vmatprep.subr.mxu0 0.0
    %527 = vmatpush1.msra.mxu0 0.0
    %528 = vmatprep.subr.mxu0 0.0
    %529 = vmatpush1.msra.mxu0 0.0
    %530 = vmatprep.subr.mxu0 0.0
    %531 = vmatpush1.msra.mxu0 0.0
    %532 = vmatprep.mubr.f32.mxu0 0.0
    %533 = vmatmul.mubr.f32.gmra.mrb[0].mxu0 %v466
    %v534 = vpop.f32.mrb[0].mxu0
    %v535 = vadd.f32 0.0, %v534
    %v536 = vpop.f32.mrb[0].mxu0
    %v537 = vadd.f32 0.0, %v536
    %538 = vdwg.mxu0
    %v541 = vrot.slane %v535, 7
    %v542 = vrot.slane %v537, 7
    %v545 = vadd.f32 %v461, %v541
    %v546 = vadd.f32 %v462, %v542
    %v547 = vxor.u32 %v545, 2147483648
    %v548 = vxor.u32 %v546, 2147483648
    %v549 = vmul.f32 %v547, 1.442695
    %v550 = vpow.pop %v549
    %v551 = vmul.f32 %v548, 1.442695
    %v552 = vpow.pop %v551
    %v553 = vadd.f32 %v550, 1.0
    %v554 = vadd.f32 %v552, 1.0
    %v555 = vrcp.pop %v553
    %v556 = vmul.f32 1.0, %v555
    %v557 = vrcp.pop %v554
    %v558 = vmul.f32 1.0, %v557
    %v559 = vtanh.pop %v546
    %v561 = vrot.slane %v454, 7
    %v563 = vmul.f32 %v556, %v561
    %v564 = vmul.f32 %v556, %v559
    %566 = vrot.lane.b32.xlu0 %v564, 64
    %v567 = vpop.permute.xlu0 %566
    %v569 = vadd.f32 %v563, %v567
    %v570 = vtanh.pop %v569
    %v571 = vmul.f32 %v558, %v570
    %v572 = vrot.slane %v330, 3
    %v573 = vrot.slane %v332, 3
    %v576 = vsel %vm216, %v330, %v572
    %v577 = vsel %vm217, %v332, %v573
    %v579 = vrot.slane %v571, 1
    %580 = vrot.lane.b32.xlu0 %v579, 64
    %v581 = vpop.permute.xlu0 %580
    %v582 = vsel %vm358, %v581, 0
    %584 = vmatprep.subr.mxu0 %v335
    %585 = vmatpush1.msra.mxu0 %v334
    %586 = vmatprep.subr.mxu0 %v337
    %587 = vmatpush1.msra.mxu0 %v336
    %588 = vmatprep.subr.mxu0 %v339
    %589 = vmatpush1.msra.mxu0 %v338
    %590 = vmatprep.subr.mxu0 %v341
    %591 = vmatpush1.msra.mxu0 %v340
    %592 = vmatprep.subr.mxu0 %v343
    %593 = vmatpush1.msra.mxu0 %v342
    %594 = vmatprep.subr.mxu0 %v345
    %595 = vmatpush1.msra.mxu0 %v344
    %596 = vmatprep.subr.mxu0 %v347
    %597 = vmatpush1.msra.mxu0 %v346
    %598 = vmatprep.subr.mxu0 %v349
    %599 = vmatpush1.msra.mxu0 %v348
    %600 = vmatprep.subr.mxu0 0.0
    %601 = vmatpush1.msra.mxu0 0.0
    %602 = vmatprep.subr.mxu0 0.0
    %603 = vmatpush1.msra.mxu0 0.0
    %604 = vmatprep.subr.mxu0 0.0
    %605 = vmatpush1.msra.mxu0 0.0
    %606 = vmatprep.subr.mxu0 0.0
    %607 = vmatpush1.msra.mxu0 0.0
    %608 = vmatprep.subr.mxu0 0.0
    %609 = vmatpush1.msra.mxu0 0.0
    %610 = vmatprep.subr.mxu0 0.0
    %611 = vmatpush1.msra.mxu0 0.0
    %612 = vmatprep.subr.mxu0 0.0
    %613 = vmatpush1.msra.mxu0 0.0
    %614 = vmatprep.subr.mxu0 0.0
    %615 = vmatpush1.msra.mxu0 0.0
    %616 = vmatprep.subr.mxu0 0.0
    %617 = vmatpush1.msra.mxu0 0.0
    %618 = vmatprep.subr.mxu0 0.0
    %619 = vmatpush1.msra.mxu0 0.0
    %620 = vmatprep.subr.mxu0 0.0
    %621 = vmatpush1.msra.mxu0 0.0
    %622 = vmatprep.subr.mxu0 0.0
    %623 = vmatpush1.msra.mxu0 0.0
    %624 = vmatprep.subr.mxu0 0.0
    %625 = vmatpush1.msra.mxu0 0.0
    %626 = vmatprep.subr.mxu0 0.0
    %627 = vmatpush1.msra.mxu0 0.0
    %628 = vmatprep.subr.mxu0 0.0
    %629 = vmatpush1.msra.mxu0 0.0
    %630 = vmatprep.subr.mxu0 0.0
    %631 = vmatpush1.msra.mxu0 0.0
    %632 = vmatprep.subr.mxu0 0.0
    %633 = vmatpush1.msra.mxu0 0.0
    %634 = vmatprep.subr.mxu0 0.0
    %635 = vmatpush1.msra.mxu0 0.0
    %636 = vmatprep.subr.mxu0 0.0
    %637 = vmatpush1.msra.mxu0 0.0
    %638 = vmatprep.subr.mxu0 0.0
    %639 = vmatpush1.msra.mxu0 0.0
    %640 = vmatprep.subr.mxu0 0.0
    %641 = vmatpush1.msra.mxu0 0.0
    %642 = vmatprep.subr.mxu0 0.0
    %643 = vmatpush1.msra.mxu0 0.0
    %644 = vmatprep.subr.mxu0 0.0
    %645 = vmatpush1.msra.mxu0 0.0
    %646 = vmatprep.subr.mxu0 0.0
    %647 = vmatpush1.msra.mxu0 0.0
    %648 = vmatprep.mubr.f32.mxu0 0.0
    %649 = vmatmul.mubr.f32.gmra.mrb[0].mxu0 %v582
    %v650 = vpop.f32.mrb[0].mxu0
    %v651 = vadd.f32 0.0, %v650
    %v652 = vpop.f32.mrb[0].mxu0
    %v653 = vadd.f32 0.0, %v652
    %654 = vdwg.mxu0
    %v657 = vrot.slane %v651, 6
    %v658 = vrot.slane %v653, 6
    %v661 = vadd.f32 %v576, %v657
    %v662 = vadd.f32 %v577, %v658
    %v663 = vxor.u32 %v661, 2147483648
    %v664 = vxor.u32 %v662, 2147483648
    %v665 = vmul.f32 %v663, 1.442695
    %v666 = vpow.pop %v665
    %v667 = vmul.f32 %v664, 1.442695
    %v668 = vpow.pop %v667
    %v669 = vadd.f32 %v666, 1.0
    %v670 = vadd.f32 %v668, 1.0
    %v671 = vrcp.pop %v669
    %v672 = vmul.f32 1.0, %v671
    %v673 = vrcp.pop %v670
    %v674 = vmul.f32 1.0, %v673
    %v675 = vtanh.pop %v662
    %v677 = vrot.slane %v569, 7
    %v679 = vmul.f32 %v672, %v677
    %v680 = vmul.f32 %v672, %v675
    %682 = vrot.lane.b32.xlu0 %v680, 64
    %v683 = vpop.permute.xlu0 %682
    %v685 = vadd.f32 %v679, %v683
    %v686 = vtanh.pop %v685
    %v687 = vmul.f32 %v674, %v686
    %v688 = vrot.slane %v330, 1
    %v689 = vrot.slane %v332, 1
    %v692 = vsel %vm216, %v330, %v688
    %v693 = vsel %vm217, %v332, %v689
    %v695 = vrot.slane %v687, 2
    %696 = vrot.lane.b32.xlu0 %v695, 64
    %v697 = vpop.permute.xlu0 %696
    %v698 = vsel %vm358, %v697, 0
    %700 = vmatprep.subr.mxu0 %v335
    %701 = vmatpush1.msra.mxu0 %v334
    %702 = vmatprep.subr.mxu0 %v337
    %703 = vmatpush1.msra.mxu0 %v336
    %704 = vmatprep.subr.mxu0 %v339
    %705 = vmatpush1.msra.mxu0 %v338
    %706 = vmatprep.subr.mxu0 %v341
    %707 = vmatpush1.msra.mxu0 %v340
    %708 = vmatprep.subr.mxu0 %v343
    %709 = vmatpush1.msra.mxu0 %v342
    %710 = vmatprep.subr.mxu0 %v345
    %711 = vmatpush1.msra.mxu0 %v344
    %712 = vmatprep.subr.mxu0 %v347
    %713 = vmatpush1.msra.mxu0 %v346
    %714 = vmatprep.subr.mxu0 %v349
    %715 = vmatpush1.msra.mxu0 %v348
    %716 = vmatprep.subr.mxu0 0.0
    %717 = vmatpush1.msra.mxu0 0.0
    %718 = vmatprep.subr.mxu0 0.0
    %719 = vmatpush1.msra.mxu0 0.0
    %720 = vmatprep.subr.mxu0 0.0
    %721 = vmatpush1.msra.mxu0 0.0
    %722 = vmatprep.subr.mxu0 0.0
    %723 = vmatpush1.msra.mxu0 0.0
    %724 = vmatprep.subr.mxu0 0.0
    %725 = vmatpush1.msra.mxu0 0.0
    %726 = vmatprep.subr.mxu0 0.0
    %727 = vmatpush1.msra.mxu0 0.0
    %728 = vmatprep.subr.mxu0 0.0
    %729 = vmatpush1.msra.mxu0 0.0
    %730 = vmatprep.subr.mxu0 0.0
    %731 = vmatpush1.msra.mxu0 0.0
    %732 = vmatprep.subr.mxu0 0.0
    %733 = vmatpush1.msra.mxu0 0.0
    %734 = vmatprep.subr.mxu0 0.0
    %735 = vmatpush1.msra.mxu0 0.0
    %736 = vmatprep.subr.mxu0 0.0
    %737 = vmatpush1.msra.mxu0 0.0
    %738 = vmatprep.subr.mxu0 0.0
    %739 = vmatpush1.msra.mxu0 0.0
    %740 = vmatprep.subr.mxu0 0.0
    %741 = vmatpush1.msra.mxu0 0.0
    %742 = vmatprep.subr.mxu0 0.0
    %743 = vmatpush1.msra.mxu0 0.0
    %744 = vmatprep.subr.mxu0 0.0
    %745 = vmatpush1.msra.mxu0 0.0
    %746 = vmatprep.subr.mxu0 0.0
    %747 = vmatpush1.msra.mxu0 0.0
    %748 = vmatprep.subr.mxu0 0.0
    %749 = vmatpush1.msra.mxu0 0.0
    %750 = vmatprep.subr.mxu0 0.0
    %751 = vmatpush1.msra.mxu0 0.0
    %752 = vmatprep.subr.mxu0 0.0
    %753 = vmatpush1.msra.mxu0 0.0
    %754 = vmatprep.subr.mxu0 0.0
    %755 = vmatpush1.msra.mxu0 0.0
    %756 = vmatprep.subr.mxu0 0.0
    %757 = vmatpush1.msra.mxu0 0.0
    %758 = vmatprep.subr.mxu0 0.0
    %759 = vmatpush1.msra.mxu0 0.0
    %760 = vmatprep.subr.mxu0 0.0
    %761 = vmatpush1.msra.mxu0 0.0
    %762 = vmatprep.subr.mxu0 0.0
    %763 = vmatpush1.msra.mxu0 0.0
    %764 = vmatprep.mubr.f32.mxu0 0.0
    %765 = vmatmul.mubr.f32.gmra.mrb[0].mxu0 %v698
    %v766 = vpop.f32.mrb[0].mxu0
    %v767 = vadd.f32 0.0, %v766
    %v768 = vpop.f32.mrb[0].mxu0
    %v769 = vadd.f32 0.0, %v768
    %770 = vdwg.mxu0
    %v773 = vrot.slane %v767, 5
    %v774 = vrot.slane %v769, 5
    %v777 = vadd.f32 %v692, %v773
    %v778 = vadd.f32 %v693, %v774
    %v779 = vxor.u32 %v777, 2147483648
    %v780 = vxor.u32 %v778, 2147483648
    %v781 = vmul.f32 %v779, 1.442695
    %v782 = vpow.pop %v781
    %v783 = vmul.f32 %v780, 1.442695
    %v784 = vpow.pop %v783
    %v785 = vadd.f32 %v782, 1.0
    %v786 = vadd.f32 %v784, 1.0
    %v787 = vrcp.pop %v785
    %v788 = vmul.f32 1.0, %v787
    %v789 = vrcp.pop %v786
    %v790 = vmul.f32 1.0, %v789
    %v791 = vtanh.pop %v778
    %v793 = vrot.slane %v685, 7
    %v795 = vmul.f32 %v788, %v793
    %v796 = vmul.f32 %v788, %v791
    %798 = vrot.lane.b32.xlu0 %v796, 64
    %v799 = vpop.permute.xlu0 %798
    %v801 = vadd.f32 %v795, %v799
    %v802 = vtanh.pop %v801
    %v803 = vmul.f32 %v790, %v802
    %v805 = vrot.slane %v803, 3
    %806 = vrot.lane.b32.xlu0 %v805, 64
    %v807 = vpop.permute.xlu0 %806
    %v808 = vsel %vm358, %v807, 0
    %810 = vmatprep.subr.mxu0 %v335
    %811 = vmatpush1.msra.mxu0 %v334
    %812 = vmatprep.subr.mxu0 %v337
    %813 = vmatpush1.msra.mxu0 %v336
    %814 = vmatprep.subr.mxu0 %v339
    %815 = vmatpush1.msra.mxu0 %v338
    %816 = vmatprep.subr.mxu0 %v341
    %817 = vmatpush1.msra.mxu0 %v340
    %818 = vmatprep.subr.mxu0 %v343
    %819 = vmatpush1.msra.mxu0 %v342
    %820 = vmatprep.subr.mxu0 %v345
    %821 = vmatpush1.msra.mxu0 %v344
    %822 = vmatprep.subr.mxu0 %v347
    %823 = vmatpush1.msra.mxu0 %v346
    %824 = vmatprep.subr.mxu0 %v349
    %825 = vmatpush1.msra.mxu0 %v348
    %826 = vmatprep.subr.mxu0 0.0
    %827 = vmatpush1.msra.mxu0 0.0
    %828 = vmatprep.subr.mxu0 0.0
    %829 = vmatpush1.msra.mxu0 0.0
    %830 = vmatprep.subr.mxu0 0.0
    %831 = vmatpush1.msra.mxu0 0.0
    %832 = vmatprep.subr.mxu0 0.0
    %833 = vmatpush1.msra.mxu0 0.0
    %834 = vmatprep.subr.mxu0 0.0
    %835 = vmatpush1.msra.mxu0 0.0
    %836 = vmatprep.subr.mxu0 0.0
    %837 = vmatpush1.msra.mxu0 0.0
    %838 = vmatprep.subr.mxu0 0.0
    %839 = vmatpush1.msra.mxu0 0.0
    %840 = vmatprep.subr.mxu0 0.0
    %841 = vmatpush1.msra.mxu0 0.0
    %842 = vmatprep.subr.mxu0 0.0
    %843 = vmatpush1.msra.mxu0 0.0
    %844 = vmatprep.subr.mxu0 0.0
    %845 = vmatpush1.msra.mxu0 0.0
    %846 = vmatprep.subr.mxu0 0.0
    %847 = vmatpush1.msra.mxu0 0.0
    %848 = vmatprep.subr.mxu0 0.0
    %849 = vmatpush1.msra.mxu0 0.0
    %850 = vmatprep.subr.mxu0 0.0
    %851 = vmatpush1.msra.mxu0 0.0
    %852 = vmatprep.subr.mxu0 0.0
    %853 = vmatpush1.msra.mxu0 0.0
    %854 = vmatprep.subr.mxu0 0.0
    %855 = vmatpush1.msra.mxu0 0.0
    %856 = vmatprep.subr.mxu0 0.0
    %857 = vmatpush1.msra.mxu0 0.0
    %858 = vmatprep.subr.mxu0 0.0
    %859 = vmatpush1.msra.mxu0 0.0
    %860 = vmatprep.subr.mxu0 0.0
    %861 = vmatpush1.msra.mxu0 0.0
    %862 = vmatprep.subr.mxu0 0.0
    %863 = vmatpush1.msra.mxu0 0.0
    %864 = vmatprep.subr.mxu0 0.0
    %865 = vmatpush1.msra.mxu0 0.0
    %866 = vmatprep.subr.mxu0 0.0
    %867 = vmatpush1.msra.mxu0 0.0
    %868 = vmatprep.subr.mxu0 0.0
    %869 = vmatpush1.msra.mxu0 0.0
    %870 = vmatprep.subr.mxu0 0.0
    %871 = vmatpush1.msra.mxu0 0.0
    %872 = vmatprep.subr.mxu0 0.0
    %873 = vmatpush1.msra.mxu0 0.0
    %874 = vmatprep.mubr.f32.mxu0 0.0
    %875 = vmatmul.mubr.f32.gmra.mrb[0].mxu0 %v808
    %v876 = vpop.f32.mrb[0].mxu0
    %v877 = vadd.f32 0.0, %v876
    %v878 = vpop.f32.mrb[0].mxu0
    %v879 = vadd.f32 0.0, %v878
    %880 = vdwg.mxu0
    %v883 = vrot.slane %v877, 4
    %v884 = vrot.slane %v879, 4
    %v887 = vadd.f32 %v356, %v883
    %v888 = vadd.f32 %v357, %v884
    %v889 = vxor.u32 %v887, 2147483648
    %v890 = vxor.u32 %v888, 2147483648
    %v891 = vmul.f32 %v889, 1.442695
    %v892 = vpow.pop %v891
    %v893 = vmul.f32 %v890, 1.442695
    %v894 = vpow.pop %v893
    %v895 = vadd.f32 %v892, 1.0
    %v896 = vadd.f32 %v894, 1.0
    %v897 = vrcp.pop %v895
    %v898 = vmul.f32 1.0, %v897
    %v899 = vrcp.pop %v896
    %v900 = vmul.f32 1.0, %v899
    %v901 = vtanh.pop %v888
    %v903 = vrot.slane %v801, 7
    %v905 = vmul.f32 %v898, %v903
    %v906 = vmul.f32 %v898, %v901
    %908 = vrot.lane.b32.xlu0 %v906, 64
    %v909 = vpop.permute.xlu0 %908
    %v911 = vadd.f32 %v905, %v909
    %v912 = vtanh.pop %v911
    %v913 = vmul.f32 %v900, %v912
    %v915 = vrot.slane %v913, 4
    %916 = vrot.lane.b32.xlu0 %v915, 64
    %v917 = vpop.permute.xlu0 %916
    %v918 = vsel %vm358, %v917, 0
    %920 = vmatprep.subr.mxu0 %v335
    %921 = vmatpush1.msra.mxu0 %v334
    %922 = vmatprep.subr.mxu0 %v337
    %923 = vmatpush1.msra.mxu0 %v336
    %924 = vmatprep.subr.mxu0 %v339
    %925 = vmatpush1.msra.mxu0 %v338
    %926 = vmatprep.subr.mxu0 %v341
    %927 = vmatpush1.msra.mxu0 %v340
    %928 = vmatprep.subr.mxu0 %v343
    %929 = vmatpush1.msra.mxu0 %v342
    %930 = vmatprep.subr.mxu0 %v345
    %931 = vmatpush1.msra.mxu0 %v344
    %932 = vmatprep.subr.mxu0 %v347
    %933 = vmatpush1.msra.mxu0 %v346
    %934 = vmatprep.subr.mxu0 %v349
    %935 = vmatpush1.msra.mxu0 %v348
    %936 = vmatprep.subr.mxu0 0.0
    %937 = vmatpush1.msra.mxu0 0.0
    %938 = vmatprep.subr.mxu0 0.0
    %939 = vmatpush1.msra.mxu0 0.0
    %940 = vmatprep.subr.mxu0 0.0
    %941 = vmatpush1.msra.mxu0 0.0
    %942 = vmatprep.subr.mxu0 0.0
    %943 = vmatpush1.msra.mxu0 0.0
    %944 = vmatprep.subr.mxu0 0.0
    %945 = vmatpush1.msra.mxu0 0.0
    %946 = vmatprep.subr.mxu0 0.0
    %947 = vmatpush1.msra.mxu0 0.0
    %948 = vmatprep.subr.mxu0 0.0
    %949 = vmatpush1.msra.mxu0 0.0
    %950 = vmatprep.subr.mxu0 0.0
    %951 = vmatpush1.msra.mxu0 0.0
    %952 = vmatprep.subr.mxu0 0.0
    %953 = vmatpush1.msra.mxu0 0.0
    %954 = vmatprep.subr.mxu0 0.0
    %955 = vmatpush1.msra.mxu0 0.0
    %956 = vmatprep.subr.mxu0 0.0
    %957 = vmatpush1.msra.mxu0 0.0
    %958 = vmatprep.subr.mxu0 0.0
    %959 = vmatpush1.msra.mxu0 0.0
    %960 = vmatprep.subr.mxu0 0.0
    %961 = vmatpush1.msra.mxu0 0.0
    %962 = vmatprep.subr.mxu0 0.0
    %963 = vmatpush1.msra.mxu0 0.0
    %964 = vmatprep.subr.mxu0 0.0
    %965 = vmatpush1.msra.mxu0 0.0
    %966 = vmatprep.subr.mxu0 0.0
    %967 = vmatpush1.msra.mxu0 0.0
    %968 = vmatprep.subr.mxu0 0.0
    %969 = vmatpush1.msra.mxu0 0.0
    %970 = vmatprep.subr.mxu0 0.0
    %971 = vmatpush1.msra.mxu0 0.0
    %972 = vmatprep.subr.mxu0 0.0
    %973 = vmatpush1.msra.mxu0 0.0
    %974 = vmatprep.subr.mxu0 0.0
    %975 = vmatpush1.msra.mxu0 0.0
    %976 = vmatprep.subr.mxu0 0.0
    %977 = vmatpush1.msra.mxu0 0.0
    %978 = vmatprep.subr.mxu0 0.0
    %979 = vmatpush1.msra.mxu0 0.0
    %980 = vmatprep.subr.mxu0 0.0
    %981 = vmatpush1.msra.mxu0 0.0
    %982 = vmatprep.subr.mxu0 0.0
    %983 = vmatpush1.msra.mxu0 0.0
    %984 = vmatprep.mubr.f32.mxu0 0.0
    %985 = vmatmul.mubr.f32.gmra.mrb[0].mxu0 %v918
    %v986 = vpop.f32.mrb[0].mxu0
    %v987 = vadd.f32 0.0, %v986
    %v988 = vpop.f32.mrb[0].mxu0
    %v989 = vadd.f32 0.0, %v988
    %990 = vdwg.mxu0
    %v993 = vrot.slane %v987, 3
    %v994 = vrot.slane %v989, 3
    %v997 = vadd.f32 %v461, %v993
    %v998 = vadd.f32 %v462, %v994
    %v999 = vxor.u32 %v997, 2147483648
    %v1000 = vxor.u32 %v998, 2147483648
    %v1001 = vmul.f32 %v999, 1.442695
    %v1002 = vpow.pop %v1001
    %v1003 = vmul.f32 %v1000, 1.442695
    %v1004 = vpow.pop %v1003
    %v1005 = vadd.f32 %v1002, 1.0
    %v1006 = vadd.f32 %v1004, 1.0
    %v1007 = vrcp.pop %v1005
    %v1008 = vmul.f32 1.0, %v1007
    %v1009 = vrcp.pop %v1006
    %v1010 = vmul.f32 1.0, %v1009
    %v1011 = vtanh.pop %v998
    %v1013 = vrot.slane %v911, 7
    %v1015 = vmul.f32 %v1008, %v1013
    %v1016 = vmul.f32 %v1008, %v1011
    %1018 = vrot.lane.b32.xlu0 %v1016, 64
    %v1019 = vpop.permute.xlu0 %1018
    %v1021 = vadd.f32 %v1015, %v1019
    %v1022 = vtanh.pop %v1021
    %v1023 = vmul.f32 %v1010, %v1022
    %v1025 = vrot.slane %v1023, 5
    %1026 = vrot.lane.b32.xlu0 %v1025, 64
    %v1027 = vpop.permute.xlu0 %1026
    %v1028 = vsel %vm358, %v1027, 0
    %1030 = vmatprep.subr.mxu0 %v335
    %1031 = vmatpush1.msra.mxu0 %v334
    %1032 = vmatprep.subr.mxu0 %v337
    %1033 = vmatpush1.msra.mxu0 %v336
    %1034 = vmatprep.subr.mxu0 %v339
    %1035 = vmatpush1.msra.mxu0 %v338
    %1036 = vmatprep.subr.mxu0 %v341
    %1037 = vmatpush1.msra.mxu0 %v340
    %1038 = vmatprep.subr.mxu0 %v343
    %1039 = vmatpush1.msra.mxu0 %v342
    %1040 = vmatprep.subr.mxu0 %v345
    %1041 = vmatpush1.msra.mxu0 %v344
    %1042 = vmatprep.subr.mxu0 %v347
    %1043 = vmatpush1.msra.mxu0 %v346
    %1044 = vmatprep.subr.mxu0 %v349
    %1045 = vmatpush1.msra.mxu0 %v348
    %1046 = vmatprep.subr.mxu0 0.0
    %1047 = vmatpush1.msra.mxu0 0.0
    %1048 = vmatprep.subr.mxu0 0.0
    %1049 = vmatpush1.msra.mxu0 0.0
    %1050 = vmatprep.subr.mxu0 0.0
    %1051 = vmatpush1.msra.mxu0 0.0
    %1052 = vmatprep.subr.mxu0 0.0
    %1053 = vmatpush1.msra.mxu0 0.0
    %1054 = vmatprep.subr.mxu0 0.0
    %1055 = vmatpush1.msra.mxu0 0.0
    %1056 = vmatprep.subr.mxu0 0.0
    %1057 = vmatpush1.msra.mxu0 0.0
    %1058 = vmatprep.subr.mxu0 0.0
    %1059 = vmatpush1.msra.mxu0 0.0
    %1060 = vmatprep.subr.mxu0 0.0
    %1061 = vmatpush1.msra.mxu0 0.0
    %1062 = vmatprep.subr.mxu0 0.0
    %1063 = vmatpush1.msra.mxu0 0.0
    %1064 = vmatprep.subr.mxu0 0.0
    %1065 = vmatpush1.msra.mxu0 0.0
    %1066 = vmatprep.subr.mxu0 0.0
    %1067 = vmatpush1.msra.mxu0 0.0
    %1068 = vmatprep.subr.mxu0 0.0
    %1069 = vmatpush1.msra.mxu0 0.0
    %1070 = vmatprep.subr.mxu0 0.0
    %1071 = vmatpush1.msra.mxu0 0.0
    %1072 = vmatprep.subr.mxu0 0.0
    %1073 = vmatpush1.msra.mxu0 0.0
    %1074 = vmatprep.subr.mxu0 0.0
    %1075 = vmatpush1.msra.mxu0 0.0
    %1076 = vmatprep.subr.mxu0 0.0
    %1077 = vmatpush1.msra.mxu0 0.0
    %1078 = vmatprep.subr.mxu0 0.0
    %1079 = vmatpush1.msra.mxu0 0.0
    %1080 = vmatprep.subr.mxu0 0.0
    %1081 = vmatpush1.msra.mxu0 0.0
    %1082 = vmatprep.subr.mxu0 0.0
    %1083 = vmatpush1.msra.mxu0 0.0
    %1084 = vmatprep.subr.mxu0 0.0
    %1085 = vmatpush1.msra.mxu0 0.0
    %1086 = vmatprep.subr.mxu0 0.0
    %1087 = vmatpush1.msra.mxu0 0.0
    %1088 = vmatprep.subr.mxu0 0.0
    %1089 = vmatpush1.msra.mxu0 0.0
    %1090 = vmatprep.subr.mxu0 0.0
    %1091 = vmatpush1.msra.mxu0 0.0
    %1092 = vmatprep.subr.mxu0 0.0
    %1093 = vmatpush1.msra.mxu0 0.0
    %1094 = vmatprep.mubr.f32.mxu0 0.0
    %1095 = vmatmul.mubr.f32.gmra.mrb[0].mxu0 %v1028
    %v1096 = vpop.f32.mrb[0].mxu0
    %v1097 = vadd.f32 0.0, %v1096
    %v1098 = vpop.f32.mrb[0].mxu0
    %v1099 = vadd.f32 0.0, %v1098
    %1100 = vdwg.mxu0
    %v1103 = vrot.slane %v1097, 2
    %v1104 = vrot.slane %v1099, 2
    %v1107 = vadd.f32 %v576, %v1103
    %v1108 = vadd.f32 %v577, %v1104
    %v1109 = vxor.u32 %v1107, 2147483648
    %v1110 = vxor.u32 %v1108, 2147483648
    %v1111 = vmul.f32 %v1109, 1.442695
    %v1112 = vpow.pop %v1111
    %v1113 = vmul.f32 %v1110, 1.442695
    %v1114 = vpow.pop %v1113
    %v1115 = vadd.f32 %v1112, 1.0
    %v1116 = vadd.f32 %v1114, 1.0
    %v1117 = vrcp.pop %v1115
    %v1118 = vmul.f32 1.0, %v1117
    %v1119 = vrcp.pop %v1116
    %v1120 = vmul.f32 1.0, %v1119
    %v1121 = vtanh.pop %v1108
    %v1123 = vrot.slane %v1021, 7
    %v1125 = vmul.f32 %v1118, %v1123
    %v1126 = vmul.f32 %v1118, %v1121
    %1128 = vrot.lane.b32.xlu0 %v1126, 64
    %v1129 = vpop.permute.xlu0 %1128
    %v1131 = vadd.f32 %v1125, %v1129
    %v1132 = vtanh.pop %v1131
    %v1133 = vmul.f32 %v1120, %v1132
    %v1135 = vrot.slane %v1133, 6
    %1136 = vrot.lane.b32.xlu0 %v1135, 64
    %v1137 = vpop.permute.xlu0 %1136
    %v1138 = vsel %vm358, %v1137, 0
    %1140 = vmatprep.subr.mxu0 %v335
    %1141 = vmatpush1.msra.mxu0 %v334
    %1142 = vmatprep.subr.mxu0 %v337
    %1143 = vmatpush1.msra.mxu0 %v336
    %1144 = vmatprep.subr.mxu0 %v339
    %1145 = vmatpush1.msra.mxu0 %v338
    %1146 = vmatprep.subr.mxu0 %v341
    %1147 = vmatpush1.msra.mxu0 %v340
    %1148 = vmatprep.subr.mxu0 %v343
    %1149 = vmatpush1.msra.mxu0 %v342
    %1150 = vmatprep.subr.mxu0 %v345
    %1151 = vmatpush1.msra.mxu0 %v344
    %1152 = vmatprep.subr.mxu0 %v347
    %1153 = vmatpush1.msra.mxu0 %v346
    %1154 = vmatprep.subr.mxu0 %v349
    %1155 = vmatpush1.msra.mxu0 %v348
    %1156 = vmatprep.subr.mxu0 0.0
    %1157 = vmatpush1.msra.mxu0 0.0
    %1158 = vmatprep.subr.mxu0 0.0
    %1159 = vmatpush1.msra.mxu0 0.0
    %1160 = vmatprep.subr.mxu0 0.0
    %1161 = vmatpush1.msra.mxu0 0.0
    %1162 = vmatprep.subr.mxu0 0.0
    %1163 = vmatpush1.msra.mxu0 0.0
    %1164 = vmatprep.subr.mxu0 0.0
    %1165 = vmatpush1.msra.mxu0 0.0
    %1166 = vmatprep.subr.mxu0 0.0
    %1167 = vmatpush1.msra.mxu0 0.0
    %1168 = vmatprep.subr.mxu0 0.0
    %1169 = vmatpush1.msra.mxu0 0.0
    %1170 = vmatprep.subr.mxu0 0.0
    %1171 = vmatpush1.msra.mxu0 0.0
    %1172 = vmatprep.subr.mxu0 0.0
    %1173 = vmatpush1.msra.mxu0 0.0
    %1174 = vmatprep.subr.mxu0 0.0
    %1175 = vmatpush1.msra.mxu0 0.0
    %1176 = vmatprep.subr.mxu0 0.0
    %1177 = vmatpush1.msra.mxu0 0.0
    %1178 = vmatprep.subr.mxu0 0.0
    %1179 = vmatpush1.msra.mxu0 0.0
    %1180 = vmatprep.subr.mxu0 0.0
    %1181 = vmatpush1.msra.mxu0 0.0
    %1182 = vmatprep.subr.mxu0 0.0
    %1183 = vmatpush1.msra.mxu0 0.0
    %1184 = vmatprep.subr.mxu0 0.0
    %1185 = vmatpush1.msra.mxu0 0.0
    %1186 = vmatprep.subr.mxu0 0.0
    %1187 = vmatpush1.msra.mxu0 0.0
    %1188 = vmatprep.subr.mxu0 0.0
    %1189 = vmatpush1.msra.mxu0 0.0
    %1190 = vmatprep.subr.mxu0 0.0
    %1191 = vmatpush1.msra.mxu0 0.0
    %1192 = vmatprep.subr.mxu0 0.0
    %1193 = vmatpush1.msra.mxu0 0.0
    %1194 = vmatprep.subr.mxu0 0.0
    %1195 = vmatpush1.msra.mxu0 0.0
    %1196 = vmatprep.subr.mxu0 0.0
    %1197 = vmatpush1.msra.mxu0 0.0
    %1198 = vmatprep.subr.mxu0 0.0
    %1199 = vmatpush1.msra.mxu0 0.0
    %1200 = vmatprep.subr.mxu0 0.0
    %1201 = vmatpush1.msra.mxu0 0.0
    %1202 = vmatprep.subr.mxu0 0.0
    %1203 = vmatpush1.msra.mxu0 0.0
    %1204 = vmatprep.mubr.f32.mxu0 0.0
    %1205 = vmatmul.mubr.f32.gmra.mrb[0].mxu0 %v1138
    %v1206 = vpop.f32.mrb[0].mxu0
    %v1207 = vadd.f32 0.0, %v1206
    %v1208 = vpop.f32.mrb[0].mxu0
    %v1209 = vadd.f32 0.0, %v1208
    %1210 = vdwg.mxu0
    %v1213 = vrot.slane %v1207, 1
    %v1214 = vrot.slane %v1209, 1
    %v1217 = vadd.f32 %v692, %v1213
    %v1218 = vadd.f32 %v693, %v1214
    %v1219 = vxor.u32 %v1217, 2147483648
    %v1220 = vxor.u32 %v1218, 2147483648
    %v1221 = vmul.f32 %v1219, 1.442695
    %v1222 = vpow.pop %v1221
    %v1223 = vmul.f32 %v1220, 1.442695
    %v1224 = vpow.pop %v1223
    %v1225 = vadd.f32 %v1222, 1.0
    %v1226 = vadd.f32 %v1224, 1.0
    %v1227 = vrcp.pop %v1225
    %v1228 = vmul.f32 1.0, %v1227
    %v1229 = vrcp.pop %v1226
    %v1230 = vmul.f32 1.0, %v1229
    %v1231 = vtanh.pop %v1218
    %v1233 = vrot.slane %v1131, 7
    %v1235 = vmul.f32 %v1228, %v1233
    %v1236 = vmul.f32 %v1228, %v1231
    %1238 = vrot.lane.b32.xlu0 %v1236, 64
    %v1239 = vpop.permute.xlu0 %1238
    %v1241 = vadd.f32 %v1235, %v1239
    %v1242 = vtanh.pop %v1241
    %v1243 = vmul.f32 %v1230, %v1242
    %v1246 = vrot.slane %v1243, 7
    %1247 = vrot.lane.b32.xlu0 %v1246, 64
    %v1248 = vpop.permute.xlu0 %1247
    %v1250 = vsel %vm218, %v465, %v1248
    %vm1251 = vcmask 516096
    %1252 = vst.msk [vmem:[#allocation2] sm:$0x1] %vm1251, %v1250
    %v1255 = vsel %vm218, %v581, %v1137
    %1256 = vst.msk [vmem:[#allocation2 + $0x1] sm:$0x1] %vm1251, %v1255
    %v1259 = vsel %vm218, %v697, %v1027
    %1260 = vst.msk [vmem:[#allocation2 + $0x2] sm:$0x1] %vm1251, %v1259
    %v1263 = vsel %vm218, %v807, %v917
    %1264 = vst.msk [vmem:[#allocation2 + $0x3] sm:$0x1] %vm1251, %v1263
    %v1265 = vsel %vm218, %v917, %v807
    %1266 = vst.msk [vmem:[#allocation2 + $0x4] sm:$0x1] %vm1251, %v1265
    %v1267 = vsel %vm218, %v1027, %v697
    %1268 = vst.msk [vmem:[#allocation2 + $0x5] sm:$0x1] %vm1251, %v1267
    %v1269 = vsel %vm218, %v1137, %v581
    %1270 = vst.msk [vmem:[#allocation2 + $0x6] sm:$0x1] %vm1251, %v1269
    %v1271 = vsel %vm218, %v1248, %v465
    %1272 = vst.msk [vmem:[#allocation2 + $0x7] sm:$0x1] %vm1251, %v1271
    %v1273 = vld [vmem:[#allocation2] sm:$0xff]
    %v1274 = vld [vmem:[#allocation10] sm:$0xff]
    %v1275 = vld [vmem:[#allocation10 + $0x8] sm:$0xff]
    %v1276 = vld [vmem:[#allocation10 + $0x10] sm:$0xff]
    %v1277 = vld [vmem:[#allocation10 + $0x18] sm:$0xff]
    %v1278 = vld [vmem:[#allocation10 + $0x20] sm:$0xff]
    %v1279 = vld [vmem:[#allocation10 + $0x28] sm:$0xff]
    %v1280 = vld [vmem:[#allocation10 + $0x30] sm:$0xff]
    %v1281 = vld [vmem:[#allocation10 + $0x38] sm:$0xff]
    %v1282 = vld [vmem:[#allocation10 + $0x40] sm:$0xff]
    %v1283 = vld [vmem:[#allocation10 + $0x48] sm:$0xff]
    %v1284 = vld [vmem:[#allocation10 + $0x50] sm:$0xff]
    %v1285 = vld [vmem:[#allocation10 + $0x58] sm:$0xff]
    %v1286 = vld [vmem:[#allocation10 + $0x60] sm:$0xff]
    %v1287 = vld [vmem:[#allocation10 + $0x68] sm:$0xff]
    %v1288 = vld [vmem:[#allocation10 + $0x70] sm:$0xff]
    %v1289 = vld [vmem:[#allocation10 + $0x78] sm:$0xff]
    %v1290 = vld [vmem:[%s7] sm:$0x3]
    %v1292 = vlaneseq
    %v1293 = vshrl.u32 %v1292, 7
    %v1294 = vsub.s32 0, %v1293
    %v1295 = vrot.slane %v1290, %v1294
    %v1296 = vlaneseq
    %v1297 = vshrl.u32 %v1296, 7
    %v1298 = vsub.s32 1, %v1297
    %v1299 = vrot.slane %v1290, %v1298
    %v1303 = vsel %vm358, %v1273, 0
    %1305 = vmatprep.subr.mxu0 %v1275
    %1306 = vmatpush1.msra.mxu0 %v1274
    %1307 = vmatprep.subr.mxu0 %v1277
    %1308 = vmatpush1.msra.mxu0 %v1276
    %1309 = vmatprep.subr.mxu0 %v1279
    %1310 = vmatpush1.msra.mxu0 %v1278
    %1311 = vmatprep.subr.mxu0 %v1281
    %1312 = vmatpush1.msra.mxu0 %v1280
    %1313 = vmatprep.subr.mxu0 %v1283
    %1314 = vmatpush1.msra.mxu0 %v1282
    %1315 = vmatprep.subr.mxu0 %v1285
    %1316 = vmatpush1.msra.mxu0 %v1284
    %1317 = vmatprep.subr.mxu0 %v1287
    %1318 = vmatpush1.msra.mxu0 %v1286
    %1319 = vmatprep.subr.mxu0 %v1289
    %1320 = vmatpush1.msra.mxu0 %v1288
    %1321 = vmatprep.subr.mxu0 0.0
    %1322 = vmatpush1.msra.mxu0 0.0
    %1323 = vmatprep.subr.mxu0 0.0
    %1324 = vmatpush1.msra.mxu0 0.0
    %1325 = vmatprep.subr.mxu0 0.0
    %1326 = vmatpush1.msra.mxu0 0.0
    %1327 = vmatprep.subr.mxu0 0.0
    %1328 = vmatpush1.msra.mxu0 0.0
    %1329 = vmatprep.subr.mxu0 0.0
    %1330 = vmatpush1.msra.mxu0 0.0
    %1331 = vmatprep.subr.mxu0 0.0
    %1332 = vmatpush1.msra.mxu0 0.0
    %1333 = vmatprep.subr.mxu0 0.0
    %1334 = vmatpush1.msra.mxu0 0.0
    %1335 = vmatprep.subr.mxu0 0.0
    %1336 = vmatpush1.msra.mxu0 0.0
    %1337 = vmatprep.subr.mxu0 0.0
    %1338 = vmatpush1.msra.mxu0 0.0
    %1339 = vmatprep.subr.mxu0 0.0
    %1340 = vmatpush1.msra.mxu0 0.0
    %1341 = vmatprep.subr.mxu0 0.0
    %1342 = vmatpush1.msra.mxu0 0.0
    %1343 = vmatprep.subr.mxu0 0.0
    %1344 = vmatpush1.msra.mxu0 0.0
    %1345 = vmatprep.subr.mxu0 0.0
    %1346 = vmatpush1.msra.mxu0 0.0
    %1347 = vmatprep.subr.mxu0 0.0
    %1348 = vmatpush1.msra.mxu0 0.0
    %1349 = vmatprep.subr.mxu0 0.0
    %1350 = vmatpush1.msra.mxu0 0.0
    %1351 = vmatprep.subr.mxu0 0.0
    %1352 = vmatpush1.msra.mxu0 0.0
    %1353 = vmatprep.subr.mxu0 0.0
    %1354 = vmatpush1.msra.mxu0 0.0
    %1355 = vmatprep.subr.mxu0 0.0
    %1356 = vmatpush1.msra.mxu0 0.0
    %1357 = vmatprep.subr.mxu0 0.0
    %1358 = vmatpush1.msra.mxu0 0.0
    %1359 = vmatprep.subr.mxu0 0.0
    %1360 = vmatpush1.msra.mxu0 0.0
    %1361 = vmatprep.subr.mxu0 0.0
    %1362 = vmatpush1.msra.mxu0 0.0
    %1363 = vmatprep.subr.mxu0 0.0
    %1364 = vmatpush1.msra.mxu0 0.0
    %1365 = vmatprep.subr.mxu0 0.0
    %1366 = vmatpush1.msra.mxu0 0.0
    %1367 = vmatprep.subr.mxu0 0.0
    %1368 = vmatpush1.msra.mxu0 0.0
    %1369 = vmatprep.mubr.f32.mxu0 0.0
    %1370 = vmatmul.mubr.f32.gmra.mrb[0].mxu0 %v1303
    %v1371 = vpop.f32.mrb[0].mxu0
    %v1372 = vadd.f32 %v1295, %v1371
    %v1373 = vpop.f32.mrb[0].mxu0
    %v1374 = vadd.f32 %v1299, %v1373
    %1375 = vdwg.mxu0
    %v1376 = vld [vmem:[#allocation12] sm:$0xff]
    %v1377 = vld [vmem:[#allocation12 + $0x8] sm:$0xff]
    %v1378 = vld [vmem:[#allocation12 + $0x10] sm:$0xff]
    %v1379 = vld [vmem:[#allocation12 + $0x18] sm:$0xff]
    %v1380 = vld [vmem:[#allocation12 + $0x20] sm:$0xff]
    %v1381 = vld [vmem:[#allocation12 + $0x28] sm:$0xff]
    %v1382 = vld [vmem:[#allocation12 + $0x30] sm:$0xff]
    %v1383 = vld [vmem:[#allocation12 + $0x38] sm:$0xff]
    %v1384 = vld [vmem:[#allocation12 + $0x40] sm:$0xff]
    %v1385 = vld [vmem:[#allocation12 + $0x48] sm:$0xff]
    %v1386 = vld [vmem:[#allocation12 + $0x50] sm:$0xff]
    %v1387 = vld [vmem:[#allocation12 + $0x58] sm:$0xff]
    %v1388 = vld [vmem:[#allocation12 + $0x60] sm:$0xff]
    %v1389 = vld [vmem:[#allocation12 + $0x68] sm:$0xff]
    %v1390 = vld [vmem:[#allocation12 + $0x70] sm:$0xff]
    %v1391 = vld [vmem:[#allocation12 + $0x78] sm:$0xff]
    %v1394 = vrot.slane %v1372, 7
    %v1395 = vrot.slane %v1374, 7
    %v1398 = vsel %vm216, %v1372, %v1394
    %v1399 = vsel %vm217, %v1374, %v1395
    %1400 = vmatprep.subr.mxu0 %v1377
    %1401 = vmatpush1.msra.mxu0 %v1376
    %1402 = vmatprep.subr.mxu0 %v1379
    %1403 = vmatpush1.msra.mxu0 %v1378
    %1404 = vmatprep.subr.mxu0 %v1381
    %1405 = vmatpush1.msra.mxu0 %v1380
    %1406 = vmatprep.subr.mxu0 %v1383
    %1407 = vmatpush1.msra.mxu0 %v1382
    %1408 = vmatprep.subr.mxu0 %v1385
    %1409 = vmatpush1.msra.mxu0 %v1384
    %1410 = vmatprep.subr.mxu0 %v1387
    %1411 = vmatpush1.msra.mxu0 %v1386
    %1412 = vmatprep.subr.mxu0 %v1389
    %1413 = vmatpush1.msra.mxu0 %v1388
    %1414 = vmatprep.subr.mxu0 %v1391
    %1415 = vmatpush1.msra.mxu0 %v1390
    %1416 = vmatprep.subr.mxu0 0.0
    %1417 = vmatpush1.msra.mxu0 0.0
    %1418 = vmatprep.subr.mxu0 0.0
    %1419 = vmatpush1.msra.mxu0 0.0
    %1420 = vmatprep.subr.mxu0 0.0
    %1421 = vmatpush1.msra.mxu0 0.0
    %1422 = vmatprep.subr.mxu0 0.0
    %1423 = vmatpush1.msra.mxu0 0.0
    %1424 = vmatprep.subr.mxu0 0.0
    %1425 = vmatpush1.msra.mxu0 0.0
    %1426 = vmatprep.subr.mxu0 0.0
    %1427 = vmatpush1.msra.mxu0 0.0
    %1428 = vmatprep.subr.mxu0 0.0
    %1429 = vmatpush1.msra.mxu0 0.0
    %1430 = vmatprep.subr.mxu0 0.0
    %1431 = vmatpush1.msra.mxu0 0.0
    %1432 = vmatprep.subr.mxu0 0.0
    %1433 = vmatpush1.msra.mxu0 0.0
    %1434 = vmatprep.subr.mxu0 0.0
    %1435 = vmatpush1.msra.mxu0 0.0
    %1436 = vmatprep.subr.mxu0 0.0
    %1437 = vmatpush1.msra.mxu0 0.0
    %1438 = vmatprep.subr.mxu0 0.0
    %1439 = vmatpush1.msra.mxu0 0.0
    %1440 = vmatprep.subr.mxu0 0.0
    %1441 = vmatpush1.msra.mxu0 0.0
    %1442 = vmatprep.subr.mxu0 0.0
    %1443 = vmatpush1.msra.mxu0 0.0
    %1444 = vmatprep.subr.mxu0 0.0
    %1445 = vmatpush1.msra.mxu0 0.0
    %1446 = vmatprep.subr.mxu0 0.0
    %1447 = vmatpush1.msra.mxu0 0.0
    %1448 = vmatprep.subr.mxu0 0.0
    %1449 = vmatpush1.msra.mxu0 0.0
    %1450 = vmatprep.subr.mxu0 0.0
    %1451 = vmatpush1.msra.mxu0 0.0
    %1452 = vmatprep.subr.mxu0 0.0
    %1453 = vmatpush1.msra.mxu0 0.0
    %1454 = vmatprep.subr.mxu0 0.0
    %1455 = vmatpush1.msra.mxu0 0.0
    %1456 = vmatprep.subr.mxu0 0.0
    %1457 = vmatpush1.msra.mxu0 0.0
    %1458 = vmatprep.subr.mxu0 0.0
    %1459 = vmatpush1.msra.mxu0 0.0
    %1460 = vmatprep.subr.mxu0 0.0
    %1461 = vmatpush1.msra.mxu0 0.0
    %1462 = vmatprep.subr.mxu0 0.0
    %1463 = vmatpush1.msra.mxu0 0.0
    %1464 = vmatprep.mubr.f32.mxu0 0.0
    %1465 = vmatmul.mubr.f32.gmra.mrb[0].mxu0 %v360
    %v1466 = vpop.f32.mrb[0].mxu0
    %v1467 = vadd.f32 0.0, %v1466
    %v1468 = vpop.f32.mrb[0].mxu0
    %v1469 = vadd.f32 0.0, %v1468
    %1470 = vdwg.mxu0
    %v1471 = vadd.f32 %v1398, %v1467
    %v1472 = vadd.f32 %v1399, %v1469
    %v1473 = vxor.u32 %v1471, 2147483648
    %v1474 = vxor.u32 %v1472, 2147483648
    %v1475 = vmul.f32 %v1473, 1.442695
    %v1476 = vpow.pop %v1475
    %v1477 = vmul.f32 %v1474, 1.442695
    %v1478 = vpow.pop %v1477
    %v1479 = vadd.f32 %v1476, 1.0
    %v1480 = vadd.f32 %v1478, 1.0
    %v1481 = vrcp.pop %v1479
    %v1482 = vmul.f32 1.0, %v1481
    %v1483 = vrcp.pop %v1480
    %v1484 = vmul.f32 1.0, %v1483
    %v1485 = vtanh.pop %v1472
    %v1486 = vmul.f32 %v1482, 0.0
    %v1487 = vmul.f32 %v1482, %v1485
    %1489 = vrot.lane.b32.xlu0 %v1487, 64
    %v1490 = vpop.permute.xlu0 %1489
    %v1492 = vadd.f32 %v1486, %v1490
    %v1493 = vtanh.pop %v1492
    %v1494 = vmul.f32 %v1484, %v1493
    %v1495 = vrot.slane %v1372, 5
    %v1496 = vrot.slane %v1374, 5
    %v1499 = vsel %vm216, %v1372, %v1495
    %v1500 = vsel %vm217, %v1374, %v1496
    %1502 = vrot.lane.b32.xlu0 %v1494, 64
    %v1503 = vpop.permute.xlu0 %1502
    %v1504 = vsel %vm358, %v1503, 0
    %1506 = vmatprep.subr.mxu0 %v1377
    %1507 = vmatpush1.msra.mxu0 %v1376
    %1508 = vmatprep.subr.mxu0 %v1379
    %1509 = vmatpush1.msra.mxu0 %v1378
    %1510 = vmatprep.subr.mxu0 %v1381
    %1511 = vmatpush1.msra.mxu0 %v1380
    %1512 = vmatprep.subr.mxu0 %v1383
    %1513 = vmatpush1.msra.mxu0 %v1382
    %1514 = vmatprep.subr.mxu0 %v1385
    %1515 = vmatpush1.msra.mxu0 %v1384
    %1516 = vmatprep.subr.mxu0 %v1387
    %1517 = vmatpush1.msra.mxu0 %v1386
    %1518 = vmatprep.subr.mxu0 %v1389
    %1519 = vmatpush1.msra.mxu0 %v1388
    %1520 = vmatprep.subr.mxu0 %v1391
    %1521 = vmatpush1.msra.mxu0 %v1390
    %1522 = vmatprep.subr.mxu0 0.0
    %1523 = vmatpush1.msra.mxu0 0.0
    %1524 = vmatprep.subr.mxu0 0.0
    %1525 = vmatpush1.msra.mxu0 0.0
    %1526 = vmatprep.subr.mxu0 0.0
    %1527 = vmatpush1.msra.mxu0 0.0
    %1528 = vmatprep.subr.mxu0 0.0
    %1529 = vmatpush1.msra.mxu0 0.0
    %1530 = vmatprep.subr.mxu0 0.0
    %1531 = vmatpush1.msra.mxu0 0.0
    %1532 = vmatprep.subr.mxu0 0.0
    %1533 = vmatpush1.msra.mxu0 0.0
    %1534 = vmatprep.subr.mxu0 0.0
    %1535 = vmatpush1.msra.mxu0 0.0
    %1536 = vmatprep.subr.mxu0 0.0
    %1537 = vmatpush1.msra.mxu0 0.0
    %1538 = vmatprep.subr.mxu0 0.0
    %1539 = vmatpush1.msra.mxu0 0.0
    %1540 = vmatprep.subr.mxu0 0.0
    %1541 = vmatpush1.msra.mxu0 0.0
    %1542 = vmatprep.subr.mxu0 0.0
    %1543 = vmatpush1.msra.mxu0 0.0
    %1544 = vmatprep.subr.mxu0 0.0
    %1545 = vmatpush1.msra.mxu0 0.0
    %1546 = vmatprep.subr.mxu0 0.0
    %1547 = vmatpush1.msra.mxu0 0.0
    %1548 = vmatprep.subr.mxu0 0.0
    %1549 = vmatpush1.msra.mxu0 0.0
    %1550 = vmatprep.subr.mxu0 0.0
    %1551 = vmatpush1.msra.mxu0 0.0
    %1552 = vmatprep.subr.mxu0 0.0
    %1553 = vmatpush1.msra.mxu0 0.0
    %1554 = vmatprep.subr.mxu0 0.0
    %1555 = vmatpush1.msra.mxu0 0.0
    %1556 = vmatprep.subr.mxu0 0.0
    %1557 = vmatpush1.msra.mxu0 0.0
    %1558 = vmatprep.subr.mxu0 0.0
    %1559 = vmatpush1.msra.mxu0 0.0
    %1560 = vmatprep.subr.mxu0 0.0
    %1561 = vmatpush1.msra.mxu0 0.0
    %1562 = vmatprep.subr.mxu0 0.0
    %1563 = vmatpush1.msra.mxu0 0.0
    %1564 = vmatprep.subr.mxu0 0.0
    %1565 = vmatpush1.msra.mxu0 0.0
    %1566 = vmatprep.subr.mxu0 0.0
    %1567 = vmatpush1.msra.mxu0 0.0
    %1568 = vmatprep.subr.mxu0 0.0
    %1569 = vmatpush1.msra.mxu0 0.0
    %1570 = vmatprep.mubr.f32.mxu0 0.0
    %1571 = vmatmul.mubr.f32.gmra.mrb[0].mxu0 %v1504
    %v1572 = vpop.f32.mrb[0].mxu0
    %v1573 = vadd.f32 0.0, %v1572
    %v1574 = vpop.f32.mrb[0].mxu0
    %v1575 = vadd.f32 0.0, %v1574
    %1576 = vdwg.mxu0
    %v1579 = vrot.slane %v1573, 7
    %v1580 = vrot.slane %v1575, 7
    %v1583 = vadd.f32 %v1499, %v1579
    %v1584 = vadd.f32 %v1500, %v1580
    %v1585 = vxor.u32 %v1583, 2147483648
    %v1586 = vxor.u32 %v1584, 2147483648
    %v1587 = vmul.f32 %v1585, 1.442695
    %v1588 = vpow.pop %v1587
    %v1589 = vmul.f32 %v1586, 1.442695
    %v1590 = vpow.pop %v1589
    %v1591 = vadd.f32 %v1588, 1.0
    %v1592 = vadd.f32 %v1590, 1.0
    %v1593 = vrcp.pop %v1591
    %v1594 = vmul.f32 1.0, %v1593
    %v1595 = vrcp.pop %v1592
    %v1596 = vmul.f32 1.0, %v1595
    %v1597 = vtanh.pop %v1584
    %v1599 = vrot.slane %v1492, 7
    %v1601 = vmul.f32 %v1594, %v1599
    %v1602 = vmul.f32 %v1594, %v1597
    %1604 = vrot.lane.b32.xlu0 %v1602, 64
    %v1605 = vpop.permute.xlu0 %1604
    %v1607 = vadd.f32 %v1601, %v1605
    %v1608 = vtanh.pop %v1607
    %v1609 = vmul.f32 %v1596, %v1608
    %v1610 = vrot.slane %v1372, 3
    %v1611 = vrot.slane %v1374, 3
    %v1614 = vsel %vm216, %v1372, %v1610
    %v1615 = vsel %vm217, %v1374, %v1611
    %v1617 = vrot.slane %v1609, 1
    %1618 = vrot.lane.b32.xlu0 %v1617, 64
    %v1619 = vpop.permute.xlu0 %1618
    %v1620 = vsel %vm358, %v1619, 0
    %1622 = vmatprep.subr.mxu0 %v1377
    %1623 = vmatpush1.msra.mxu0 %v1376
    %1624 = vmatprep.subr.mxu0 %v1379
    %1625 = vmatpush1.msra.mxu0 %v1378
    %1626 = vmatprep.subr.mxu0 %v1381
    %1627 = vmatpush1.msra.mxu0 %v1380
    %1628 = vmatprep.subr.mxu0 %v1383
    %1629 = vmatpush1.msra.mxu0 %v1382
    %1630 = vmatprep.subr.mxu0 %v1385
    %1631 = vmatpush1.msra.mxu0 %v1384
    %1632 = vmatprep.subr.mxu0 %v1387
    %1633 = vmatpush1.msra.mxu0 %v1386
    %1634 = vmatprep.subr.mxu0 %v1389
    %1635 = vmatpush1.msra.mxu0 %v1388
    %1636 = vmatprep.subr.mxu0 %v1391
    %1637 = vmatpush1.msra.mxu0 %v1390
    %1638 = vmatprep.subr.mxu0 0.0
    %1639 = vmatpush1.msra.mxu0 0.0
    %1640 = vmatprep.subr.mxu0 0.0
    %1641 = vmatpush1.msra.mxu0 0.0
    %1642 = vmatprep.subr.mxu0 0.0
    %1643 = vmatpush1.msra.mxu0 0.0
    %1644 = vmatprep.subr.mxu0 0.0
    %1645 = vmatpush1.msra.mxu0 0.0
    %1646 = vmatprep.subr.mxu0 0.0
    %1647 = vmatpush1.msra.mxu0 0.0
    %1648 = vmatprep.subr.mxu0 0.0
    %1649 = vmatpush1.msra.mxu0 0.0
    %1650 = vmatprep.subr.mxu0 0.0
    %1651 = vmatpush1.msra.mxu0 0.0
    %1652 = vmatprep.subr.mxu0 0.0
    %1653 = vmatpush1.msra.mxu0 0.0
    %1654 = vmatprep.subr.mxu0 0.0
    %1655 = vmatpush1.msra.mxu0 0.0
    %1656 = vmatprep.subr.mxu0 0.0
    %1657 = vmatpush1.msra.mxu0 0.0
    %1658 = vmatprep.subr.mxu0 0.0
    %1659 = vmatpush1.msra.mxu0 0.0
    %1660 = vmatprep.subr.mxu0 0.0
    %1661 = vmatpush1.msra.mxu0 0.0
    %1662 = vmatprep.subr.mxu0 0.0
    %1663 = vmatpush1.msra.mxu0 0.0
    %1664 = vmatprep.subr.mxu0 0.0
    %1665 = vmatpush1.msra.mxu0 0.0
    %1666 = vmatprep.subr.mxu0 0.0
    %1667 = vmatpush1.msra.mxu0 0.0
    %1668 = vmatprep.subr.mxu0 0.0
    %1669 = vmatpush1.msra.mxu0 0.0
    %1670 = vmatprep.subr.mxu0 0.0
    %1671 = vmatpush1.msra.mxu0 0.0
    %1672 = vmatprep.subr.mxu0 0.0
    %1673 = vmatpush1.msra.mxu0 0.0
    %1674 = vmatprep.subr.mxu0 0.0
    %1675 = vmatpush1.msra.mxu0 0.0
    %1676 = vmatprep.subr.mxu0 0.0
    %1677 = vmatpush1.msra.mxu0 0.0
    %1678 = vmatprep.subr.mxu0 0.0
    %1679 = vmatpush1.msra.mxu0 0.0
    %1680 = vmatprep.subr.mxu0 0.0
    %1681 = vmatpush1.msra.mxu0 0.0
    %1682 = vmatprep.subr.mxu0 0.0
    %1683 = vmatpush1.msra.mxu0 0.0
    %1684 = vmatprep.subr.mxu0 0.0
    %1685 = vmatpush1.msra.mxu0 0.0
    %1686 = vmatprep.mubr.f32.mxu0 0.0
    %1687 = vmatmul.mubr.f32.gmra.mrb[0].mxu0 %v1620
    %v1688 = vpop.f32.mrb[0].mxu0
    %v1689 = vadd.f32 0.0, %v1688
    %v1690 = vpop.f32.mrb[0].mxu0
    %v1691 = vadd.f32 0.0, %v1690
    %1692 = vdwg.mxu0
    %v1695 = vrot.slane %v1689, 6
    %v1696 = vrot.slane %v1691, 6
    %v1699 = vadd.f32 %v1614, %v1695
    %v1700 = vadd.f32 %v1615, %v1696
    %v1701 = vxor.u32 %v1699, 2147483648
    %v1702 = vxor.u32 %v1700, 2147483648
    %v1703 = vmul.f32 %v1701, 1.442695
    %v1704 = vpow.pop %v1703
    %v1705 = vmul.f32 %v1702, 1.442695
    %v1706 = vpow.pop %v1705
    %v1707 = vadd.f32 %v1704, 1.0
    %v1708 = vadd.f32 %v1706, 1.0
    %v1709 = vrcp.pop %v1707
    %v1710 = vmul.f32 1.0, %v1709
    %v1711 = vrcp.pop %v1708
    %v1712 = vmul.f32 1.0, %v1711
    %v1713 = vtanh.pop %v1700
    %v1715 = vrot.slane %v1607, 7
    %v1717 = vmul.f32 %v1710, %v1715
    %v1718 = vmul.f32 %v1710, %v1713
    %1720 = vrot.lane.b32.xlu0 %v1718, 64
    %v1721 = vpop.permute.xlu0 %1720
    %v1723 = vadd.f32 %v1717, %v1721
    %v1724 = vtanh.pop %v1723
    %v1725 = vmul.f32 %v1712, %v1724
    %v1726 = vrot.slane %v1372, 1
    %v1727 = vrot.slane %v1374, 1
    %v1730 = vsel %vm216, %v1372, %v1726
    %v1731 = vsel %vm217, %v1374, %v1727
    %v1733 = vrot.slane %v1725, 2
    %1734 = vrot.lane.b32.xlu0 %v1733, 64
    %v1735 = vpop.permute.xlu0 %1734
    %v1736 = vsel %vm358, %v1735, 0
    %1738 = vmatprep.subr.mxu0 %v1377
    %1739 = vmatpush1.msra.mxu0 %v1376
    %1740 = vmatprep.subr.mxu0 %v1379
    %1741 = vmatpush1.msra.mxu0 %v1378
    %1742 = vmatprep.subr.mxu0 %v1381
    %1743 = vmatpush1.msra.mxu0 %v1380
    %1744 = vmatprep.subr.mxu0 %v1383
    %1745 = vmatpush1.msra.mxu0 %v1382
    %1746 = vmatprep.subr.mxu0 %v1385
    %1747 = vmatpush1.msra.mxu0 %v1384
    %1748 = vmatprep.subr.mxu0 %v1387
    %1749 = vmatpush1.msra.mxu0 %v1386
    %1750 = vmatprep.subr.mxu0 %v1389
    %1751 = vmatpush1.msra.mxu0 %v1388
    %1752 = vmatprep.subr.mxu0 %v1391
    %1753 = vmatpush1.msra.mxu0 %v1390
    %1754 = vmatprep.subr.mxu0 0.0
    %1755 = vmatpush1.msra.mxu0 0.0
    %1756 = vmatprep.subr.mxu0 0.0
    %1757 = vmatpush1.msra.mxu0 0.0
    %1758 = vmatprep.subr.mxu0 0.0
    %1759 = vmatpush1.msra.mxu0 0.0
    %1760 = vmatprep.subr.mxu0 0.0
    %1761 = vmatpush1.msra.mxu0 0.0
    %1762 = vmatprep.subr.mxu0 0.0
    %1763 = vmatpush1.msra.mxu0 0.0
    %1764 = vmatprep.subr.mxu0 0.0
    %1765 = vmatpush1.msra.mxu0 0.0
    %1766 = vmatprep.subr.mxu0 0.0
    %1767 = vmatpush1.msra.mxu0 0.0
    %1768 = vmatprep.subr.mxu0 0.0
    %1769 = vmatpush1.msra.mxu0 0.0
    %1770 = vmatprep.subr.mxu0 0.0
    %1771 = vmatpush1.msra.mxu0 0.0
    %1772 = vmatprep.subr.mxu0 0.0
    %1773 = vmatpush1.msra.mxu0 0.0
    %1774 = vmatprep.subr.mxu0 0.0
    %1775 = vmatpush1.msra.mxu0 0.0
    %1776 = vmatprep.subr.mxu0 0.0
    %1777 = vmatpush1.msra.mxu0 0.0
    %1778 = vmatprep.subr.mxu0 0.0
    %1779 = vmatpush1.msra.mxu0 0.0
    %1780 = vmatprep.subr.mxu0 0.0
    %1781 = vmatpush1.msra.mxu0 0.0
    %1782 = vmatprep.subr.mxu0 0.0
    %1783 = vmatpush1.msra.mxu0 0.0
    %1784 = vmatprep.subr.mxu0 0.0
    %1785 = vmatpush1.msra.mxu0 0.0
    %1786 = vmatprep.subr.mxu0 0.0
    %1787 = vmatpush1.msra.mxu0 0.0
    %1788 = vmatprep.subr.mxu0 0.0
    %1789 = vmatpush1.msra.mxu0 0.0
    %1790 = vmatprep.subr.mxu0 0.0
    %1791 = vmatpush1.msra.mxu0 0.0
    %1792 = vmatprep.subr.mxu0 0.0
    %1793 = vmatpush1.msra.mxu0 0.0
    %1794 = vmatprep.subr.mxu0 0.0
    %1795 = vmatpush1.msra.mxu0 0.0
    %1796 = vmatprep.subr.mxu0 0.0
    %1797 = vmatpush1.msra.mxu0 0.0
    %1798 = vmatprep.subr.mxu0 0.0
    %1799 = vmatpush1.msra.mxu0 0.0
    %1800 = vmatprep.subr.mxu0 0.0
    %1801 = vmatpush1.msra.mxu0 0.0
    %1802 = vmatprep.mubr.f32.mxu0 0.0
    %1803 = vmatmul.mubr.f32.gmra.mrb[0].mxu0 %v1736
    %v1804 = vpop.f32.mrb[0].mxu0
    %v1805 = vadd.f32 0.0, %v1804
    %v1806 = vpop.f32.mrb[0].mxu0
    %v1807 = vadd.f32 0.0, %v1806
    %1808 = vdwg.mxu0
    %v1811 = vrot.slane %v1805, 5
    %v1812 = vrot.slane %v1807, 5
    %v1815 = vadd.f32 %v1730, %v1811
    %v1816 = vadd.f32 %v1731, %v1812
    %v1817 = vxor.u32 %v1815, 2147483648
    %v1818 = vxor.u32 %v1816, 2147483648
    %v1819 = vmul.f32 %v1817, 1.442695
    %v1820 = vpow.pop %v1819
    %v1821 = vmul.f32 %v1818, 1.442695
    %v1822 = vpow.pop %v1821
    %v1823 = vadd.f32 %v1820, 1.0
    %v1824 = vadd.f32 %v1822, 1.0
    %v1825 = vrcp.pop %v1823
    %v1826 = vmul.f32 1.0, %v1825
    %v1827 = vrcp.pop %v1824
    %v1828 = vmul.f32 1.0, %v1827
    %v1829 = vtanh.pop %v1816
    %v1831 = vrot.slane %v1723, 7
    %v1833 = vmul.f32 %v1826, %v1831
    %v1834 = vmul.f32 %v1826, %v1829
    %1836 = vrot.lane.b32.xlu0 %v1834, 64
    %v1837 = vpop.permute.xlu0 %1836
    %v1839 = vadd.f32 %v1833, %v1837
    %v1840 = vtanh.pop %v1839
    %v1841 = vmul.f32 %v1828, %v1840
    %v1843 = vrot.slane %v1841, 3
    %1844 = vrot.lane.b32.xlu0 %v1843, 64
    %v1845 = vpop.permute.xlu0 %1844
    %v1846 = vsel %vm358, %v1845, 0
    %1848 = vmatprep.subr.mxu0 %v1377
    %1849 = vmatpush1.msra.mxu0 %v1376
    %1850 = vmatprep.subr.mxu0 %v1379
    %1851 = vmatpush1.msra.mxu0 %v1378
    %1852 = vmatprep.subr.mxu0 %v1381
    %1853 = vmatpush1.msra.mxu0 %v1380
    %1854 = vmatprep.subr.mxu0 %v1383
    %1855 = vmatpush1.msra.mxu0 %v1382
    %1856 = vmatprep.subr.mxu0 %v1385
    %1857 = vmatpush1.msra.mxu0 %v1384
    %1858 = vmatprep.subr.mxu0 %v1387
    %1859 = vmatpush1.msra.mxu0 %v1386
    %1860 = vmatprep.subr.mxu0 %v1389
    %1861 = vmatpush1.msra.mxu0 %v1388
    %1862 = vmatprep.subr.mxu0 %v1391
    %1863 = vmatpush1.msra.mxu0 %v1390
    %1864 = vmatprep.subr.mxu0 0.0
    %1865 = vmatpush1.msra.mxu0 0.0
    %1866 = vmatprep.subr.mxu0 0.0
    %1867 = vmatpush1.msra.mxu0 0.0
    %1868 = vmatprep.subr.mxu0 0.0
    %1869 = vmatpush1.msra.mxu0 0.0
    %1870 = vmatprep.subr.mxu0 0.0
    %1871 = vmatpush1.msra.mxu0 0.0
    %1872 = vmatprep.subr.mxu0 0.0
    %1873 = vmatpush1.msra.mxu0 0.0
    %1874 = vmatprep.subr.mxu0 0.0
    %1875 = vmatpush1.msra.mxu0 0.0
    %1876 = vmatprep.subr.mxu0 0.0
    %1877 = vmatpush1.msra.mxu0 0.0
    %1878 = vmatprep.subr.mxu0 0.0
    %1879 = vmatpush1.msra.mxu0 0.0
    %1880 = vmatprep.subr.mxu0 0.0
    %1881 = vmatpush1.msra.mxu0 0.0
    %1882 = vmatprep.subr.mxu0 0.0
    %1883 = vmatpush1.msra.mxu0 0.0
    %1884 = vmatprep.subr.mxu0 0.0
    %1885 = vmatpush1.msra.mxu0 0.0
    %1886 = vmatprep.subr.mxu0 0.0
    %1887 = vmatpush1.msra.mxu0 0.0
    %1888 = vmatprep.subr.mxu0 0.0
    %1889 = vmatpush1.msra.mxu0 0.0
    %1890 = vmatprep.subr.mxu0 0.0
    %1891 = vmatpush1.msra.mxu0 0.0
    %1892 = vmatprep.subr.mxu0 0.0
    %1893 = vmatpush1.msra.mxu0 0.0
    %1894 = vmatprep.subr.mxu0 0.0
    %1895 = vmatpush1.msra.mxu0 0.0
    %1896 = vmatprep.subr.mxu0 0.0
    %1897 = vmatpush1.msra.mxu0 0.0
    %1898 = vmatprep.subr.mxu0 0.0
    %1899 = vmatpush1.msra.mxu0 0.0
    %1900 = vmatprep.subr.mxu0 0.0
    %1901 = vmatpush1.msra.mxu0 0.0
    %1902 = vmatprep.subr.mxu0 0.0
    %1903 = vmatpush1.msra.mxu0 0.0
    %1904 = vmatprep.subr.mxu0 0.0
    %1905 = vmatpush1.msra.mxu0 0.0
    %1906 = vmatprep.subr.mxu0 0.0
    %1907 = vmatpush1.msra.mxu0 0.0
    %1908 = vmatprep.subr.mxu0 0.0
    %1909 = vmatpush1.msra.mxu0 0.0
    %1910 = vmatprep.subr.mxu0 0.0
    %1911 = vmatpush1.msra.mxu0 0.0
    %1912 = vmatprep.mubr.f32.mxu0 0.0
    %1913 = vmatmul.mubr.f32.gmra.mrb[0].mxu0 %v1846
    %v1914 = vpop.f32.mrb[0].mxu0
    %v1915 = vadd.f32 0.0, %v1914
    %v1916 = vpop.f32.mrb[0].mxu0
    %v1917 = vadd.f32 0.0, %v1916
    %1918 = vdwg.mxu0
    %v1921 = vrot.slane %v1915, 4
    %v1922 = vrot.slane %v1917, 4
    %v1925 = vadd.f32 %v1398, %v1921
    %v1926 = vadd.f32 %v1399, %v1922
    %v1927 = vxor.u32 %v1925, 2147483648
    %v1928 = vxor.u32 %v1926, 2147483648
    %v1929 = vmul.f32 %v1927, 1.442695
    %v1930 = vpow.pop %v1929
    %v1931 = vmul.f32 %v1928, 1.442695
    %v1932 = vpow.pop %v1931
    %v1933 = vadd.f32 %v1930, 1.0
    %v1934 = vadd.f32 %v1932, 1.0
    %v1935 = vrcp.pop %v1933
    %v1936 = vmul.f32 1.0, %v1935
    %v1937 = vrcp.pop %v1934
    %v1938 = vmul.f32 1.0, %v1937
    %v1939 = vtanh.pop %v1926
    %v1941 = vrot.slane %v1839, 7
    %v1943 = vmul.f32 %v1936, %v1941
    %v1944 = vmul.f32 %v1936, %v1939
    %1946 = vrot.lane.b32.xlu0 %v1944, 64
    %v1947 = vpop.permute.xlu0 %1946
    %v1949 = vadd.f32 %v1943, %v1947
    %v1950 = vtanh.pop %v1949
    %v1951 = vmul.f32 %v1938, %v1950
    %v1953 = vrot.slane %v1951, 4
    %1954 = vrot.lane.b32.xlu0 %v1953, 64
    %v1955 = vpop.permute.xlu0 %1954
    %v1956 = vsel %vm358, %v1955, 0
    %1958 = vmatprep.subr.mxu0 %v1377
    %1959 = vmatpush1.msra.mxu0 %v1376
    %1960 = vmatprep.subr.mxu0 %v1379
    %1961 = vmatpush1.msra.mxu0 %v1378
    %1962 = vmatprep.subr.mxu0 %v1381
    %1963 = vmatpush1.msra.mxu0 %v1380
    %1964 = vmatprep.subr.mxu0 %v1383
    %1965 = vmatpush1.msra.mxu0 %v1382
    %1966 = vmatprep.subr.mxu0 %v1385
    %1967 = vmatpush1.msra.mxu0 %v1384
    %1968 = vmatprep.subr.mxu0 %v1387
    %1969 = vmatpush1.msra.mxu0 %v1386
    %1970 = vmatprep.subr.mxu0 %v1389
    %1971 = vmatpush1.msra.mxu0 %v1388
    %1972 = vmatprep.subr.mxu0 %v1391
    %1973 = vmatpush1.msra.mxu0 %v1390
    %1974 = vmatprep.subr.mxu0 0.0
    %1975 = vmatpush1.msra.mxu0 0.0
    %1976 = vmatprep.subr.mxu0 0.0
    %1977 = vmatpush1.msra.mxu0 0.0
    %1978 = vmatprep.subr.mxu0 0.0
    %1979 = vmatpush1.msra.mxu0 0.0
    %1980 = vmatprep.subr.mxu0 0.0
    %1981 = vmatpush1.msra.mxu0 0.0
    %1982 = vmatprep.subr.mxu0 0.0
    %1983 = vmatpush1.msra.mxu0 0.0
    %1984 = vmatprep.subr.mxu0 0.0
    %1985 = vmatpush1.msra.mxu0 0.0
    %1986 = vmatprep.subr.mxu0 0.0
    %1987 = vmatpush1.msra.mxu0 0.0
    %1988 = vmatprep.subr.mxu0 0.0
    %1989 = vmatpush1.msra.mxu0 0.0
    %1990 = vmatprep.subr.mxu0 0.0
    %1991 = vmatpush1.msra.mxu0 0.0
    %1992 = vmatprep.subr.mxu0 0.0
    %1993 = vmatpush1.msra.mxu0 0.0
    %1994 = vmatprep.subr.mxu0 0.0
    %1995 = vmatpush1.msra.mxu0 0.0
    %1996 = vmatprep.subr.mxu0 0.0
    %1997 = vmatpush1.msra.mxu0 0.0
    %1998 = vmatprep.subr.mxu0 0.0
    %1999 = vmatpush1.msra.mxu0 0.0
    %2000 = vmatprep.subr.mxu0 0.0
    %2001 = vmatpush1.msra.mxu0 0.0
    %2002 = vmatprep.subr.mxu0 0.0
    %2003 = vmatpush1.msra.mxu0 0.0
    %2004 = vmatprep.subr.mxu0 0.0
    %2005 = vmatpush1.msra.mxu0 0.0
    %2006 = vmatprep.subr.mxu0 0.0
    %2007 = vmatpush1.msra.mxu0 0.0
    %2008 = vmatprep.subr.mxu0 0.0
    %2009 = vmatpush1.msra.mxu0 0.0
    %2010 = vmatprep.subr.mxu0 0.0
    %2011 = vmatpush1.msra.mxu0 0.0
    %2012 = vmatprep.subr.mxu0 0.0
    %2013 = vmatpush1.msra.mxu0 0.0
    %2014 = vmatprep.subr.mxu0 0.0
    %2015 = vmatpush1.msra.mxu0 0.0
    %2016 = vmatprep.subr.mxu0 0.0
    %2017 = vmatpush1.msra.mxu0 0.0
    %2018 = vmatprep.subr.mxu0 0.0
    %2019 = vmatpush1.msra.mxu0 0.0
    %2020 = vmatprep.subr.mxu0 0.0
    %2021 = vmatpush1.msra.mxu0 0.0
    %2022 = vmatprep.mubr.f32.mxu0 0.0
    %2023 = vmatmul.mubr.f32.gmra.mrb[0].mxu0 %v1956
    %v2024 = vpop.f32.mrb[0].mxu0
    %v2025 = vadd.f32 0.0, %v2024
    %v2026 = vpop.f32.mrb[0].mxu0
    %v2027 = vadd.f32 0.0, %v2026
    %2028 = vdwg.mxu0
    %v2031 = vrot.slane %v2025, 3
    %v2032 = vrot.slane %v2027, 3
    %v2035 = vadd.f32 %v1499, %v2031
    %v2036 = vadd.f32 %v1500, %v2032
    %v2037 = vxor.u32 %v2035, 2147483648
    %v2038 = vxor.u32 %v2036, 2147483648
    %v2039 = vmul.f32 %v2037, 1.442695
    %v2040 = vpow.pop %v2039
    %v2041 = vmul.f32 %v2038, 1.442695
    %v2042 = vpow.pop %v2041
    %v2043 = vadd.f32 %v2040, 1.0
    %v2044 = vadd.f32 %v2042, 1.0
    %v2045 = vrcp.pop %v2043
    %v2046 = vmul.f32 1.0, %v2045
    %v2047 = vrcp.pop %v2044
    %v2048 = vmul.f32 1.0, %v2047
    %v2049 = vtanh.pop %v2036
    %v2051 = vrot.slane %v1949, 7
    %v2053 = vmul.f32 %v2046, %v2051
    %v2054 = vmul.f32 %v2046, %v2049
    %2056 = vrot.lane.b32.xlu0 %v2054, 64
    %v2057 = vpop.permute.xlu0 %2056
    %v2059 = vadd.f32 %v2053, %v2057
    %v2060 = vtanh.pop %v2059
    %v2061 = vmul.f32 %v2048, %v2060
    %v2063 = vrot.slane %v2061, 5
    %2064 = vrot.lane.b32.xlu0 %v2063, 64
    %v2065 = vpop.permute.xlu0 %2064
    %v2066 = vsel %vm358, %v2065, 0
    %2068 = vmatprep.subr.mxu0 %v1377
    %2069 = vmatpush1.msra.mxu0 %v1376
    %2070 = vmatprep.subr.mxu0 %v1379
    %2071 = vmatpush1.msra.mxu0 %v1378
    %2072 = vmatprep.subr.mxu0 %v1381
    %2073 = vmatpush1.msra.mxu0 %v1380
    %2074 = vmatprep.subr.mxu0 %v1383
    %2075 = vmatpush1.msra.mxu0 %v1382
    %2076 = vmatprep.subr.mxu0 %v1385
    %2077 = vmatpush1.msra.mxu0 %v1384
    %2078 = vmatprep.subr.mxu0 %v1387
    %2079 = vmatpush1.msra.mxu0 %v1386
    %2080 = vmatprep.subr.mxu0 %v1389
    %2081 = vmatpush1.msra.mxu0 %v1388
    %2082 = vmatprep.subr.mxu0 %v1391
    %2083 = vmatpush1.msra.mxu0 %v1390
    %2084 = vmatprep.subr.mxu0 0.0
    %2085 = vmatpush1.msra.mxu0 0.0
    %2086 = vmatprep.subr.mxu0 0.0
    %2087 = vmatpush1.msra.mxu0 0.0
    %2088 = vmatprep.subr.mxu0 0.0
    %2089 = vmatpush1.msra.mxu0 0.0
    %2090 = vmatprep.subr.mxu0 0.0
    %2091 = vmatpush1.msra.mxu0 0.0
    %2092 = vmatprep.subr.mxu0 0.0
    %2093 = vmatpush1.msra.mxu0 0.0
    %2094 = vmatprep.subr.mxu0 0.0
    %2095 = vmatpush1.msra.mxu0 0.0
    %2096 = vmatprep.subr.mxu0 0.0
    %2097 = vmatpush1.msra.mxu0 0.0
    %2098 = vmatprep.subr.mxu0 0.0
    %2099 = vmatpush1.msra.mxu0 0.0
    %2100 = vmatprep.subr.mxu0 0.0
    %2101 = vmatpush1.msra.mxu0 0.0
    %2102 = vmatprep.subr.mxu0 0.0
    %2103 = vmatpush1.msra.mxu0 0.0
    %2104 = vmatprep.subr.mxu0 0.0
    %2105 = vmatpush1.msra.mxu0 0.0
    %2106 = vmatprep.subr.mxu0 0.0
    %2107 = vmatpush1.msra.mxu0 0.0
    %2108 = vmatprep.subr.mxu0 0.0
    %2109 = vmatpush1.msra.mxu0 0.0
    %2110 = vmatprep.subr.mxu0 0.0
    %2111 = vmatpush1.msra.mxu0 0.0
    %2112 = vmatprep.subr.mxu0 0.0
    %2113 = vmatpush1.msra.mxu0 0.0
    %2114 = vmatprep.subr.mxu0 0.0
    %2115 = vmatpush1.msra.mxu0 0.0
    %2116 = vmatprep.subr.mxu0 0.0
    %2117 = vmatpush1.msra.mxu0 0.0
    %2118 = vmatprep.subr.mxu0 0.0
    %2119 = vmatpush1.msra.mxu0 0.0
    %2120 = vmatprep.subr.mxu0 0.0
    %2121 = vmatpush1.msra.mxu0 0.0
    %2122 = vmatprep.subr.mxu0 0.0
    %2123 = vmatpush1.msra.mxu0 0.0
    %2124 = vmatprep.subr.mxu0 0.0
    %2125 = vmatpush1.msra.mxu0 0.0
    %2126 = vmatprep.subr.mxu0 0.0
    %2127 = vmatpush1.msra.mxu0 0.0
    %2128 = vmatprep.subr.mxu0 0.0
    %2129 = vmatpush1.msra.mxu0 0.0
    %2130 = vmatprep.subr.mxu0 0.0
    %2131 = vmatpush1.msra.mxu0 0.0
    %2132 = vmatprep.mubr.f32.mxu0 0.0
    %2133 = vmatmul.mubr.f32.gmra.mrb[0].mxu0 %v2066
    %v2134 = vpop.f32.mrb[0].mxu0
    %v2135 = vadd.f32 0.0, %v2134
    %v2136 = vpop.f32.mrb[0].mxu0
    %v2137 = vadd.f32 0.0, %v2136
    %2138 = vdwg.mxu0
    %v2141 = vrot.slane %v2135, 2
    %v2142 = vrot.slane %v2137, 2
    %v2145 = vadd.f32 %v1614, %v2141
    %v2146 = vadd.f32 %v1615, %v2142
    %v2147 = vxor.u32 %v2145, 2147483648
    %v2148 = vxor.u32 %v2146, 2147483648
    %v2149 = vmul.f32 %v2147, 1.442695
    %v2150 = vpow.pop %v2149
    %v2151 = vmul.f32 %v2148, 1.442695
    %v2152 = vpow.pop %v2151
    %v2153 = vadd.f32 %v2150, 1.0
    %v2154 = vadd.f32 %v2152, 1.0
    %v2155 = vrcp.pop %v2153
    %v2156 = vmul.f32 1.0, %v2155
    %v2157 = vrcp.pop %v2154
    %v2158 = vmul.f32 1.0, %v2157
    %v2159 = vtanh.pop %v2146
    %v2161 = vrot.slane %v2059, 7
    %v2163 = vmul.f32 %v2156, %v2161
    %v2164 = vmul.f32 %v2156, %v2159
    %2166 = vrot.lane.b32.xlu0 %v2164, 64
    %v2167 = vpop.permute.xlu0 %2166
    %v2169 = vadd.f32 %v2163, %v2167
    %v2170 = vtanh.pop %v2169
    %v2171 = vmul.f32 %v2158, %v2170
    %v2173 = vrot.slane %v2171, 6
    %2174 = vrot.lane.b32.xlu0 %v2173, 64
    %v2175 = vpop.permute.xlu0 %2174
    %v2176 = vsel %vm358, %v2175, 0
    %2178 = vmatprep.subr.mxu0 %v1377
    %2179 = vmatpush1.msra.mxu0 %v1376
    %2180 = vmatprep.subr.mxu0 %v1379
    %2181 = vmatpush1.msra.mxu0 %v1378
    %2182 = vmatprep.subr.mxu0 %v1381
    %2183 = vmatpush1.msra.mxu0 %v1380
    %2184 = vmatprep.subr.mxu0 %v1383
    %2185 = vmatpush1.msra.mxu0 %v1382
    %2186 = vmatprep.subr.mxu0 %v1385
    %2187 = vmatpush1.msra.mxu0 %v1384
    %2188 = vmatprep.subr.mxu0 %v1387
    %2189 = vmatpush1.msra.mxu0 %v1386
    %2190 = vmatprep.subr.mxu0 %v1389
    %2191 = vmatpush1.msra.mxu0 %v1388
    %2192 = vmatprep.subr.mxu0 %v1391
    %2193 = vmatpush1.msra.mxu0 %v1390
    %2194 = vmatprep.subr.mxu0 0.0
    %2195 = vmatpush1.msra.mxu0 0.0
    %2196 = vmatprep.subr.mxu0 0.0
    %2197 = vmatpush1.msra.mxu0 0.0
    %2198 = vmatprep.subr.mxu0 0.0
    %2199 = vmatpush1.msra.mxu0 0.0
    %2200 = vmatprep.subr.mxu0 0.0
    %2201 = vmatpush1.msra.mxu0 0.0
    %2202 = vmatprep.subr.mxu0 0.0
    %2203 = vmatpush1.msra.mxu0 0.0
    %2204 = vmatprep.subr.mxu0 0.0
    %2205 = vmatpush1.msra.mxu0 0.0
    %2206 = vmatprep.subr.mxu0 0.0
    %2207 = vmatpush1.msra.mxu0 0.0
    %2208 = vmatprep.subr.mxu0 0.0
    %2209 = vmatpush1.msra.mxu0 0.0
    %2210 = vmatprep.subr.mxu0 0.0
    %2211 = vmatpush1.msra.mxu0 0.0
    %2212 = vmatprep.subr.mxu0 0.0
    %2213 = vmatpush1.msra.mxu0 0.0
    %2214 = vmatprep.subr.mxu0 0.0
    %2215 = vmatpush1.msra.mxu0 0.0
    %2216 = vmatprep.subr.mxu0 0.0
    %2217 = vmatpush1.msra.mxu0 0.0
    %2218 = vmatprep.subr.mxu0 0.0
    %2219 = vmatpush1.msra.mxu0 0.0
    %2220 = vmatprep.subr.mxu0 0.0
    %2221 = vmatpush1.msra.mxu0 0.0
    %2222 = vmatprep.subr.mxu0 0.0
    %2223 = vmatpush1.msra.mxu0 0.0
    %2224 = vmatprep.subr.mxu0 0.0
    %2225 = vmatpush1.msra.mxu0 0.0
    %2226 = vmatprep.subr.mxu0 0.0
    %2227 = vmatpush1.msra.mxu0 0.0
    %2228 = vmatprep.subr.mxu0 0.0
    %2229 = vmatpush1.msra.mxu0 0.0
    %2230 = vmatprep.subr.mxu0 0.0
    %2231 = vmatpush1.msra.mxu0 0.0
    %2232 = vmatprep.subr.mxu0 0.0
    %2233 = vmatpush1.msra.mxu0 0.0
    %2234 = vmatprep.subr.mxu0 0.0
    %2235 = vmatpush1.msra.mxu0 0.0
    %2236 = vmatprep.subr.mxu0 0.0
    %2237 = vmatpush1.msra.mxu0 0.0
    %2238 = vmatprep.subr.mxu0 0.0
    %2239 = vmatpush1.msra.mxu0 0.0
    %2240 = vmatprep.subr.mxu0 0.0
    %2241 = vmatpush1.msra.mxu0 0.0
    %2242 = vmatprep.mubr.f32.mxu0 0.0
    %2243 = vmatmul.mubr.f32.gmra.mrb[0].mxu0 %v2176
    %v2244 = vpop.f32.mrb[0].mxu0
    %v2245 = vadd.f32 0.0, %v2244
    %v2246 = vpop.f32.mrb[0].mxu0
    %v2247 = vadd.f32 0.0, %v2246
    %2248 = vdwg.mxu0
    %v2251 = vrot.slane %v2245, 1
    %v2252 = vrot.slane %v2247, 1
    %v2255 = vadd.f32 %v1730, %v2251
    %v2256 = vadd.f32 %v1731, %v2252
    %v2257 = vxor.u32 %v2255, 2147483648
    %v2258 = vxor.u32 %v2256, 2147483648
    %v2259 = vmul.f32 %v2257, 1.442695
    %v2260 = vpow.pop %v2259
    %v2261 = vmul.f32 %v2258, 1.442695
    %v2262 = vpow.pop %v2261
    %v2263 = vadd.f32 %v2260, 1.0
    %v2264 = vadd.f32 %v2262, 1.0
    %v2265 = vrcp.pop %v2263
    %v2266 = vmul.f32 1.0, %v2265
    %v2267 = vrcp.pop %v2264
    %v2268 = vmul.f32 1.0, %v2267
    %v2269 = vtanh.pop %v2256
    %v2271 = vrot.slane %v2169, 7
    %v2273 = vmul.f32 %v2266, %v2271
    %v2274 = vmul.f32 %v2266, %v2269
    %2276 = vrot.lane.b32.xlu0 %v2274, 64
    %v2277 = vpop.permute.xlu0 %2276
    %v2279 = vadd.f32 %v2273, %v2277
    %v2280 = vtanh.pop %v2279
    %v2281 = vmul.f32 %v2268, %v2280
    %v2284 = vrot.slane %v2281, 7
    %2285 = vrot.lane.b32.xlu0 %v2284, 64
    %v2286 = vpop.permute.xlu0 %2285
    %v2288 = vsel %vm218, %v1503, %v2286
    %2289 = vst.msk [vmem:[#allocation3] sm:$0x1] %vm1251, %v2288
    %v2292 = vsel %vm218, %v1619, %v2175
    %2293 = vst.msk [vmem:[#allocation3 + $0x1] sm:$0x1] %vm1251, %v2292
    %v2296 = vsel %vm218, %v1735, %v2065
    %2297 = vst.msk [vmem:[#allocation3 + $0x2] sm:$0x1] %vm1251, %v2296
    %v2300 = vsel %vm218, %v1845, %v1955
    %2301 = vst.msk [vmem:[#allocation3 + $0x3] sm:$0x1] %vm1251, %v2300
    %v2302 = vsel %vm218, %v1955, %v1845
    %2303 = vst.msk [vmem:[#allocation3 + $0x4] sm:$0x1] %vm1251, %v2302
    %v2304 = vsel %vm218, %v2065, %v1735
    %2305 = vst.msk [vmem:[#allocation3 + $0x5] sm:$0x1] %vm1251, %v2304
    %v2306 = vsel %vm218, %v2175, %v1619
    %2307 = vst.msk [vmem:[#allocation3 + $0x6] sm:$0x1] %vm1251, %v2306
    %v2308 = vsel %vm218, %v2286, %v1503
    %2309 = vst.msk [vmem:[#allocation3 + $0x7] sm:$0x1] %vm1251, %v2308
    %v2310 = vld [vmem:[#allocation3] sm:$0xff]
    %v2311 = vld [vmem:[#allocation13] sm:$0xff]
    %v2312 = vld [vmem:[#allocation13 + $0x8] sm:$0xff]
    %v2313 = vld [vmem:[#allocation13 + $0x10] sm:$0xff]
    %v2314 = vld [vmem:[#allocation13 + $0x18] sm:$0xff]
    %v2315 = vld [vmem:[#allocation13 + $0x20] sm:$0xff]
    %v2316 = vld [vmem:[#allocation13 + $0x28] sm:$0xff]
    %v2317 = vld [vmem:[#allocation13 + $0x30] sm:$0xff]
    %v2318 = vld [vmem:[#allocation13 + $0x38] sm:$0xff]
    %v2319 = vld [vmem:[%s9] sm:$0x1]
    %v2321 = vlaneseq
    %v2322 = vshrl.u32 %v2321, 7
    %v2323 = vsub.s32 0, %v2322
    %v2324 = vrot.slane %v2319, %v2323
    %v2327 = vsel %vm358, %v2310, 0
    %2329 = vmatprep.subr.mxu0 0.0
    %2330 = vmatpush1.msra.mxu0 %v2311
    %2331 = vmatprep.subr.mxu0 0.0
    %2332 = vmatpush1.msra.mxu0 %v2312
    %2333 = vmatprep.subr.mxu0 0.0
    %2334 = vmatpush1.msra.mxu0 %v2313
    %2335 = vmatprep.subr.mxu0 0.0
    %2336 = vmatpush1.msra.mxu0 %v2314
    %2337 = vmatprep.subr.mxu0 0.0
    %2338 = vmatpush1.msra.mxu0 %v2315
    %2339 = vmatprep.subr.mxu0 0.0
    %2340 = vmatpush1.msra.mxu0 %v2316
    %2341 = vmatprep.subr.mxu0 0.0
    %2342 = vmatpush1.msra.mxu0 %v2317
    %2343 = vmatprep.subr.mxu0 0.0
    %2344 = vmatpush1.msra.mxu0 %v2318
    %2345 = vmatprep.subr.mxu0 0.0
    %2346 = vmatpush1.msra.mxu0 0.0
    %2347 = vmatprep.subr.mxu0 0.0
    %2348 = vmatpush1.msra.mxu0 0.0
    %2349 = vmatprep.subr.mxu0 0.0
    %2350 = vmatpush1.msra.mxu0 0.0
    %2351 = vmatprep.subr.mxu0 0.0
    %2352 = vmatpush1.msra.mxu0 0.0
    %2353 = vmatprep.subr.mxu0 0.0
    %2354 = vmatpush1.msra.mxu0 0.0
    %2355 = vmatprep.subr.mxu0 0.0
    %2356 = vmatpush1.msra.mxu0 0.0
    %2357 = vmatprep.subr.mxu0 0.0
    %2358 = vmatpush1.msra.mxu0 0.0
    %2359 = vmatprep.subr.mxu0 0.0
    %2360 = vmatpush1.msra.mxu0 0.0
    %2361 = vmatprep.subr.mxu0 0.0
    %2362 = vmatpush1.msra.mxu0 0.0
    %2363 = vmatprep.subr.mxu0 0.0
    %2364 = vmatpush1.msra.mxu0 0.0
    %2365 = vmatprep.subr.mxu0 0.0
    %2366 = vmatpush1.msra.mxu0 0.0
    %2367 = vmatprep.subr.mxu0 0.0
    %2368 = vmatpush1.msra.mxu0 0.0
    %2369 = vmatprep.subr.mxu0 0.0
    %2370 = vmatpush1.msra.mxu0 0.0
    %2371 = vmatprep.subr.mxu0 0.0
    %2372 = vmatpush1.msra.mxu0 0.0
    %2373 = vmatprep.subr.mxu0 0.0
    %2374 = vmatpush1.msra.mxu0 0.0
    %2375 = vmatprep.subr.mxu0 0.0
    %2376 = vmatpush1.msra.mxu0 0.0
    %2377 = vmatprep.subr.mxu0 0.0
    %2378 = vmatpush1.msra.mxu0 0.0
    %2379 = vmatprep.subr.mxu0 0.0
    %2380 = vmatpush1.msra.mxu0 0.0
    %2381 = vmatprep.subr.mxu0 0.0
    %2382 = vmatpush1.msra.mxu0 0.0
    %2383 = vmatprep.subr.mxu0 0.0
    %2384 = vmatpush1.msra.mxu0 0.0
    %2385 = vmatprep.subr.mxu0 0.0
    %2386 = vmatpush1.msra.mxu0 0.0
    %2387 = vmatprep.subr.mxu0 0.0
    %2388 = vmatpush1.msra.mxu0 0.0
    %2389 = vmatprep.subr.mxu0 0.0
    %2390 = vmatpush1.msra.mxu0 0.0
    %2391 = vmatprep.subr.mxu0 0.0
    %2392 = vmatpush1.msra.mxu0 0.0
    %2393 = vmatprep.mubr.f32.mxu0 0.0
    %2394 = vmatmul.mubr.f32.gmra.mrb[0].mxu0 %v2327
    %v2395 = vpop.f32.mrb[0].mxu0
    %v2396 = vadd.f32 %v2324, %v2395
    %v2397 = vpop.f32.mrb[0].mxu0
    %2398 = vdwg.mxu0
    %2399 = vmax.xlane.f32.xlu0 %v2396
    %v2400 = vpop.xlane.xlu0 %2399
    %v2401 = vsub.f32 %v2396, %v2400
    %v2402 = vmul.f32 %v2401, 1.442695
    %v2403 = vpow.pop %v2402
    %2404 = vadd.xlane.f32.xlu0 %v2403
    %v2405 = vpop.xlane.xlu0 %2404
    %v2406 = vlog2.pop %v2405
    %v2407 = vmul.f32 %v2406, 0.6931472
    %v2408 = vsub.f32 %v2401, %v2407
    %2409 = vst [vmem:[#allocation15] sm:$0xff] %v2408
    // Predicated region
    $region66: #{lstm_tagger_forward.1} parent=1 // pred_check
      _
    $region67: #{lstm_tagger_forward.1} parent=1 // pred_check_branch
      %2411 = sbr.rel (0) target = $region69
    $region68: #{lstm_tagger_forward.1} parent=1 // pred_region
      %s2413 = ssub.s32 128, 128
      %2414 = vsyncadd [#allocation6], %s2413
      %s2416 = sshll.u32 [#allocation15], 4
      %s2417 = int_to_ptr.vmem [resolvable:$true] %s2416
      %2419 = dma.vmem_to_hbm [thread:$0]  %s2417, 128, %s10, [#allocation6]
    $region69: #{lstm_tagger_forward.1} parent=1 // pred_fallthru
      _
    // Predicated region
    $region70: #{lstm_tagger_forward.1} parent=1 // pred_check
      _
    $region71: #{lstm_tagger_forward.1} parent=1 // pred_check_branch
      %2421 = sbr.rel (0) target = $region73
    $region72: #{lstm_tagger_forward.1} parent=1 // pred_region
      %2422 = dma.done [#allocation6], 128
    $region73: #{lstm_tagger_forward.1} parent=1 // pred_fallthru
      _
    %2423 = vsyncpa [#allocation5], 1
    %2424 = vsyncpa [#allocation8], 1
    %2425 = vsyncpa [#allocation11], 1
    %2426 = vsyncpa [#allocation14], 1
    %2427 = vsyncpa [#allocation6], 1

</llo_original>
